<compile_context>
chip_gen: v7x
topology: tpu7x:2x2x1
jax: 0.10.0
libtpu: 0.0.40
codegen_flags: <defaults>
</compile_context>

<pallas_src>
import functools

import jax
import jax.numpy as jnp
from jax.experimental import pallas as pl
from jax.experimental.pallas import tpu as pltpu

BLOCKS = 6
LATENT = 256
T_DIM = 64
HID = 256
IN_DIM = 784
N_CLASSES = 10
HALF = LATENT // 2
HEAD_PAD = 128            # lane-dense padded logits width
FUSED_MAX_B = 128         # single fused kernel up to this batch size


def _round_up(n, m):
    return ((n + m - 1) // m) * m


def _vmem_capacity_bytes():
    """Best-effort VMEM capacity query; conservative (v7x) fallback."""
    try:
        info = pltpu.get_tpu_info()
        cap = getattr(info, "vmem_capacity_bytes", None)
        if cap:
            return int(cap)
    except Exception:
        pass
    return 64 * 1024 * 1024


_VMEM_CAP = _vmem_capacity_bytes()
if _VMEM_CAP >= 128 * 1024 * 1024:        # v5e / v6e: 128 MiB physical VMEM
    MAX_TILE_B = 1024
    VMEM_LIMIT = 64 * 1024 * 1024
else:                                      # v7x (64 MiB per TC) or unknown
    MAX_TILE_B = 512
    VMEM_LIMIT = 32 * 1024 * 1024


# ----------------------------- kernels --------------------------------------

def _pre_kernel(x_ref, w_ref, b_ref, h0_ref, psum_ref, *,
                tile_b, b_actual, needs_mask):
    """pre: Linear(784,256)+ReLU (bf16 MXU); emits bf16 h0 + masked f32 partial sum."""
    f32 = jnp.float32
    bf16 = jnp.bfloat16
    x = x_ref[...].astype(bf16)
    h0 = jnp.dot(x, w_ref[...], preferred_element_type=f32) + b_ref[...]
    h0 = jnp.maximum(h0, 0.0)
    h0_ref[...] = h0.astype(h0_ref.dtype)                     # bf16 round-trip

    if needs_mask:  # padded batch: exclude pad rows from the batch-mean sum
        row = jax.lax.broadcasted_iota(jnp.int32, (tile_b, 1), 0)
        valid = (pl.program_id(0) * tile_b + row) < b_actual
        h0 = jnp.where(valid, h0, 0.0)
    psum = jnp.sum(h0, axis=0, keepdims=True)                  # [1, LATENT] f32
    # replicate across 8 sublanes so the output block is (8, 128)-tileable
    psum_ref[...] = jnp.broadcast_to(psum[None, :, :], (1, 8, LATENT))


def _flow_kernel(h0_ref, bias1_ref, cw1x_ref, cw2_ref, cb2_ref,
                 cwst_ref, cbst_ref, head_w_ref, head_b_ref,
                 z_ref, logits_ref):
    """6 coupling blocks (x1 invariant, r folded into bias) + padded head (bf16 MXU)."""
    f32 = jnp.float32
    bf16 = jnp.bfloat16
    h0 = h0_ref[...]                                           # [T, 256] bf16
    x1 = h0[:, :HALF]                                          # invariant, bf16
    x2 = h0[:, HALF:].astype(f32)                              # carried in f32

    # all six layer-1 matmuls fused: [T,128] @ [128, 6*256] (+ r-folded f32 bias)
    h1_all = jnp.dot(x1, cw1x_ref[...], preferred_element_type=f32) + bias1_ref[...]
    h1_all = jnp.maximum(h1_all, 0.0)                          # [T, 6*HID] f32

    for i in range(BLOCKS):                                    # static unroll
        h1 = h1_all[:, i * HID:(i + 1) * HID].astype(bf16)     # [T, 256]
        h2 = jnp.dot(h1, cw2_ref[i], preferred_element_type=f32) + cb2_ref[i]
        h2 = jnp.maximum(h2, 0.0).astype(bf16)
        # fused scale|shift head: one N=256 matmul
        st = jnp.dot(h2, cwst_ref[i], preferred_element_type=f32) + cbst_ref[i]
        s = jnp.tanh(st[:, :HALF])
        t = st[:, HALF:]
        x2 = x2 * jnp.exp(s) + t                               # only x2 is carried

    z = jnp.concatenate([x1.astype(f32), x2], axis=-1)         # single concat
    z_ref[...] = z
    logits_ref[...] = (jnp.dot(z.astype(bf16), head_w_ref[...],
                               preferred_element_type=f32)
                       + head_b_ref[...])                      # lane-dense [T,128]


def _fused_kernel(x_ref, pre_w_ref, pre_b_ref,
                  te_w1_ref, te_b1_ref, te_w2_ref, te_b2_ref,
                  cw1x_ref, cw1r_ref, cb1_ref,
                  cw2_ref, cb2_ref, cwst_ref, cbst_ref,
                  head_w_ref, head_b_ref,
                  logits_ref, z_ref, r_ref, *, b_actual, needs_mask):
    """Small-batch path: whole forward in one kernel, everything VMEM-resident."""
    f32 = jnp.float32
    bf16 = jnp.bfloat16

    # pre + ReLU
    x = x_ref[...].astype(bf16)
    h0 = jnp.dot(x, pre_w_ref[...], preferred_element_type=f32) + pre_b_ref[...]
    h0 = jnp.maximum(h0, 0.0)                                  # [Bp, 256] f32

    # batch mean over the real rows only
    if needs_mask:
        row = jax.lax.broadcasted_iota(jnp.int32, h0.shape, 0)
        h0m = jnp.where(row < b_actual, h0, 0.0)
    else:
        h0m = h0
    ctx = jnp.sum(h0m, axis=0, keepdims=True) * (1.0 / b_actual)   # [1, 256]

    # TaskEmbed
    t1 = jnp.dot(ctx.astype(bf16), te_w1_ref[...],
                 preferred_element_type=f32) + te_b1_ref[...]
    t1 = jnp.maximum(t1, 0.0)
    r = jnp.dot(t1.astype(bf16), te_w2_ref[...],
                preferred_element_type=f32) + te_b2_ref[...]
    r_ref[...] = r                                             # [1, T_DIM]

    # effective layer-1 bias for all 6 coupling blocks: r @ W_r + b  -> [1, 6*HID]
    bias1 = jnp.dot(r.astype(bf16), cw1r_ref[...],
                    preferred_element_type=f32) + cb1_ref[...]

    # coupling flow (x1 invariant)
    x1 = h0[:, :HALF]
    x2 = h0[:, HALF:]
    h1_all = jnp.dot(x1.astype(bf16), cw1x_ref[...],
                     preferred_element_type=f32) + bias1
    h1_all = jnp.maximum(h1_all, 0.0)

    for i in range(BLOCKS):
        h1 = h1_all[:, i * HID:(i + 1) * HID].astype(bf16)
        h2 = jnp.dot(h1, cw2_ref[i], preferred_element_type=f32) + cb2_ref[i]
        h2 = jnp.maximum(h2, 0.0).astype(bf16)
        st = jnp.dot(h2, cwst_ref[i], preferred_element_type=f32) + cbst_ref[i]
        s = jnp.tanh(st[:, :HALF])
        t = st[:, HALF:]
        x2 = x2 * jnp.exp(s) + t

    z = jnp.concatenate([x1, x2], axis=-1)
    z_ref[...] = z
    logits_ref[...] = (jnp.dot(z.astype(bf16), head_w_ref[...],
                               preferred_element_type=f32) + head_b_ref[...])


# ----------------------------- param prep (one-time) -------------------------

def prepare_params(params):
    """One-time repack + bf16 cast of the FlowCL weights (hoisted out of forward)."""
    f32, bf16 = jnp.float32, jnp.bfloat16
    cw1 = params["cw1"]                                        # [6, 192, 256]
    cw1x = cw1[:, :HALF, :].transpose(1, 0, 2).reshape(HALF, BLOCKS * HID)
    cw1r = cw1[:, HALF:, :].transpose(1, 0, 2).reshape(T_DIM, BLOCKS * HID)
    cb1 = params["cb1"].transpose(1, 0, 2).reshape(1, BLOCKS * HID)
    cwst = jnp.concatenate([params["cws"], params["cwt"]], axis=-1)   # [6,256,256]
    cbst = jnp.concatenate([params["cbs"], params["cbt"]], axis=-1)   # [6,1,256]
    head_w = jnp.pad(params["head_w"], ((0, 0), (0, HEAD_PAD - N_CLASSES)))
    head_b = jnp.pad(params["head_b"], ((0, 0), (0, HEAD_PAD - N_CLASSES)))
    return dict(
        pre_w=params["pre_w"].astype(bf16), pre_b=params["pre_b"].astype(f32),
        te_w1=params["te_w1"].astype(bf16), te_b1=params["te_b1"].astype(f32),
        te_w2=params["te_w2"].astype(bf16), te_b2=params["te_b2"].astype(f32),
        cw1x=cw1x.astype(bf16), cw1r=cw1r.astype(bf16), cb1=cb1.astype(f32),
        cw2=params["cw2"].astype(bf16), cb2=params["cb2"].astype(f32),
        cwst=cwst.astype(bf16), cbst=cbst.astype(f32),
        head_w=head_w.astype(bf16), head_b=head_b.astype(f32),
    )


# ----------------------------- forward ---------------------------------------

def _forward_fused(x, p, B):
    f32 = jnp.float32
    b_pad = _round_up(B, 8)
    if b_pad != B:
        x = jnp.pad(x, ((0, b_pad - B), (0, 0)))
    vmem = pl.BlockSpec(memory_space=pltpu.MemorySpace.VMEM)
    logits_pad, z_pad, r = pl.pallas_call(
        functools.partial(_fused_kernel, b_actual=B, needs_mask=(b_pad != B)),
        in_specs=[vmem] * 16,
        out_specs=(vmem, vmem, vmem),
        out_shape=(jax.ShapeDtypeStruct((b_pad, HEAD_PAD), f32),
                   jax.ShapeDtypeStruct((b_pad, LATENT), f32),
                   jax.ShapeDtypeStruct((1, T_DIM), f32)),
        compiler_params=pltpu.CompilerParams(vmem_limit_bytes=VMEM_LIMIT),
    )(x, p["pre_w"], p["pre_b"], p["te_w1"], p["te_b1"], p["te_w2"], p["te_b2"],
      p["cw1x"], p["cw1r"], p["cb1"], p["cw2"], p["cb2"], p["cwst"], p["cbst"],
      p["head_w"], p["head_b"])
    return logits_pad[:B, :N_CLASSES], z_pad[:B], r


def _forward_tiled(x, p, B):
    f32, bf16 = jnp.float32, jnp.bfloat16
    # >= 2 tiles so the "parallel" axis can shard across v7x's two TensorCores.
    tile_b = min(MAX_TILE_B, _round_up(-(-B // 2), 8))
    n_tiles = -(-B // tile_b)
    b_pad = n_tiles * tile_b
    if b_pad != B:
        x = jnp.pad(x, ((0, b_pad - B), (0, 0)))
    needs_mask = (b_pad != B)

    gparams = pltpu.CompilerParams(dimension_semantics=("parallel",),
                                   vmem_limit_bytes=VMEM_LIMIT)
    const2 = lambda i: (0, 0)
    const3 = lambda i: (0, 0, 0)

    # --- pass 1: pre + ReLU (h0 stored bf16) + per-tile partial sums -----------
    h0, psums = pl.pallas_call(
        functools.partial(_pre_kernel, tile_b=tile_b, b_actual=B,
                          needs_mask=needs_mask),
        grid=(n_tiles,),
        in_specs=[pl.BlockSpec((tile_b, IN_DIM), lambda i: (i, 0)),
                  pl.BlockSpec((IN_DIM, LATENT), const2),
                  pl.BlockSpec((1, LATENT), const2)],
        out_specs=(pl.BlockSpec((tile_b, LATENT), lambda i: (i, 0)),
                   pl.BlockSpec((1, 8, LATENT), lambda i: (i, 0, 0))),
        out_shape=(jax.ShapeDtypeStruct((b_pad, LATENT), bf16),
                   jax.ShapeDtypeStruct((n_tiles, 8, LATENT), f32)),
        compiler_params=gparams,
    )(x, p["pre_w"], p["pre_b"])

    # --- pass 2 (tiny): batch mean -> TaskEmbed r -> r-folded layer-1 bias -----
    # Plain JAX: ~0.3 MFLOP with M=1, a dedicated kernel was pure launch latency.
    ctx = (jnp.sum(psums, axis=(0, 1)) / (8.0 * B))[None, :]
    t1 = jax.nn.relu(jnp.dot(ctx.astype(bf16), p["te_w1"],
                             preferred_element_type=f32) + p["te_b1"])
    r = jnp.dot(t1.astype(bf16), p["te_w2"],
                preferred_element_type=f32) + p["te_b2"]
    bias1 = jnp.dot(r.astype(bf16), p["cw1r"],
                    preferred_element_type=f32) + p["cb1"]

    # --- pass 3: coupling flow + head, batch-tiled and parallel ----------------
    z_pad, logits_pad = pl.pallas_call(
        _flow_kernel,
        grid=(n_tiles,),
        in_specs=[pl.BlockSpec((tile_b, LATENT), lambda i: (i, 0)),
                  pl.BlockSpec((1, BLOCKS * HID), const2),
                  pl.BlockSpec((HALF, BLOCKS * HID), const2),
                  pl.BlockSpec((BLOCKS, HID, HID), const3),
                  pl.BlockSpec((BLOCKS, 1, HID), const3),
                  pl.BlockSpec((BLOCKS, HID, 2 * HALF), const3),
                  pl.BlockSpec((BLOCKS, 1, 2 * HALF), const3),
                  pl.BlockSpec((LATENT, HEAD_PAD), const2),
                  pl.BlockSpec((1, HEAD_PAD), const2)],
        out_specs=(pl.BlockSpec((tile_b, LATENT), lambda i: (i, 0)),
                   pl.BlockSpec((tile_b, HEAD_PAD), lambda i: (i, 0))),
        out_shape=(jax.ShapeDtypeStruct((b_pad, LATENT), f32),
                   jax.ShapeDtypeStruct((b_pad, HEAD_PAD), f32)),
        compiler_params=gparams,
    )(h0, bias1, p["cw1x"], p["cw2"], p["cb2"], p["cwst"], p["cbst"],
      p["head_w"], p["head_b"])

    return logits_pad[:B, :N_CLASSES], z_pad[:B], r


def flowcl_forward(x, prepped_params):
    B = x.shape[0]
    if B <= FUSED_MAX_B:
        return _forward_fused(x, prepped_params, B)
    return _forward_tiled(x, prepped_params, B)


# ----------------------------- params & reference ----------------------------

def _linear_init(key, fan_in, fan_out):
    # Mimics torch.nn.Linear default init: U(-1/sqrt(fan_in), 1/sqrt(fan_in)).
    kw, kb = jax.random.split(key)
    bound = 1.0 / (fan_in ** 0.5)
    w = jax.random.uniform(kw, (fan_in, fan_out), jnp.float32, -bound, bound)
    b = jax.random.uniform(kb, (1, fan_out), jnp.float32, -bound, bound)
    return w, b


def init_params(key):
    keys = jax.random.split(key, 4 + BLOCKS)
    pre_w, pre_b = _linear_init(keys[0], IN_DIM, LATENT)
    te_w1, te_b1 = _linear_init(keys[1], LATENT, 128)
    te_w2, te_b2 = _linear_init(keys[2], 128, T_DIM)
    head_w, head_b = _linear_init(keys[3], LATENT, N_CLASSES)

    cw1, cb1, cw2, cb2, cws, cbs, cwt, cbt = ([] for _ in range(8))
    for i in range(BLOCKS):
        k1, k2, k3, k4 = jax.random.split(keys[4 + i], 4)
        w1, b1 = _linear_init(k1, HALF + T_DIM, HID)
        w2, b2 = _linear_init(k2, HID, HID)
        ws, bs = _linear_init(k3, HID, HALF)
        wt, bt = _linear_init(k4, HID, HALF)
        cw1.append(w1); cb1.append(b1)
        cw2.append(w2); cb2.append(b2)
        cws.append(ws); cbs.append(bs)
        cwt.append(wt); cbt.append(bt)

    return dict(
        pre_w=pre_w, pre_b=pre_b,
        te_w1=te_w1, te_b1=te_b1, te_w2=te_w2, te_b2=te_b2,
        cw1=jnp.stack(cw1), cb1=jnp.stack(cb1),      # [6, 192, 256], [6, 1, 256]
        cw2=jnp.stack(cw2), cb2=jnp.stack(cb2),      # [6, 256, 256], [6, 1, 256]
        cws=jnp.stack(cws), cbs=jnp.stack(cbs),      # [6, 256, 128], [6, 1, 128]
        cwt=jnp.stack(cwt), cbt=jnp.stack(cbt),      # [6, 256, 128], [6, 1, 128]
        head_w=head_w, head_b=head_b,
    )


def reference_forward(x, params):
    """Pure-JAX mirror of the PyTorch FlowCL.forward (f32, for correctness check)."""
    hp = jax.lax.Precision.HIGHEST
    h0 = jax.nn.relu(jnp.dot(x, params["pre_w"], precision=hp) + params["pre_b"])
    ctx = jnp.mean(h0, axis=0, keepdims=True)
    t1 = jax.nn.relu(jnp.dot(ctx, params["te_w1"], precision=hp) + params["te_b1"])
    r = jnp.dot(t1, params["te_w2"], precision=hp) + params["te_b2"]
    rb = jnp.broadcast_to(r, (x.shape[0], T_DIM))
    z = h0
    for i in range(BLOCKS):
        x1, x2 = z[:, :HALF], z[:, HALF:]
        inp = jnp.concatenate([x1, rb], axis=-1)
        h = jax.nn.relu(jnp.dot(inp, params["cw1"][i], precision=hp) + params["cb1"][i])
        h = jax.nn.relu(jnp.dot(h, params["cw2"][i], precision=hp) + params["cb2"][i])
        s = jnp.tanh(jnp.dot(h, params["cws"][i], precision=hp) + params["cbs"][i])
        t = jnp.dot(h, params["cwt"][i], precision=hp) + params["cbt"][i]
        z = jnp.concatenate([x1, x2 * jnp.exp(s) + t], axis=-1)
    logits = jnp.dot(z, params["head_w"], precision=hp) + params["head_b"]
    return logits, z, r


if __name__ == "__main__":
    key = jax.random.PRNGKey(0)
    k_x, k_p, k_x2 = jax.random.split(key, 3)

    params = init_params(k_p)
    prepped = prepare_params(params)          # one-time weight repack + bf16 cast
    fwd = jax.jit(flowcl_forward)

    # --- small batch: fused single-kernel path --------------------------------
    B = 8
    x = jax.random.normal(k_x, (B, IN_DIM), dtype=jnp.float32)
    logits, z, r = jax.block_until_ready(fwd(x, prepped))

    assert logits.shape == (B, N_CLASSES)
    assert z.shape == (B, LATENT)
    assert r.shape == (1, T_DIM)
    assert bool(jnp.all(jnp.isfinite(logits)))
    assert bool(jnp.all(jnp.isfinite(z)))
    assert bool(jnp.all(jnp.isfinite(r)))

    ref_logits, ref_z, ref_r = reference_forward(x, params)
    # bf16 MXU operands (f32 accumulation) -> tolerance relaxed vs f32 reference
    assert bool(jnp.allclose(logits, ref_logits, atol=5e-2, rtol=5e-2))
    assert bool(jnp.allclose(z, ref_z, atol=5e-2, rtol=5e-2))
    assert bool(jnp.allclose(r, ref_r, atol=2e-2, rtol=2e-2))

    # --- mid batch: batch-tiled grid path (>= 2 parallel tiles) ---------------
    B2 = 200
    x2 = jax.random.normal(k_x2, (B2, IN_DIM), dtype=jnp.float32)
    logits2, z2, r2 = jax.block_until_ready(fwd(x2, prepped))
    ref_logits2, ref_z2, ref_r2 = reference_forward(x2, params)
    assert bool(jnp.allclose(logits2, ref_logits2, atol=5e-2, rtol=5e-2))
    assert bool(jnp.allclose(z2, ref_z2, atol=5e-2, rtol=5e-2))
    assert bool(jnp.allclose(r2, ref_r2, atol=2e-2, rtol=2e-2))

    print("KERNEL_OK")
</pallas_src>

<mosaic_0001>
module attributes {stable_mosaic.version = 11 : i64} {
  func.func @_fused_kernel(%arg0: memref<8x784xf32, #tpu.memory_space<vmem>>, %arg1: memref<784x256xbf16, #tpu.memory_space<vmem>>, %arg2: memref<1x256xf32, #tpu.memory_space<vmem>>, %arg3: memref<256x128xbf16, #tpu.memory_space<vmem>>, %arg4: memref<1x128xf32, #tpu.memory_space<vmem>>, %arg5: memref<128x64xbf16, #tpu.memory_space<vmem>>, %arg6: memref<1x64xf32, #tpu.memory_space<vmem>>, %arg7: memref<128x1536xbf16, #tpu.memory_space<vmem>>, %arg8: memref<64x1536xbf16, #tpu.memory_space<vmem>>, %arg9: memref<1x1536xf32, #tpu.memory_space<vmem>>, %arg10: memref<6x256x256xbf16, #tpu.memory_space<vmem>>, %arg11: memref<6x1x256xf32, #tpu.memory_space<vmem>>, %arg12: memref<6x256x256xbf16, #tpu.memory_space<vmem>>, %arg13: memref<6x1x256xf32, #tpu.memory_space<vmem>>, %arg14: memref<256x128xbf16, #tpu.memory_space<vmem>>, %arg15: memref<1x128xf32, #tpu.memory_space<vmem>>, %arg16: memref<8x128xf32, #tpu.memory_space<vmem>>, %arg17: memref<8x256xf32, #tpu.memory_space<vmem>>, %arg18: memref<1x64xf32, #tpu.memory_space<vmem>>) attributes {dimension_semantics = [], scalar_prefetch = 0 : i64, scratch_operands = 0 : i64, tpu.core_type = #tpu.core_type<tc>} {
    %c0 = arith.constant 0 : index
    %c0_0 = arith.constant 0 : index
    %0 = vector.load %arg0[%c0, %c0_0] : memref<8x784xf32, #tpu.memory_space<vmem>>, vector<8x784xf32>
    %1 = arith.truncf %0 : vector<8x784xf32> to vector<8x784xbf16>
    %c0_1 = arith.constant 0 : index
    %c0_2 = arith.constant 0 : index
    %2 = vector.load %arg1[%c0_1, %c0_2] : memref<784x256xbf16, #tpu.memory_space<vmem>>, vector<784x256xbf16>
    %cst = arith.constant dense<0.000000e+00> : vector<8x256xf32>
    %3 = tpu.matmul %1, %2, %cst {dimension_numbers = #tpu.dot_dimension_numbers<[1], [0], [0], [1], [0, 0, 1, 1], [], []>} : vector<8x784xbf16>, vector<784x256xbf16>, vector<8x256xf32> -> vector<8x256xf32>
    %c0_3 = arith.constant 0 : index
    %c0_4 = arith.constant 0 : index
    %4 = vector.load %arg2[%c0_3, %c0_4] : memref<1x256xf32, #tpu.memory_space<vmem>>, vector<1x256xf32>
    %5 = vector.broadcast %4 : vector<1x256xf32> to vector<8x256xf32>
    %6 = arith.addf %3, %5 : vector<8x256xf32>
    %cst_5 = arith.constant 0.000000e+00 : f32
    %7 = vector.broadcast %cst_5 : f32 to vector<8x256xf32>
    %8 = arith.maximumf %6, %7 : vector<8x256xf32>
    %cst_6 = arith.constant dense<0.000000e+00> : vector<256xf32>
    %9 = vector.multi_reduction <add>, %8, %cst_6 [0] : vector<8x256xf32> to vector<256xf32>
    %10 = vector.shape_cast %9 : vector<256xf32> to vector<1x256xf32>
    %cst_7 = arith.constant 1.250000e-01 : f32
    %11 = vector.broadcast %cst_7 : f32 to vector<1x256xf32>
    %12 = arith.mulf %10, %11 : vector<1x256xf32>
    %13 = arith.truncf %12 : vector<1x256xf32> to vector<1x256xbf16>
    %c0_8 = arith.constant 0 : index
    %c0_9 = arith.constant 0 : index
    %14 = vector.load %arg3[%c0_8, %c0_9] : memref<256x128xbf16, #tpu.memory_space<vmem>>, vector<256x128xbf16>
    %cst_10 = arith.constant dense<0.000000e+00> : vector<1x128xf32>
    %15 = tpu.matmul %13, %14, %cst_10 {dimension_numbers = #tpu.dot_dimension_numbers<[1], [0], [0], [1], [0, 0, 1, 1], [], []>} : vector<1x256xbf16>, vector<256x128xbf16>, vector<1x128xf32> -> vector<1x128xf32>
    %c0_11 = arith.constant 0 : index
    %c0_12 = arith.constant 0 : index
    %16 = vector.load %arg4[%c0_11, %c0_12] : memref<1x128xf32, #tpu.memory_space<vmem>>, vector<1x128xf32>
    %17 = arith.addf %15, %16 : vector<1x128xf32>
    %cst_13 = arith.constant 0.000000e+00 : f32
    %18 = vector.broadcast %cst_13 : f32 to vector<1x128xf32>
    %19 = arith.maximumf %17, %18 : vector<1x128xf32>
    %20 = arith.truncf %19 : vector<1x128xf32> to vector<1x128xbf16>
    %c0_14 = arith.constant 0 : index
    %c0_15 = arith.constant 0 : index
    %21 = vector.load %arg5[%c0_14, %c0_15] : memref<128x64xbf16, #tpu.memory_space<vmem>>, vector<128x64xbf16>
    %cst_16 = arith.constant dense<0.000000e+00> : vector<1x64xf32>
    %22 = tpu.matmul %20, %21, %cst_16 {dimension_numbers = #tpu.dot_dimension_numbers<[1], [0], [0], [1], [0, 0, 1, 1], [], []>} : vector<1x128xbf16>, vector<128x64xbf16>, vector<1x64xf32> -> vector<1x64xf32>
    %c0_17 = arith.constant 0 : index
    %c0_18 = arith.constant 0 : index
    %23 = vector.load %arg6[%c0_17, %c0_18] : memref<1x64xf32, #tpu.memory_space<vmem>>, vector<1x64xf32>
    %24 = arith.addf %22, %23 : vector<1x64xf32>
    %c0_19 = arith.constant 0 : index
    %c0_20 = arith.constant 0 : index
    %25 = vector.load %arg18[%c0_19, %c0_20] : memref<1x64xf32, #tpu.memory_space<vmem>>, vector<1x64xf32>
    tpu.vector_store %arg18[%c0_19, %c0_20], %24 {strides = array<i32>} : memref<1x64xf32, #tpu.memory_space<vmem>>, vector<1x64xf32>,
    %26 = arith.truncf %24 : vector<1x64xf32> to vector<1x64xbf16>
    %c0_21 = arith.constant 0 : index
    %c0_22 = arith.constant 0 : index
    %27 = vector.load %arg8[%c0_21, %c0_22] : memref<64x1536xbf16, #tpu.memory_space<vmem>>, vector<64x1536xbf16>
    %cst_23 = arith.constant dense<0.000000e+00> : vector<1x1536xf32>
    %28 = tpu.matmul %26, %27, %cst_23 {dimension_numbers = #tpu.dot_dimension_numbers<[1], [0], [0], [1], [0, 0, 1, 1], [], []>} : vector<1x64xbf16>, vector<64x1536xbf16>, vector<1x1536xf32> -> vector<1x1536xf32>
    %c0_24 = arith.constant 0 : index
    %c0_25 = arith.constant 0 : index
    %29 = vector.load %arg9[%c0_24, %c0_25] : memref<1x1536xf32, #tpu.memory_space<vmem>>, vector<1x1536xf32>
    %30 = arith.addf %28, %29 : vector<1x1536xf32>
    %31 = vector.extract_strided_slice %8 {offsets = [0, 0], sizes = [8, 128], strides = [1, 1]} : vector<8x256xf32> to vector<8x128xf32>
    %32 = vector.extract_strided_slice %8 {offsets = [0, 128], sizes = [8, 128], strides = [1, 1]} : vector<8x256xf32> to vector<8x128xf32>
    %33 = arith.truncf %31 : vector<8x128xf32> to vector<8x128xbf16>
    %c0_26 = arith.constant 0 : index
    %c0_27 = arith.constant 0 : index
    %34 = vector.load %arg7[%c0_26, %c0_27] : memref<128x1536xbf16, #tpu.memory_space<vmem>>, vector<128x1536xbf16>
    %cst_28 = arith.constant dense<0.000000e+00> : vector<8x1536xf32>
    %35 = tpu.matmul %33, %34, %cst_28 {dimension_numbers = #tpu.dot_dimension_numbers<[1], [0], [0], [1], [0, 0, 1, 1], [], []>} : vector<8x128xbf16>, vector<128x1536xbf16>, vector<8x1536xf32> -> vector<8x1536xf32>
    %36 = vector.broadcast %30 : vector<1x1536xf32> to vector<8x1536xf32>
    %37 = arith.addf %35, %36 : vector<8x1536xf32>
    %cst_29 = arith.constant 0.000000e+00 : f32
    %38 = vector.broadcast %cst_29 : f32 to vector<8x1536xf32>
    %39 = arith.maximumf %37, %38 : vector<8x1536xf32>
    %40 = vector.extract_strided_slice %39 {offsets = [0, 0], sizes = [8, 256], strides = [1, 1]} : vector<8x1536xf32> to vector<8x256xf32>
    %41 = arith.truncf %40 : vector<8x256xf32> to vector<8x256xbf16>
    %c0_30 = arith.constant 0 : index
    %c0_31 = arith.constant 0 : index
    %c0_32 = arith.constant 0 : index
    %42 = vector.load %arg10[%c0_30, %c0_31, %c0_32] : memref<6x256x256xbf16, #tpu.memory_space<vmem>>, vector<1x256x256xbf16>
    %43 = vector.shape_cast %42 : vector<1x256x256xbf16> to vector<256x256xbf16>
    %cst_33 = arith.constant dense<0.000000e+00> : vector<8x256xf32>
    %44 = tpu.matmul %41, %43, %cst_33 {dimension_numbers = #tpu.dot_dimension_numbers<[1], [0], [0], [1], [0, 0, 1, 1], [], []>} : vector<8x256xbf16>, vector<256x256xbf16>, vector<8x256xf32> -> vector<8x256xf32>
    %c0_34 = arith.constant 0 : index
    %c0_35 = arith.constant 0 : index
    %c0_36 = arith.constant 0 : index
    %45 = vector.load %arg11[%c0_34, %c0_35, %c0_36] : memref<6x1x256xf32, #tpu.memory_space<vmem>>, vector<1x1x256xf32>
    %46 = vector.shape_cast %45 : vector<1x1x256xf32> to vector<1x256xf32>
    %47 = vector.broadcast %46 : vector<1x256xf32> to vector<8x256xf32>
    %48 = arith.addf %44, %47 : vector<8x256xf32>
    %cst_37 = arith.constant 0.000000e+00 : f32
    %49 = vector.broadcast %cst_37 : f32 to vector<8x256xf32>
    %50 = arith.maximumf %48, %49 : vector<8x256xf32>
    %51 = arith.truncf %50 : vector<8x256xf32> to vector<8x256xbf16>
    %c0_38 = arith.constant 0 : index
    %c0_39 = arith.constant 0 : index
    %c0_40 = arith.constant 0 : index
    %52 = vector.load %arg12[%c0_38, %c0_39, %c0_40] : memref<6x256x256xbf16, #tpu.memory_space<vmem>>, vector<1x256x256xbf16>
    %53 = vector.shape_cast %52 : vector<1x256x256xbf16> to vector<256x256xbf16>
    %cst_41 = arith.constant dense<0.000000e+00> : vector<8x256xf32>
    %54 = tpu.matmul %51, %53, %cst_41 {dimension_numbers = #tpu.dot_dimension_numbers<[1], [0], [0], [1], [0, 0, 1, 1], [], []>} : vector<8x256xbf16>, vector<256x256xbf16>, vector<8x256xf32> -> vector<8x256xf32>
    %c0_42 = arith.constant 0 : index
    %c0_43 = arith.constant 0 : index
    %c0_44 = arith.constant 0 : index
    %55 = vector.load %arg13[%c0_42, %c0_43, %c0_44] : memref<6x1x256xf32, #tpu.memory_space<vmem>>, vector<1x1x256xf32>
    %56 = vector.shape_cast %55 : vector<1x1x256xf32> to vector<1x256xf32>
    %57 = vector.broadcast %56 : vector<1x256xf32> to vector<8x256xf32>
    %58 = arith.addf %54, %57 : vector<8x256xf32>
    %59 = vector.extract_strided_slice %58 {offsets = [0, 0], sizes = [8, 128], strides = [1, 1]} : vector<8x256xf32> to vector<8x128xf32>
    %60 = math.tanh %59 : vector<8x128xf32>
    %61 = vector.extract_strided_slice %58 {offsets = [0, 128], sizes = [8, 128], strides = [1, 1]} : vector<8x256xf32> to vector<8x128xf32>
    %62 = math.exp %60 : vector<8x128xf32>
    %63 = arith.mulf %32, %62 : vector<8x128xf32>
    %64 = arith.addf %63, %61 : vector<8x128xf32>
    %65 = vector.extract_strided_slice %39 {offsets = [0, 256], sizes = [8, 256], strides = [1, 1]} : vector<8x1536xf32> to vector<8x256xf32>
    %66 = arith.truncf %65 : vector<8x256xf32> to vector<8x256xbf16>
    %c1 = arith.constant 1 : index
    %c0_45 = arith.constant 0 : index
    %c0_46 = arith.constant 0 : index
    %67 = vector.load %arg10[%c1, %c0_45, %c0_46] : memref<6x256x256xbf16, #tpu.memory_space<vmem>>, vector<1x256x256xbf16>
    %68 = vector.shape_cast %67 : vector<1x256x256xbf16> to vector<256x256xbf16>
    %cst_47 = arith.constant dense<0.000000e+00> : vector<8x256xf32>
    %69 = tpu.matmul %66, %68, %cst_47 {dimension_numbers = #tpu.dot_dimension_numbers<[1], [0], [0], [1], [0, 0, 1, 1], [], []>} : vector<8x256xbf16>, vector<256x256xbf16>, vector<8x256xf32> -> vector<8x256xf32>
    %c1_48 = arith.constant 1 : index
    %c0_49 = arith.constant 0 : index
    %c0_50 = arith.constant 0 : index
    %70 = vector.load %arg11[%c1_48, %c0_49, %c0_50] : memref<6x1x256xf32, #tpu.memory_space<vmem>>, vector<1x1x256xf32>
    %71 = vector.shape_cast %70 : vector<1x1x256xf32> to vector<1x256xf32>
    %72 = vector.broadcast %71 : vector<1x256xf32> to vector<8x256xf32>
    %73 = arith.addf %69, %72 : vector<8x256xf32>
    %cst_51 = arith.constant 0.000000e+00 : f32
    %74 = vector.broadcast %cst_51 : f32 to vector<8x256xf32>
    %75 = arith.maximumf %73, %74 : vector<8x256xf32>
    %76 = arith.truncf %75 : vector<8x256xf32> to vector<8x256xbf16>
    %c1_52 = arith.constant 1 : index
    %c0_53 = arith.constant 0 : index
    %c0_54 = arith.constant 0 : index
    %77 = vector.load %arg12[%c1_52, %c0_53, %c0_54] : memref<6x256x256xbf16, #tpu.memory_space<vmem>>, vector<1x256x256xbf16>
    %78 = vector.shape_cast %77 : vector<1x256x256xbf16> to vector<256x256xbf16>
    %cst_55 = arith.constant dense<0.000000e+00> : vector<8x256xf32>
    %79 = tpu.matmul %76, %78, %cst_55 {dimension_numbers = #tpu.dot_dimension_numbers<[1], [0], [0], [1], [0, 0, 1, 1], [], []>} : vector<8x256xbf16>, vector<256x256xbf16>, vector<8x256xf32> -> vector<8x256xf32>
    %c1_56 = arith.constant 1 : index
    %c0_57 = arith.constant 0 : index
    %c0_58 = arith.constant 0 : index
    %80 = vector.load %arg13[%c1_56, %c0_57, %c0_58] : memref<6x1x256xf32, #tpu.memory_space<vmem>>, vector<1x1x256xf32>
    %81 = vector.shape_cast %80 : vector<1x1x256xf32> to vector<1x256xf32>
    %82 = vector.broadcast %81 : vector<1x256xf32> to vector<8x256xf32>
    %83 = arith.addf %79, %82 : vector<8x256xf32>
    %84 = vector.extract_strided_slice %83 {offsets = [0, 0], sizes = [8, 128], strides = [1, 1]} : vector<8x256xf32> to vector<8x128xf32>
    %85 = math.tanh %84 : vector<8x128xf32>
    %86 = vector.extract_strided_slice %83 {offsets = [0, 128], sizes = [8, 128], strides = [1, 1]} : vector<8x256xf32> to vector<8x128xf32>
    %87 = math.exp %85 : vector<8x128xf32>
    %88 = arith.mulf %64, %87 : vector<8x128xf32>
    %89 = arith.addf %88, %86 : vector<8x128xf32>
    %90 = vector.extract_strided_slice %39 {offsets = [0, 512], sizes = [8, 256], strides = [1, 1]} : vector<8x1536xf32> to vector<8x256xf32>
    %91 = arith.truncf %90 : vector<8x256xf32> to vector<8x256xbf16>
    %c2 = arith.constant 2 : index
    %c0_59 = arith.constant 0 : index
    %c0_60 = arith.constant 0 : index
    %92 = vector.load %arg10[%c2, %c0_59, %c0_60] : memref<6x256x256xbf16, #tpu.memory_space<vmem>>, vector<1x256x256xbf16>
    %93 = vector.shape_cast %92 : vector<1x256x256xbf16> to vector<256x256xbf16>
    %cst_61 = arith.constant dense<0.000000e+00> : vector<8x256xf32>
    %94 = tpu.matmul %91, %93, %cst_61 {dimension_numbers = #tpu.dot_dimension_numbers<[1], [0], [0], [1], [0, 0, 1, 1], [], []>} : vector<8x256xbf16>, vector<256x256xbf16>, vector<8x256xf32> -> vector<8x256xf32>
    %c2_62 = arith.constant 2 : index
    %c0_63 = arith.constant 0 : index
    %c0_64 = arith.constant 0 : index
    %95 = vector.load %arg11[%c2_62, %c0_63, %c0_64] : memref<6x1x256xf32, #tpu.memory_space<vmem>>, vector<1x1x256xf32>
    %96 = vector.shape_cast %95 : vector<1x1x256xf32> to vector<1x256xf32>
    %97 = vector.broadcast %96 : vector<1x256xf32> to vector<8x256xf32>
    %98 = arith.addf %94, %97 : vector<8x256xf32>
    %cst_65 = arith.constant 0.000000e+00 : f32
    %99 = vector.broadcast %cst_65 : f32 to vector<8x256xf32>
    %100 = arith.maximumf %98, %99 : vector<8x256xf32>
    %101 = arith.truncf %100 : vector<8x256xf32> to vector<8x256xbf16>
    %c2_66 = arith.constant 2 : index
    %c0_67 = arith.constant 0 : index
    %c0_68 = arith.constant 0 : index
    %102 = vector.load %arg12[%c2_66, %c0_67, %c0_68] : memref<6x256x256xbf16, #tpu.memory_space<vmem>>, vector<1x256x256xbf16>
    %103 = vector.shape_cast %102 : vector<1x256x256xbf16> to vector<256x256xbf16>
    %cst_69 = arith.constant dense<0.000000e+00> : vector<8x256xf32>
    %104 = tpu.matmul %101, %103, %cst_69 {dimension_numbers = #tpu.dot_dimension_numbers<[1], [0], [0], [1], [0, 0, 1, 1], [], []>} : vector<8x256xbf16>, vector<256x256xbf16>, vector<8x256xf32> -> vector<8x256xf32>
    %c2_70 = arith.constant 2 : index
    %c0_71 = arith.constant 0 : index
    %c0_72 = arith.constant 0 : index
    %105 = vector.load %arg13[%c2_70, %c0_71, %c0_72] : memref<6x1x256xf32, #tpu.memory_space<vmem>>, vector<1x1x256xf32>
    %106 = vector.shape_cast %105 : vector<1x1x256xf32> to vector<1x256xf32>
    %107 = vector.broadcast %106 : vector<1x256xf32> to vector<8x256xf32>
    %108 = arith.addf %104, %107 : vector<8x256xf32>
    %109 = vector.extract_strided_slice %108 {offsets = [0, 0], sizes = [8, 128], strides = [1, 1]} : vector<8x256xf32> to vector<8x128xf32>
    %110 = math.tanh %109 : vector<8x128xf32>
    %111 = vector.extract_strided_slice %108 {offsets = [0, 128], sizes = [8, 128], strides = [1, 1]} : vector<8x256xf32> to vector<8x128xf32>
    %112 = math.exp %110 : vector<8x128xf32>
    %113 = arith.mulf %89, %112 : vector<8x128xf32>
    %114 = arith.addf %113, %111 : vector<8x128xf32>
    %115 = vector.extract_strided_slice %39 {offsets = [0, 768], sizes = [8, 256], strides = [1, 1]} : vector<8x1536xf32> to vector<8x256xf32>
    %116 = arith.truncf %115 : vector<8x256xf32> to vector<8x256xbf16>
    %c3 = arith.constant 3 : index
    %c0_73 = arith.constant 0 : index
    %c0_74 = arith.constant 0 : index
    %117 = vector.load %arg10[%c3, %c0_73, %c0_74] : memref<6x256x256xbf16, #tpu.memory_space<vmem>>, vector<1x256x256xbf16>
    %118 = vector.shape_cast %117 : vector<1x256x256xbf16> to vector<256x256xbf16>
    %cst_75 = arith.constant dense<0.000000e+00> : vector<8x256xf32>
    %119 = tpu.matmul %116, %118, %cst_75 {dimension_numbers = #tpu.dot_dimension_numbers<[1], [0], [0], [1], [0, 0, 1, 1], [], []>} : vector<8x256xbf16>, vector<256x256xbf16>, vector<8x256xf32> -> vector<8x256xf32>
    %c3_76 = arith.constant 3 : index
    %c0_77 = arith.constant 0 : index
    %c0_78 = arith.constant 0 : index
    %120 = vector.load %arg11[%c3_76, %c0_77, %c0_78] : memref<6x1x256xf32, #tpu.memory_space<vmem>>, vector<1x1x256xf32>
    %121 = vector.shape_cast %120 : vector<1x1x256xf32> to vector<1x256xf32>
    %122 = vector.broadcast %121 : vector<1x256xf32> to vector<8x256xf32>
    %123 = arith.addf %119, %122 : vector<8x256xf32>
    %cst_79 = arith.constant 0.000000e+00 : f32
    %124 = vector.broadcast %cst_79 : f32 to vector<8x256xf32>
    %125 = arith.maximumf %123, %124 : vector<8x256xf32>
    %126 = arith.truncf %125 : vector<8x256xf32> to vector<8x256xbf16>
    %c3_80 = arith.constant 3 : index
    %c0_81 = arith.constant 0 : index
    %c0_82 = arith.constant 0 : index
    %127 = vector.load %arg12[%c3_80, %c0_81, %c0_82] : memref<6x256x256xbf16, #tpu.memory_space<vmem>>, vector<1x256x256xbf16>
    %128 = vector.shape_cast %127 : vector<1x256x256xbf16> to vector<256x256xbf16>
    %cst_83 = arith.constant dense<0.000000e+00> : vector<8x256xf32>
    %129 = tpu.matmul %126, %128, %cst_83 {dimension_numbers = #tpu.dot_dimension_numbers<[1], [0], [0], [1], [0, 0, 1, 1], [], []>} : vector<8x256xbf16>, vector<256x256xbf16>, vector<8x256xf32> -> vector<8x256xf32>
    %c3_84 = arith.constant 3 : index
    %c0_85 = arith.constant 0 : index
    %c0_86 = arith.constant 0 : index
    %130 = vector.load %arg13[%c3_84, %c0_85, %c0_86] : memref<6x1x256xf32, #tpu.memory_space<vmem>>, vector<1x1x256xf32>
    %131 = vector.shape_cast %130 : vector<1x1x256xf32> to vector<1x256xf32>
    %132 = vector.broadcast %131 : vector<1x256xf32> to vector<8x256xf32>
    %133 = arith.addf %129, %132 : vector<8x256xf32>
    %134 = vector.extract_strided_slice %133 {offsets = [0, 0], sizes = [8, 128], strides = [1, 1]} : vector<8x256xf32> to vector<8x128xf32>
    %135 = math.tanh %134 : vector<8x128xf32>
    %136 = vector.extract_strided_slice %133 {offsets = [0, 128], sizes = [8, 128], strides = [1, 1]} : vector<8x256xf32> to vector<8x128xf32>
    %137 = math.exp %135 : vector<8x128xf32>
    %138 = arith.mulf %114, %137 : vector<8x128xf32>
    %139 = arith.addf %138, %136 : vector<8x128xf32>
    %140 = vector.extract_strided_slice %39 {offsets = [0, 1024], sizes = [8, 256], strides = [1, 1]} : vector<8x1536xf32> to vector<8x256xf32>
    %141 = arith.truncf %140 : vector<8x256xf32> to vector<8x256xbf16>
    %c4 = arith.constant 4 : index
    %c0_87 = arith.constant 0 : index
    %c0_88 = arith.constant 0 : index
    %142 = vector.load %arg10[%c4, %c0_87, %c0_88] : memref<6x256x256xbf16, #tpu.memory_space<vmem>>, vector<1x256x256xbf16>
    %143 = vector.shape_cast %142 : vector<1x256x256xbf16> to vector<256x256xbf16>
    %cst_89 = arith.constant dense<0.000000e+00> : vector<8x256xf32>
    %144 = tpu.matmul %141, %143, %cst_89 {dimension_numbers = #tpu.dot_dimension_numbers<[1], [0], [0], [1], [0, 0, 1, 1], [], []>} : vector<8x256xbf16>, vector<256x256xbf16>, vector<8x256xf32> -> vector<8x256xf32>
    %c4_90 = arith.constant 4 : index
    %c0_91 = arith.constant 0 : index
    %c0_92 = arith.constant 0 : index
    %145 = vector.load %arg11[%c4_90, %c0_91, %c0_92] : memref<6x1x256xf32, #tpu.memory_space<vmem>>, vector<1x1x256xf32>
    %146 = vector.shape_cast %145 : vector<1x1x256xf32> to vector<1x256xf32>
    %147 = vector.broadcast %146 : vector<1x256xf32> to vector<8x256xf32>
    %148 = arith.addf %144, %147 : vector<8x256xf32>
    %cst_93 = arith.constant 0.000000e+00 : f32
    %149 = vector.broadcast %cst_93 : f32 to vector<8x256xf32>
    %150 = arith.maximumf %148, %149 : vector<8x256xf32>
    %151 = arith.truncf %150 : vector<8x256xf32> to vector<8x256xbf16>
    %c4_94 = arith.constant 4 : index
    %c0_95 = arith.constant 0 : index
    %c0_96 = arith.constant 0 : index
    %152 = vector.load %arg12[%c4_94, %c0_95, %c0_96] : memref<6x256x256xbf16, #tpu.memory_space<vmem>>, vector<1x256x256xbf16>
    %153 = vector.shape_cast %152 : vector<1x256x256xbf16> to vector<256x256xbf16>
    %cst_97 = arith.constant dense<0.000000e+00> : vector<8x256xf32>
    %154 = tpu.matmul %151, %153, %cst_97 {dimension_numbers = #tpu.dot_dimension_numbers<[1], [0], [0], [1], [0, 0, 1, 1], [], []>} : vector<8x256xbf16>, vector<256x256xbf16>, vector<8x256xf32> -> vector<8x256xf32>
    %c4_98 = arith.constant 4 : index
    %c0_99 = arith.constant 0 : index
    %c0_100 = arith.constant 0 : index
    %155 = vector.load %arg13[%c4_98, %c0_99, %c0_100] : memref<6x1x256xf32, #tpu.memory_space<vmem>>, vector<1x1x256xf32>
    %156 = vector.shape_cast %155 : vector<1x1x256xf32> to vector<1x256xf32>
    %157 = vector.broadcast %156 : vector<1x256xf32> to vector<8x256xf32>
    %158 = arith.addf %154, %157 : vector<8x256xf32>
    %159 = vector.extract_strided_slice %158 {offsets = [0, 0], sizes = [8, 128], strides = [1, 1]} : vector<8x256xf32> to vector<8x128xf32>
    %160 = math.tanh %159 : vector<8x128xf32>
    %161 = vector.extract_strided_slice %158 {offsets = [0, 128], sizes = [8, 128], strides = [1, 1]} : vector<8x256xf32> to vector<8x128xf32>
    %162 = math.exp %160 : vector<8x128xf32>
    %163 = arith.mulf %139, %162 : vector<8x128xf32>
    %164 = arith.addf %163, %161 : vector<8x128xf32>
    %165 = vector.extract_strided_slice %39 {offsets = [0, 1280], sizes = [8, 256], strides = [1, 1]} : vector<8x1536xf32> to vector<8x256xf32>
    %166 = arith.truncf %165 : vector<8x256xf32> to vector<8x256xbf16>
    %c5 = arith.constant 5 : index
    %c0_101 = arith.constant 0 : index
    %c0_102 = arith.constant 0 : index
    %167 = vector.load %arg10[%c5, %c0_101, %c0_102] : memref<6x256x256xbf16, #tpu.memory_space<vmem>>, vector<1x256x256xbf16>
    %168 = vector.shape_cast %167 : vector<1x256x256xbf16> to vector<256x256xbf16>
    %cst_103 = arith.constant dense<0.000000e+00> : vector<8x256xf32>
    %169 = tpu.matmul %166, %168, %cst_103 {dimension_numbers = #tpu.dot_dimension_numbers<[1], [0], [0], [1], [0, 0, 1, 1], [], []>} : vector<8x256xbf16>, vector<256x256xbf16>, vector<8x256xf32> -> vector<8x256xf32>
    %c5_104 = arith.constant 5 : index
    %c0_105 = arith.constant 0 : index
    %c0_106 = arith.constant 0 : index
    %170 = vector.load %arg11[%c5_104, %c0_105, %c0_106] : memref<6x1x256xf32, #tpu.memory_space<vmem>>, vector<1x1x256xf32>
    %171 = vector.shape_cast %170 : vector<1x1x256xf32> to vector<1x256xf32>
    %172 = vector.broadcast %171 : vector<1x256xf32> to vector<8x256xf32>
    %173 = arith.addf %169, %172 : vector<8x256xf32>
    %cst_107 = arith.constant 0.000000e+00 : f32
    %174 = vector.broadcast %cst_107 : f32 to vector<8x256xf32>
    %175 = arith.maximumf %173, %174 : vector<8x256xf32>
    %176 = arith.truncf %175 : vector<8x256xf32> to vector<8x256xbf16>
    %c5_108 = arith.constant 5 : index
    %c0_109 = arith.constant 0 : index
    %c0_110 = arith.constant 0 : index
    %177 = vector.load %arg12[%c5_108, %c0_109, %c0_110] : memref<6x256x256xbf16, #tpu.memory_space<vmem>>, vector<1x256x256xbf16>
    %178 = vector.shape_cast %177 : vector<1x256x256xbf16> to vector<256x256xbf16>
    %cst_111 = arith.constant dense<0.000000e+00> : vector<8x256xf32>
    %179 = tpu.matmul %176, %178, %cst_111 {dimension_numbers = #tpu.dot_dimension_numbers<[1], [0], [0], [1], [0, 0, 1, 1], [], []>} : vector<8x256xbf16>, vector<256x256xbf16>, vector<8x256xf32> -> vector<8x256xf32>
    %c5_112 = arith.constant 5 : index
    %c0_113 = arith.constant 0 : index
    %c0_114 = arith.constant 0 : index
    %180 = vector.load %arg13[%c5_112, %c0_113, %c0_114] : memref<6x1x256xf32, #tpu.memory_space<vmem>>, vector<1x1x256xf32>
    %181 = vector.shape_cast %180 : vector<1x1x256xf32> to vector<1x256xf32>
    %182 = vector.broadcast %181 : vector<1x256xf32> to vector<8x256xf32>
    %183 = arith.addf %179, %182 : vector<8x256xf32>
    %184 = vector.extract_strided_slice %183 {offsets = [0, 0], sizes = [8, 128], strides = [1, 1]} : vector<8x256xf32> to vector<8x128xf32>
    %185 = math.tanh %184 : vector<8x128xf32>
    %186 = vector.extract_strided_slice %183 {offsets = [0, 128], sizes = [8, 128], strides = [1, 1]} : vector<8x256xf32> to vector<8x128xf32>
    %187 = math.exp %185 : vector<8x128xf32>
    %188 = arith.mulf %164, %187 : vector<8x128xf32>
    %189 = arith.addf %188, %186 : vector<8x128xf32>
    %190 = tpu.concatenate %31, %189 in 1 : vector<8x128xf32>, vector<8x128xf32> -> vector<8x256xf32>
    %c0_115 = arith.constant 0 : index
    %c0_116 = arith.constant 0 : index
    %191 = vector.load %arg17[%c0_115, %c0_116] : memref<8x256xf32, #tpu.memory_space<vmem>>, vector<8x256xf32>
    tpu.vector_store %arg17[%c0_115, %c0_116], %190 {strides = array<i32>} : memref<8x256xf32, #tpu.memory_space<vmem>>, vector<8x256xf32>,
    %192 = arith.truncf %190 : vector<8x256xf32> to vector<8x256xbf16>
    %c0_117 = arith.constant 0 : index
    %c0_118 = arith.constant 0 : index
    %193 = vector.load %arg14[%c0_117, %c0_118] : memref<256x128xbf16, #tpu.memory_space<vmem>>, vector<256x128xbf16>
    %cst_119 = arith.constant dense<0.000000e+00> : vector<8x128xf32>
    %194 = tpu.matmul %192, %193, %cst_119 {dimension_numbers = #tpu.dot_dimension_numbers<[1], [0], [0], [1], [0, 0, 1, 1], [], []>} : vector<8x256xbf16>, vector<256x128xbf16>, vector<8x128xf32> -> vector<8x128xf32>
    %c0_120 = arith.constant 0 : index
    %c0_121 = arith.constant 0 : index
    %195 = vector.load %arg15[%c0_120, %c0_121] : memref<1x128xf32, #tpu.memory_space<vmem>>, vector<1x128xf32>
    %196 = vector.broadcast %195 : vector<1x128xf32> to vector<8x128xf32>
    %197 = arith.addf %194, %196 : vector<8x128xf32>
    %c0_122 = arith.constant 0 : index
    %c0_123 = arith.constant 0 : index
    %198 = vector.load %arg16[%c0_122, %c0_123] : memref<8x128xf32, #tpu.memory_space<vmem>>, vector<8x128xf32>
    tpu.vector_store %arg16[%c0_122, %c0_123], %197 {strides = array<i32>} : memref<8x128xf32, #tpu.memory_space<vmem>>, vector<8x128xf32>,
    return
  }
}

</mosaic_0001>

<llo_original>
// kernel: flowcl_forward.1
$region0: #{flowcl_forward.1}
  #allocation0 [shape = 'u32[]', space=smem, size = 0x4, offset = 0x4, fixed_abs, tag = 'smem constant byte address 0x4 - core index']
  #allocation1 [shape = 'u32[144,128]{1,0:T(1,128)}', space=vmem, size = 0x12000, scoped, tag = 'internal scratch']
  %s0 = inlined_call_operand.hbm [shape: f32[8,784], index: 0, kind: input, shape index: {}]
  %s1 = inlined_call_operand.hbm [shape: bf16[784,256], index: 1, kind: input, shape index: {}]
  %s2 = inlined_call_operand.vmem [shape: f32[1,256], index: 2, kind: input, shape index: {}]
  %s3 = inlined_call_operand.vmem [shape: bf16[256,128], index: 3, kind: input, shape index: {}]
  %s4 = inlined_call_operand.vmem [shape: f32[1,128], index: 4, kind: input, shape index: {}]
  %s5 = inlined_call_operand.vmem [shape: bf16[128,64], index: 5, kind: input, shape index: {}]
  %s6 = inlined_call_operand.vmem [shape: f32[1,64], index: 6, kind: input, shape index: {}]
  %s7 = inlined_call_operand.hbm [shape: bf16[128,1536], index: 7, kind: input, shape index: {}]
  %s8 = inlined_call_operand.hbm [shape: bf16[64,1536], index: 8, kind: input, shape index: {}]
  %s9 = inlined_call_operand.vmem [shape: f32[1,1536], index: 9, kind: input, shape index: {}]
  %s10 = inlined_call_operand.hbm [shape: bf16[6,256,256], index: 10, kind: input, shape index: {}]
  %s11 = inlined_call_operand.hbm [shape: f32[6,1,256], index: 11, kind: input, shape index: {}]
  %s12 = inlined_call_operand.hbm [shape: bf16[6,256,256], index: 12, kind: input, shape index: {}]
  %s13 = inlined_call_operand.hbm [shape: f32[6,1,256], index: 13, kind: input, shape index: {}]
  %s14 = inlined_call_operand.hbm [shape: bf16[256,128], index: 14, kind: input, shape index: {}]
  %s15 = inlined_call_operand.vmem [shape: f32[1,128], index: 15, kind: input, shape index: {}]
  %s16 = inlined_call_operand.hbm [shape: f32[8,128], index: 16, kind: output, shape index: {0}]
  %s17 = inlined_call_operand.hbm [shape: f32[8,256], index: 17, kind: output, shape index: {1}]
  %s18 = inlined_call_operand.hbm [shape: f32[1,64], index: 18, kind: output, shape index: {2}]
  %19 = xla_tuple %s16, %s17, %s18
  %s20 = sld [smem:[#allocation0]]
  $region126: #{flowcl_forward.1} parent=0
    _
  %s22 = ssub.s32 1, %s20
  %s23 = scalar_select 0, %s22, %s20
  $region1: #{flowcl_forward.1} parent=0
    #allocation2 [shape = 'u8[28672]{0}', space=vmem, size = 0x7000, scoped, tag = 'input window, operand 0, single buffered']
    #allocation3 [shape = 's32[1]{0}', space=sflag, size = 0x4, scoped, tag = 'scoped memory for flowcl_forward.1']
    #allocation4 [shape = 's32[1]{0}', space=sflag, size = 0x4, scoped, tag = 'scoped memory for flowcl_forward.1']
    #allocation5 [shape = 'u8[401408]{0}', space=vmem, size = 0x62000, scoped, tag = 'input window, operand 1, single buffered']
    #allocation6 [shape = 's32[1]{0}', space=sflag, size = 0x4, scoped, tag = 'scoped memory for flowcl_forward.1']
    #allocation7 [shape = 'u8[393216]{0}', space=vmem, size = 0x60000, scoped, tag = 'input window, operand 7, single buffered']
    #allocation8 [shape = 'u8[196608]{0}', space=vmem, size = 0x30000, scoped, tag = 'input window, operand 8, single buffered']
    #allocation9 [shape = 's32[1]{0}', space=sflag, size = 0x4, scoped, tag = 'scoped memory for flowcl_forward.1']
    #allocation10 [shape = 'u8[786432]{0}', space=vmem, size = 0xc0000, scoped, tag = 'input window, operand 10, single buffered']
    #allocation11 [shape = 'u8[6144]{0}', space=vmem, size = 0x1800, scoped, tag = 'input window, operand 11, single buffered']
    #allocation12 [shape = 's32[1]{0}', space=sflag, size = 0x4, scoped, tag = 'scoped memory for flowcl_forward.1']
    #allocation13 [shape = 'u8[786432]{0}', space=vmem, size = 0xc0000, scoped, tag = 'input window, operand 12, single buffered']
    #allocation14 [shape = 'u8[6144]{0}', space=vmem, size = 0x1800, scoped, tag = 'input window, operand 13, single buffered']
    #allocation15 [shape = 's32[1]{0}', space=sflag, size = 0x4, scoped, tag = 'scoped memory for flowcl_forward.1']
    #allocation16 [shape = 'u8[65536]{0}', space=vmem, size = 0x10000, scoped, tag = 'input window, operand 14, single buffered']
    #allocation17 [shape = 'u8[4096]{0}', space=vmem, size = 0x1000, scoped, tag = 'output window, operand 0, single buffered']
    #allocation18 [shape = 'u8[8192]{0}', space=vmem, size = 0x2000, scoped, tag = 'output window, operand 1, single buffered']
    #allocation19 [shape = 's32[1]{0}', space=sflag, size = 0x4, scoped, tag = 'scoped memory for flowcl_forward.1']
    #allocation20 [shape = 'u8[512]{0}', space=vmem, size = 0x400, scoped, tag = 'output window, operand 2, single buffered']
    %24 = vsyncpa [#allocation3], 0
    %25 = vsyncpa [#allocation6], 0
    %26 = vsyncpa [#allocation9], 0
    %27 = vsyncpa [#allocation12], 0
    %28 = vsyncpa [#allocation15], 0
    %29 = vsyncpa [#allocation4], 0
    %30 = vsyncpa [#allocation19], 0
    // Predicated region
    $region2: #{flowcl_forward.1} parent=1 // pred_check
      _
    $region3: #{flowcl_forward.1} parent=1 // pred_check_branch
      %32 = sbr.rel (0) target = $region5
    $region4: #{flowcl_forward.1} parent=1 // pred_region
      %s34 = ssub.s32 896, 896
      %35 = vsyncadd [#allocation3], %s34
      %s37 = sshll.u32 [#allocation2], 4
      %s38 = int_to_ptr.vmem [resolvable:$true] %s37
      %40 = dma.hbm_to_vmem [thread:$0]  %s0, 896, %s38, [#allocation3]
    $region5: #{flowcl_forward.1} parent=1 // pred_fallthru
      _
    // Predicated region
    $region6: #{flowcl_forward.1} parent=1 // pred_check
      _
    $region7: #{flowcl_forward.1} parent=1 // pred_check_branch
      %42 = sbr.rel (0) target = $region9
    $region8: #{flowcl_forward.1} parent=1 // pred_region
      %s44 = ssub.s32 12544, 12544
      %45 = vsyncadd [#allocation6], %s44
      %s46 = sshll.u32 [#allocation5], 4
      %s47 = int_to_ptr.vmem [resolvable:$true] %s46
      %52 = dma.hbm_to_vmem [thread:$0]  %s1, 12544, %s47, [#allocation6], 128, 128, 8
    $region9: #{flowcl_forward.1} parent=1 // pred_fallthru
      _
    // Predicated region
    $region10: #{flowcl_forward.1} parent=1 // pred_check
      _
    $region11: #{flowcl_forward.1} parent=1 // pred_check_branch
      %54 = sbr.rel (0) target = $region13
    $region12: #{flowcl_forward.1} parent=1 // pred_region
      _
    $region13: #{flowcl_forward.1} parent=1 // pred_fallthru
      _
    // Predicated region
    $region14: #{flowcl_forward.1} parent=1 // pred_check
      _
    $region15: #{flowcl_forward.1} parent=1 // pred_check_branch
      %56 = sbr.rel (0) target = $region17
    $region16: #{flowcl_forward.1} parent=1 // pred_region
      _
    $region17: #{flowcl_forward.1} parent=1 // pred_fallthru
      _
    // Predicated region
    $region18: #{flowcl_forward.1} parent=1 // pred_check
      _
    $region19: #{flowcl_forward.1} parent=1 // pred_check_branch
      %58 = sbr.rel (0) target = $region21
    $region20: #{flowcl_forward.1} parent=1 // pred_region
      _
    $region21: #{flowcl_forward.1} parent=1 // pred_fallthru
      _
    // Predicated region
    $region22: #{flowcl_forward.1} parent=1 // pred_check
      _
    $region23: #{flowcl_forward.1} parent=1 // pred_check_branch
      %60 = sbr.rel (0) target = $region25
    $region24: #{flowcl_forward.1} parent=1 // pred_region
      _
    $region25: #{flowcl_forward.1} parent=1 // pred_fallthru
      _
    // Predicated region
    $region26: #{flowcl_forward.1} parent=1 // pred_check
      _
    $region27: #{flowcl_forward.1} parent=1 // pred_check_branch
      %62 = sbr.rel (0) target = $region29
    $region28: #{flowcl_forward.1} parent=1 // pred_region
      _
    $region29: #{flowcl_forward.1} parent=1 // pred_fallthru
      _
    // Predicated region
    $region30: #{flowcl_forward.1} parent=1 // pred_check
      _
    $region31: #{flowcl_forward.1} parent=1 // pred_check_branch
      %64 = sbr.rel (0) target = $region33
    $region32: #{flowcl_forward.1} parent=1 // pred_region
      %s66 = ssub.s32 12288, 12288
      %67 = vsyncadd [#allocation6], %s66
      %s68 = sshll.u32 [#allocation7], 4
      %s69 = int_to_ptr.vmem [resolvable:$true] %s68
      %74 = dma.hbm_to_vmem [thread:$0]  %s7, 12288, %s69, [#allocation6], 768, 768, 48
    $region33: #{flowcl_forward.1} parent=1 // pred_fallthru
      _
    // Predicated region
    $region34: #{flowcl_forward.1} parent=1 // pred_check
      _
    $region35: #{flowcl_forward.1} parent=1 // pred_check_branch
      %76 = sbr.rel (0) target = $region37
    $region36: #{flowcl_forward.1} parent=1 // pred_region
      %s78 = ssub.s32 6144, 6144
      %79 = vsyncadd [#allocation9], %s78
      %s80 = sshll.u32 [#allocation8], 4
      %s81 = int_to_ptr.vmem [resolvable:$true] %s80
      %86 = dma.hbm_to_vmem [thread:$0]  %s8, 6144, %s81, [#allocation9], 768, 768, 48
    $region37: #{flowcl_forward.1} parent=1 // pred_fallthru
      _
    // Predicated region
    $region38: #{flowcl_forward.1} parent=1 // pred_check
      _
    $region39: #{flowcl_forward.1} parent=1 // pred_check_branch
      %88 = sbr.rel (0) target = $region41
    $region40: #{flowcl_forward.1} parent=1 // pred_region
      _
    $region41: #{flowcl_forward.1} parent=1 // pred_fallthru
      _
    // Predicated region
    $region42: #{flowcl_forward.1} parent=1 // pred_check
      _
    $region43: #{flowcl_forward.1} parent=1 // pred_check_branch
      %90 = sbr.rel (0) target = $region45
    $region44: #{flowcl_forward.1} parent=1 // pred_region
      %s92 = ssub.s32 24576, 24576
      %93 = vsyncadd [#allocation9], %s92
      %s94 = sshll.u32 [#allocation10], 4
      %s95 = int_to_ptr.vmem [resolvable:$true] %s94
      %100 = dma.hbm_to_vmem [thread:$0]  %s10, 24576, %s95, [#allocation9], 128, 128, 8
    $region45: #{flowcl_forward.1} parent=1 // pred_fallthru
      _
    // Predicated region
    $region46: #{flowcl_forward.1} parent=1 // pred_check
      _
    $region47: #{flowcl_forward.1} parent=1 // pred_check_branch
      %102 = sbr.rel (0) target = $region49
    $region48: #{flowcl_forward.1} parent=1 // pred_region
      %s104 = ssub.s32 192, 192
      %105 = vsyncadd [#allocation12], %s104
      %s106 = sshll.u32 [#allocation11], 4
      %s107 = int_to_ptr.vmem [resolvable:$true] %s106
      %112 = dma.hbm_to_vmem [thread:$0]  %s11, 192, %s107, [#allocation12], 32, 32, 2
    $region49: #{flowcl_forward.1} parent=1 // pred_fallthru
      _
    // Predicated region
    $region50: #{flowcl_forward.1} parent=1 // pred_check
      _
    $region51: #{flowcl_forward.1} parent=1 // pred_check_branch
      %114 = sbr.rel (0) target = $region53
    $region52: #{flowcl_forward.1} parent=1 // pred_region
      %s116 = ssub.s32 24576, 24576
      %117 = vsyncadd [#allocation12], %s116
      %s118 = sshll.u32 [#allocation13], 4
      %s119 = int_to_ptr.vmem [resolvable:$true] %s118
      %124 = dma.hbm_to_vmem [thread:$0]  %s12, 24576, %s119, [#allocation12], 128, 128, 8
    $region53: #{flowcl_forward.1} parent=1 // pred_fallthru
      _
    // Predicated region
    $region54: #{flowcl_forward.1} parent=1 // pred_check
      _
    $region55: #{flowcl_forward.1} parent=1 // pred_check_branch
      %126 = sbr.rel (0) target = $region57
    $region56: #{flowcl_forward.1} parent=1 // pred_region
      %s128 = ssub.s32 192, 192
      %129 = vsyncadd [#allocation15], %s128
      %s130 = sshll.u32 [#allocation14], 4
      %s131 = int_to_ptr.vmem [resolvable:$true] %s130
      %136 = dma.hbm_to_vmem [thread:$0]  %s13, 192, %s131, [#allocation15], 32, 32, 2
    $region57: #{flowcl_forward.1} parent=1 // pred_fallthru
      _
    // Predicated region
    $region58: #{flowcl_forward.1} parent=1 // pred_check
      _
    $region59: #{flowcl_forward.1} parent=1 // pred_check_branch
      %138 = sbr.rel (0) target = $region61
    $region60: #{flowcl_forward.1} parent=1 // pred_region
      %s140 = ssub.s32 2048, 2048
      %141 = vsyncadd [#allocation15], %s140
      %s142 = sshll.u32 [#allocation16], 4
      %s143 = int_to_ptr.vmem [resolvable:$true] %s142
      %148 = dma.hbm_to_vmem [thread:$0]  %s14, 2048, %s143, [#allocation15], 64, 64, 4
    $region61: #{flowcl_forward.1} parent=1 // pred_fallthru
      _
    // Predicated region
    $region62: #{flowcl_forward.1} parent=1 // pred_check
      _
    $region63: #{flowcl_forward.1} parent=1 // pred_check_branch
      %150 = sbr.rel (0) target = $region65
    $region64: #{flowcl_forward.1} parent=1 // pred_region
      _
    $region65: #{flowcl_forward.1} parent=1 // pred_fallthru
      _
    // Predicated region
    $region66: #{flowcl_forward.1} parent=1 // pred_check
      _
    $region67: #{flowcl_forward.1} parent=1 // pred_check_branch
      %152 = sbr.rel (0) target = $region69
    $region68: #{flowcl_forward.1} parent=1 // pred_region
      %153 = dma.done [#allocation3], 896
    $region69: #{flowcl_forward.1} parent=1 // pred_fallthru
      _
    // Predicated region
    $region70: #{flowcl_forward.1} parent=1 // pred_check
      _
    $region71: #{flowcl_forward.1} parent=1 // pred_check_branch
      %155 = sbr.rel (0) target = $region73
    $region72: #{flowcl_forward.1} parent=1 // pred_region
      %156 = dma.done [#allocation6], 12544
    $region73: #{flowcl_forward.1} parent=1 // pred_fallthru
      _
    // Predicated region
    $region74: #{flowcl_forward.1} parent=1 // pred_check
      _
    $region75: #{flowcl_forward.1} parent=1 // pred_check_branch
      %158 = sbr.rel (0) target = $region77
    $region76: #{flowcl_forward.1} parent=1 // pred_region
      %159 = dma.done [#allocation6], 12288
    $region77: #{flowcl_forward.1} parent=1 // pred_fallthru
      _
    // Predicated region
    $region78: #{flowcl_forward.1} parent=1 // pred_check
      _
    $region79: #{flowcl_forward.1} parent=1 // pred_check_branch
      %161 = sbr.rel (0) target = $region81
    $region80: #{flowcl_forward.1} parent=1 // pred_region
      %162 = dma.done [#allocation9], 6144
    $region81: #{flowcl_forward.1} parent=1 // pred_fallthru
      _
    // Predicated region
    $region82: #{flowcl_forward.1} parent=1 // pred_check
      _
    $region83: #{flowcl_forward.1} parent=1 // pred_check_branch
      %164 = sbr.rel (0) target = $region85
    $region84: #{flowcl_forward.1} parent=1 // pred_region
      %165 = dma.done [#allocation9], 24576
    $region85: #{flowcl_forward.1} parent=1 // pred_fallthru
      _
    // Predicated region
    $region86: #{flowcl_forward.1} parent=1 // pred_check
      _
    $region87: #{flowcl_forward.1} parent=1 // pred_check_branch
      %167 = sbr.rel (0) target = $region89
    $region88: #{flowcl_forward.1} parent=1 // pred_region
      %168 = dma.done [#allocation12], 192
    $region89: #{flowcl_forward.1} parent=1 // pred_fallthru
      _
    // Predicated region
    $region90: #{flowcl_forward.1} parent=1 // pred_check
      _
    $region91: #{flowcl_forward.1} parent=1 // pred_check_branch
      %170 = sbr.rel (0) target = $region93
    $region92: #{flowcl_forward.1} parent=1 // pred_region
      %171 = dma.done [#allocation12], 24576
    $region93: #{flowcl_forward.1} parent=1 // pred_fallthru
      _
    // Predicated region
    $region94: #{flowcl_forward.1} parent=1 // pred_check
      _
    $region95: #{flowcl_forward.1} parent=1 // pred_check_branch
      %173 = sbr.rel (0) target = $region97
    $region96: #{flowcl_forward.1} parent=1 // pred_region
      %174 = dma.done [#allocation15], 192
    $region97: #{flowcl_forward.1} parent=1 // pred_fallthru
      _
    // Predicated region
    $region98: #{flowcl_forward.1} parent=1 // pred_check
      _
    $region99: #{flowcl_forward.1} parent=1 // pred_check_branch
      %176 = sbr.rel (0) target = $region101
    $region100: #{flowcl_forward.1} parent=1 // pred_region
      %177 = dma.done [#allocation15], 2048
    $region101: #{flowcl_forward.1} parent=1 // pred_fallthru
      _
    %v179 = vld [vmem:[#allocation2] sm:$0xff]
    %v180 = vld [vmem:[#allocation2 + $0x8] sm:$0xff]
    %v181 = vld [vmem:[#allocation2 + $0x10] sm:$0xff]
    %v182 = vld [vmem:[#allocation2 + $0x18] sm:$0xff]
    %v183 = vld [vmem:[#allocation2 + $0x20] sm:$0xff]
    %v184 = vld [vmem:[#allocation2 + $0x28] sm:$0xff]
    %v185 = vld [vmem:[#allocation2 + $0x30] sm:$0xff]
    %v186 = vpack.c.bf16 %v179, %v179
    %v187 = vpack.c.bf16 %v180, %v180
    %v188 = vpack.c.bf16 %v181, %v181
    %v189 = vpack.c.bf16 %v182, %v182
    %v190 = vpack.c.bf16 %v183, %v183
    %v191 = vpack.c.bf16 %v184, %v184
    %v192 = vpack.c.bf16 %v185, %v185
    %v193 = vld [vmem:[#allocation5] sm:$0xff]
    %v194 = vld [vmem:[#allocation5 + $0x8] sm:$0xff]
    %v195 = vld [vmem:[#allocation5 + $0x10] sm:$0xff]
    %v196 = vld [vmem:[#allocation5 + $0x18] sm:$0xff]
    %v197 = vld [vmem:[#allocation5 + $0x20] sm:$0xff]
    %v198 = vld [vmem:[#allocation5 + $0x28] sm:$0xff]
    %v199 = vld [vmem:[#allocation5 + $0x30] sm:$0xff]
    %v200 = vld [vmem:[#allocation5 + $0x38] sm:$0xff]
    %v201 = vld [vmem:[#allocation5 + $0x40] sm:$0xff]
    %v202 = vld [vmem:[#allocation5 + $0x48] sm:$0xff]
    %v203 = vld [vmem:[#allocation5 + $0x50] sm:$0xff]
    %v204 = vld [vmem:[#allocation5 + $0x58] sm:$0xff]
    %v205 = vld [vmem:[#allocation5 + $0x60] sm:$0xff]
    %v206 = vld [vmem:[#allocation5 + $0x68] sm:$0xff]
    %v207 = vld [vmem:[#allocation5 + $0x70] sm:$0xff]
    %v208 = vld [vmem:[#allocation5 + $0x78] sm:$0xff]
    %v209 = vld [vmem:[#allocation5 + $0x80] sm:$0xff]
    %v210 = vld [vmem:[#allocation5 + $0x88] sm:$0xff]
    %v211 = vld [vmem:[#allocation5 + $0x90] sm:$0xff]
    %v212 = vld [vmem:[#allocation5 + $0x98] sm:$0xff]
    %v213 = vld [vmem:[#allocation5 + $0xa0] sm:$0xff]
    %v214 = vld [vmem:[#allocation5 + $0xa8] sm:$0xff]
    %v215 = vld [vmem:[#allocation5 + $0xb0] sm:$0xff]
    %v216 = vld [vmem:[#allocation5 + $0xb8] sm:$0xff]
    %v217 = vld [vmem:[#allocation5 + $0xc0] sm:$0xff]
    %v218 = vld [vmem:[#allocation5 + $0xc8] sm:$0xff]
    %v219 = vld [vmem:[#allocation5 + $0xd0] sm:$0xff]
    %v220 = vld [vmem:[#allocation5 + $0xd8] sm:$0xff]
    %v221 = vld [vmem:[#allocation5 + $0xe0] sm:$0xff]
    %v222 = vld [vmem:[#allocation5 + $0xe8] sm:$0xff]
    %v223 = vld [vmem:[#allocation5 + $0xf0] sm:$0xff]
    %v224 = vld [vmem:[#allocation5 + $0xf8] sm:$0xff]
    %v225 = vld [vmem:[#allocation5 + $0x100] sm:$0xff]
    %v226 = vld [vmem:[#allocation5 + $0x108] sm:$0xff]
    %v227 = vld [vmem:[#allocation5 + $0x110] sm:$0xff]
    %v228 = vld [vmem:[#allocation5 + $0x118] sm:$0xff]
    %v229 = vld [vmem:[#allocation5 + $0x120] sm:$0xff]
    %v230 = vld [vmem:[#allocation5 + $0x128] sm:$0xff]
    %v231 = vld [vmem:[#allocation5 + $0x130] sm:$0xff]
    %v232 = vld [vmem:[#allocation5 + $0x138] sm:$0xff]
    %v233 = vld [vmem:[#allocation5 + $0x140] sm:$0xff]
    %v234 = vld [vmem:[#allocation5 + $0x148] sm:$0xff]
    %v235 = vld [vmem:[#allocation5 + $0x150] sm:$0xff]
    %v236 = vld [vmem:[#allocation5 + $0x158] sm:$0xff]
    %v237 = vld [vmem:[#allocation5 + $0x160] sm:$0xff]
    %v238 = vld [vmem:[#allocation5 + $0x168] sm:$0xff]
    %v239 = vld [vmem:[#allocation5 + $0x170] sm:$0xff]
    %v240 = vld [vmem:[#allocation5 + $0x178] sm:$0xff]
    %v241 = vld [vmem:[#allocation5 + $0x180] sm:$0xff]
    %v242 = vld [vmem:[#allocation5 + $0x188] sm:$0xff]
    %v243 = vld [vmem:[#allocation5 + $0x190] sm:$0xff]
    %v244 = vld [vmem:[#allocation5 + $0x198] sm:$0xff]
    %v245 = vld [vmem:[#allocation5 + $0x1a0] sm:$0xff]
    %v246 = vld [vmem:[#allocation5 + $0x1a8] sm:$0xff]
    %v247 = vld [vmem:[#allocation5 + $0x1b0] sm:$0xff]
    %v248 = vld [vmem:[#allocation5 + $0x1b8] sm:$0xff]
    %v249 = vld [vmem:[#allocation5 + $0x1c0] sm:$0xff]
    %v250 = vld [vmem:[#allocation5 + $0x1c8] sm:$0xff]
    %v251 = vld [vmem:[#allocation5 + $0x1d0] sm:$0xff]
    %v252 = vld [vmem:[#allocation5 + $0x1d8] sm:$0xff]
    %v253 = vld [vmem:[#allocation5 + $0x1e0] sm:$0xff]
    %v254 = vld [vmem:[#allocation5 + $0x1e8] sm:$0xff]
    %v255 = vld [vmem:[#allocation5 + $0x1f0] sm:$0xff]
    %v256 = vld [vmem:[#allocation5 + $0x1f8] sm:$0xff]
    %v257 = vld [vmem:[#allocation5 + $0x200] sm:$0xff]
    %v258 = vld [vmem:[#allocation5 + $0x208] sm:$0xff]
    %v259 = vld [vmem:[#allocation5 + $0x210] sm:$0xff]
    %v260 = vld [vmem:[#allocation5 + $0x218] sm:$0xff]
    %v261 = vld [vmem:[#allocation5 + $0x220] sm:$0xff]
    %v262 = vld [vmem:[#allocation5 + $0x228] sm:$0xff]
    %v263 = vld [vmem:[#allocation5 + $0x230] sm:$0xff]
    %v264 = vld [vmem:[#allocation5 + $0x238] sm:$0xff]
    %v265 = vld [vmem:[#allocation5 + $0x240] sm:$0xff]
    %v266 = vld [vmem:[#allocation5 + $0x248] sm:$0xff]
    %v267 = vld [vmem:[#allocation5 + $0x250] sm:$0xff]
    %v268 = vld [vmem:[#allocation5 + $0x258] sm:$0xff]
    %v269 = vld [vmem:[#allocation5 + $0x260] sm:$0xff]
    %v270 = vld [vmem:[#allocation5 + $0x268] sm:$0xff]
    %v271 = vld [vmem:[#allocation5 + $0x270] sm:$0xff]
    %v272 = vld [vmem:[#allocation5 + $0x278] sm:$0xff]
    %v273 = vld [vmem:[#allocation5 + $0x280] sm:$0xff]
    %v274 = vld [vmem:[#allocation5 + $0x288] sm:$0xff]
    %v275 = vld [vmem:[#allocation5 + $0x290] sm:$0xff]
    %v276 = vld [vmem:[#allocation5 + $0x298] sm:$0xff]
    %v277 = vld [vmem:[#allocation5 + $0x2a0] sm:$0xff]
    %v278 = vld [vmem:[#allocation5 + $0x2a8] sm:$0xff]
    %v279 = vld [vmem:[#allocation5 + $0x2b0] sm:$0xff]
    %v280 = vld [vmem:[#allocation5 + $0x2b8] sm:$0xff]
    %v281 = vld [vmem:[#allocation5 + $0x2c0] sm:$0xff]
    %v282 = vld [vmem:[#allocation5 + $0x2c8] sm:$0xff]
    %v283 = vld [vmem:[#allocation5 + $0x2d0] sm:$0xff]
    %v284 = vld [vmem:[#allocation5 + $0x2d8] sm:$0xff]
    %v285 = vld [vmem:[#allocation5 + $0x2e0] sm:$0xff]
    %v286 = vld [vmem:[#allocation5 + $0x2e8] sm:$0xff]
    %v287 = vld [vmem:[#allocation5 + $0x2f0] sm:$0xff]
    %v288 = vld [vmem:[#allocation5 + $0x2f8] sm:$0xff]
    %v289 = vld [vmem:[#allocation5 + $0x300] sm:$0xff]
    %v290 = vld [vmem:[#allocation5 + $0x308] sm:$0xff]
    %v291 = vld [vmem:[%s2] sm:$0x3]
    %v293 = vlaneseq
    %v294 = vshrl.u32 %v293, 7
    %v295 = vsub.s32 0, %v294
    %v296 = vrot.slane %v291, %v295
    %v297 = vlaneseq
    %v298 = vshrl.u32 %v297, 7
    %v299 = vsub.s32 1, %v298
    %v300 = vrot.slane %v291, %v299
    %v401 = vunpack.c.l.b16 %v193
    %v402 = vunpack.c.h.b16 %v193
    %v403 = vunpack.c.l.b16 %v194
    %v404 = vunpack.c.h.b16 %v194
    %v405 = vunpack.c.l.b16 %v195
    %v406 = vunpack.c.h.b16 %v195
    %v407 = vunpack.c.l.b16 %v196
    %v408 = vunpack.c.h.b16 %v196
    %v409 = vunpack.c.l.b16 %v197
    %v410 = vunpack.c.h.b16 %v197
    %v411 = vunpack.c.l.b16 %v198
    %v412 = vunpack.c.h.b16 %v198
    %v413 = vunpack.c.l.b16 %v199
    %v414 = vunpack.c.h.b16 %v199
    %v415 = vunpack.c.l.b16 %v200
    %v416 = vunpack.c.h.b16 %v200
    %v417 = vunpack.c.l.b16 %v201
    %v418 = vunpack.c.h.b16 %v201
    %v419 = vunpack.c.l.b16 %v202
    %v420 = vunpack.c.h.b16 %v202
    %v421 = vunpack.c.l.b16 %v203
    %v422 = vunpack.c.h.b16 %v203
    %v423 = vunpack.c.l.b16 %v204
    %v424 = vunpack.c.h.b16 %v204
    %v425 = vunpack.c.l.b16 %v205
    %v426 = vunpack.c.h.b16 %v205
    %v427 = vunpack.c.l.b16 %v206
    %v428 = vunpack.c.h.b16 %v206
    %v429 = vunpack.c.l.b16 %v207
    %v430 = vunpack.c.h.b16 %v207
    %v431 = vunpack.c.l.b16 %v208
    %v432 = vunpack.c.h.b16 %v208
    %v433 = vunpack.c.l.b16 %v209
    %v434 = vunpack.c.h.b16 %v209
    %v435 = vunpack.c.l.b16 %v210
    %v436 = vunpack.c.h.b16 %v210
    %v437 = vunpack.c.l.b16 %v211
    %v438 = vunpack.c.h.b16 %v211
    %v439 = vunpack.c.l.b16 %v212
    %v440 = vunpack.c.h.b16 %v212
    %v441 = vunpack.c.l.b16 %v213
    %v442 = vunpack.c.h.b16 %v213
    %v443 = vunpack.c.l.b16 %v214
    %v444 = vunpack.c.h.b16 %v214
    %v445 = vunpack.c.l.b16 %v215
    %v446 = vunpack.c.h.b16 %v215
    %v447 = vunpack.c.l.b16 %v216
    %v448 = vunpack.c.h.b16 %v216
    %v449 = vunpack.c.l.b16 %v217
    %v450 = vunpack.c.h.b16 %v217
    %v451 = vunpack.c.l.b16 %v218
    %v452 = vunpack.c.h.b16 %v218
    %v453 = vunpack.c.l.b16 %v219
    %v454 = vunpack.c.h.b16 %v219
    %v455 = vunpack.c.l.b16 %v220
    %v456 = vunpack.c.h.b16 %v220
    %v457 = vunpack.c.l.b16 %v221
    %v458 = vunpack.c.h.b16 %v221
    %v459 = vunpack.c.l.b16 %v222
    %v460 = vunpack.c.h.b16 %v222
    %v461 = vunpack.c.l.b16 %v223
    %v462 = vunpack.c.h.b16 %v223
    %v463 = vunpack.c.l.b16 %v224
    %v464 = vunpack.c.h.b16 %v224
    %v465 = vunpack.c.l.b16 %v225
    %v466 = vunpack.c.h.b16 %v225
    %v467 = vunpack.c.l.b16 %v226
    %v468 = vunpack.c.h.b16 %v226
    %v469 = vunpack.c.l.b16 %v227
    %v470 = vunpack.c.h.b16 %v227
    %v471 = vunpack.c.l.b16 %v228
    %v472 = vunpack.c.h.b16 %v228
    %v473 = vunpack.c.l.b16 %v229
    %v474 = vunpack.c.h.b16 %v229
    %v475 = vunpack.c.l.b16 %v230
    %v476 = vunpack.c.h.b16 %v230
    %v477 = vunpack.c.l.b16 %v231
    %v478 = vunpack.c.h.b16 %v231
    %v479 = vunpack.c.l.b16 %v232
    %v480 = vunpack.c.h.b16 %v232
    %v481 = vunpack.c.l.b16 %v233
    %v482 = vunpack.c.h.b16 %v233
    %v483 = vunpack.c.l.b16 %v234
    %v484 = vunpack.c.h.b16 %v234
    %v485 = vunpack.c.l.b16 %v235
    %v486 = vunpack.c.h.b16 %v235
    %v487 = vunpack.c.l.b16 %v236
    %v488 = vunpack.c.h.b16 %v236
    %v489 = vunpack.c.l.b16 %v237
    %v490 = vunpack.c.h.b16 %v237
    %v491 = vunpack.c.l.b16 %v238
    %v492 = vunpack.c.h.b16 %v238
    %v493 = vunpack.c.l.b16 %v239
    %v494 = vunpack.c.h.b16 %v239
    %v495 = vunpack.c.l.b16 %v240
    %v496 = vunpack.c.h.b16 %v240
    %v497 = vunpack.c.l.b16 %v241
    %v498 = vunpack.c.h.b16 %v241
    %v499 = vunpack.c.l.b16 %v242
    %v500 = vunpack.c.h.b16 %v242
    %v501 = vunpack.c.l.b16 %v243
    %v502 = vunpack.c.h.b16 %v243
    %v503 = vunpack.c.l.b16 %v244
    %v504 = vunpack.c.h.b16 %v244
    %v505 = vunpack.c.l.b16 %v245
    %v506 = vunpack.c.h.b16 %v245
    %v507 = vunpack.c.l.b16 %v246
    %v508 = vunpack.c.h.b16 %v246
    %v509 = vunpack.c.l.b16 %v247
    %v510 = vunpack.c.h.b16 %v247
    %v511 = vunpack.c.l.b16 %v248
    %v512 = vunpack.c.h.b16 %v248
    %v513 = vunpack.c.l.b16 %v249
    %v514 = vunpack.c.h.b16 %v249
    %v515 = vunpack.c.l.b16 %v250
    %v516 = vunpack.c.h.b16 %v250
    %v517 = vunpack.c.l.b16 %v251
    %v518 = vunpack.c.h.b16 %v251
    %v519 = vunpack.c.l.b16 %v252
    %v520 = vunpack.c.h.b16 %v252
    %v521 = vunpack.c.l.b16 %v253
    %v522 = vunpack.c.h.b16 %v253
    %v523 = vunpack.c.l.b16 %v254
    %v524 = vunpack.c.h.b16 %v254
    %v525 = vunpack.c.l.b16 %v255
    %v526 = vunpack.c.h.b16 %v255
    %v527 = vunpack.c.l.b16 %v256
    %v528 = vunpack.c.h.b16 %v256
    %v529 = vunpack.c.l.b16 %v257
    %v530 = vunpack.c.h.b16 %v257
    %v531 = vunpack.c.l.b16 %v258
    %v532 = vunpack.c.h.b16 %v258
    %v533 = vunpack.c.l.b16 %v259
    %v534 = vunpack.c.h.b16 %v259
    %v535 = vunpack.c.l.b16 %v260
    %v536 = vunpack.c.h.b16 %v260
    %v537 = vunpack.c.l.b16 %v261
    %v538 = vunpack.c.h.b16 %v261
    %v539 = vunpack.c.l.b16 %v262
    %v540 = vunpack.c.h.b16 %v262
    %v541 = vunpack.c.l.b16 %v263
    %v542 = vunpack.c.h.b16 %v263
    %v543 = vunpack.c.l.b16 %v264
    %v544 = vunpack.c.h.b16 %v264
    %v545 = vunpack.c.l.b16 %v265
    %v546 = vunpack.c.h.b16 %v265
    %v547 = vunpack.c.l.b16 %v266
    %v548 = vunpack.c.h.b16 %v266
    %v549 = vunpack.c.l.b16 %v267
    %v550 = vunpack.c.h.b16 %v267
    %v551 = vunpack.c.l.b16 %v268
    %v552 = vunpack.c.h.b16 %v268
    %v553 = vunpack.c.l.b16 %v269
    %v554 = vunpack.c.h.b16 %v269
    %v555 = vunpack.c.l.b16 %v270
    %v556 = vunpack.c.h.b16 %v270
    %v557 = vunpack.c.l.b16 %v271
    %v558 = vunpack.c.h.b16 %v271
    %v559 = vunpack.c.l.b16 %v272
    %v560 = vunpack.c.h.b16 %v272
    %v561 = vunpack.c.l.b16 %v273
    %v562 = vunpack.c.h.b16 %v273
    %v563 = vunpack.c.l.b16 %v274
    %v564 = vunpack.c.h.b16 %v274
    %v565 = vunpack.c.l.b16 %v275
    %v566 = vunpack.c.h.b16 %v275
    %v567 = vunpack.c.l.b16 %v276
    %v568 = vunpack.c.h.b16 %v276
    %v569 = vunpack.c.l.b16 %v277
    %v570 = vunpack.c.h.b16 %v277
    %v571 = vunpack.c.l.b16 %v278
    %v572 = vunpack.c.h.b16 %v278
    %v573 = vunpack.c.l.b16 %v279
    %v574 = vunpack.c.h.b16 %v279
    %v575 = vunpack.c.l.b16 %v280
    %v576 = vunpack.c.h.b16 %v280
    %v577 = vunpack.c.l.b16 %v281
    %v578 = vunpack.c.h.b16 %v281
    %v579 = vunpack.c.l.b16 %v282
    %v580 = vunpack.c.h.b16 %v282
    %v581 = vunpack.c.l.b16 %v283
    %v582 = vunpack.c.h.b16 %v283
    %v583 = vunpack.c.l.b16 %v284
    %v584 = vunpack.c.h.b16 %v284
    %v585 = vunpack.c.l.b16 %v285
    %v586 = vunpack.c.h.b16 %v285
    %v587 = vunpack.c.l.b16 %v286
    %v588 = vunpack.c.h.b16 %v286
    %v589 = vunpack.c.l.b16 %v287
    %v590 = vunpack.c.h.b16 %v287
    %v591 = vunpack.c.l.b16 %v288
    %v592 = vunpack.c.h.b16 %v288
    %v593 = vunpack.c.l.b16 %v289
    %v594 = vunpack.c.h.b16 %v289
    %v595 = vunpack.c.l.b16 %v290
    %v596 = vunpack.c.h.b16 %v290
    %v597 = vpack.c.b16 %v403, %v401
    %v598 = vpack.c.b16 %v404, %v402
    %v599 = vpack.c.b16 %v407, %v405
    %v600 = vpack.c.b16 %v408, %v406
    %v601 = vpack.c.b16 %v411, %v409
    %v602 = vpack.c.b16 %v412, %v410
    %v603 = vpack.c.b16 %v415, %v413
    %v604 = vpack.c.b16 %v416, %v414
    %v605 = vpack.c.b16 %v419, %v417
    %v606 = vpack.c.b16 %v420, %v418
    %v607 = vpack.c.b16 %v423, %v421
    %v608 = vpack.c.b16 %v424, %v422
    %v609 = vpack.c.b16 %v427, %v425
    %v610 = vpack.c.b16 %v428, %v426
    %v611 = vpack.c.b16 %v431, %v429
    %v612 = vpack.c.b16 %v432, %v430
    %v613 = vpack.c.b16 %v435, %v433
    %v614 = vpack.c.b16 %v436, %v434
    %v615 = vpack.c.b16 %v439, %v437
    %v616 = vpack.c.b16 %v440, %v438
    %v617 = vpack.c.b16 %v443, %v441
    %v618 = vpack.c.b16 %v444, %v442
    %v619 = vpack.c.b16 %v447, %v445
    %v620 = vpack.c.b16 %v448, %v446
    %v621 = vpack.c.b16 %v451, %v449
    %v622 = vpack.c.b16 %v452, %v450
    %v623 = vpack.c.b16 %v455, %v453
    %v624 = vpack.c.b16 %v456, %v454
    %v625 = vpack.c.b16 %v459, %v457
    %v626 = vpack.c.b16 %v460, %v458
    %v627 = vpack.c.b16 %v463, %v461
    %v628 = vpack.c.b16 %v464, %v462
    %v629 = vpack.c.b16 %v467, %v465
    %v630 = vpack.c.b16 %v468, %v466
    %v631 = vpack.c.b16 %v471, %v469
    %v632 = vpack.c.b16 %v472, %v470
    %v633 = vpack.c.b16 %v475, %v473
    %v634 = vpack.c.b16 %v476, %v474
    %v635 = vpack.c.b16 %v479, %v477
    %v636 = vpack.c.b16 %v480, %v478
    %v637 = vpack.c.b16 %v483, %v481
    %v638 = vpack.c.b16 %v484, %v482
    %v639 = vpack.c.b16 %v487, %v485
    %v640 = vpack.c.b16 %v488, %v486
    %v641 = vpack.c.b16 %v491, %v489
    %v642 = vpack.c.b16 %v492, %v490
    %v643 = vpack.c.b16 %v495, %v493
    %v644 = vpack.c.b16 %v496, %v494
    %v645 = vpack.c.b16 %v499, %v497
    %v646 = vpack.c.b16 %v500, %v498
    %v647 = vpack.c.b16 %v503, %v501
    %v648 = vpack.c.b16 %v504, %v502
    %v649 = vpack.c.b16 %v507, %v505
    %v650 = vpack.c.b16 %v508, %v506
    %v651 = vpack.c.b16 %v511, %v509
    %v652 = vpack.c.b16 %v512, %v510
    %v653 = vpack.c.b16 %v515, %v513
    %v654 = vpack.c.b16 %v516, %v514
    %v655 = vpack.c.b16 %v519, %v517
    %v656 = vpack.c.b16 %v520, %v518
    %v657 = vpack.c.b16 %v523, %v521
    %v658 = vpack.c.b16 %v524, %v522
    %v659 = vpack.c.b16 %v527, %v525
    %v660 = vpack.c.b16 %v528, %v526
    %v661 = vpack.c.b16 %v531, %v529
    %v662 = vpack.c.b16 %v532, %v530
    %v663 = vpack.c.b16 %v535, %v533
    %v664 = vpack.c.b16 %v536, %v534
    %v665 = vpack.c.b16 %v539, %v537
    %v666 = vpack.c.b16 %v540, %v538
    %v667 = vpack.c.b16 %v543, %v541
    %v668 = vpack.c.b16 %v544, %v542
    %v669 = vpack.c.b16 %v547, %v545
    %v670 = vpack.c.b16 %v548, %v546
    %v671 = vpack.c.b16 %v551, %v549
    %v672 = vpack.c.b16 %v552, %v550
    %v673 = vpack.c.b16 %v555, %v553
    %v674 = vpack.c.b16 %v556, %v554
    %v675 = vpack.c.b16 %v559, %v557
    %v676 = vpack.c.b16 %v560, %v558
    %v677 = vpack.c.b16 %v563, %v561
    %v678 = vpack.c.b16 %v564, %v562
    %v679 = vpack.c.b16 %v567, %v565
    %v680 = vpack.c.b16 %v568, %v566
    %v681 = vpack.c.b16 %v571, %v569
    %v682 = vpack.c.b16 %v572, %v570
    %v683 = vpack.c.b16 %v575, %v573
    %v684 = vpack.c.b16 %v576, %v574
    %v685 = vpack.c.b16 %v579, %v577
    %v686 = vpack.c.b16 %v580, %v578
    %v687 = vpack.c.b16 %v583, %v581
    %v688 = vpack.c.b16 %v584, %v582
    %v689 = vpack.c.b16 %v587, %v585
    %v690 = vpack.c.b16 %v588, %v586
    %v691 = vpack.c.b16 %v591, %v589
    %v692 = vpack.c.b16 %v592, %v590
    %v693 = vpack.c.b16 %v595, %v593
    %v694 = vpack.c.b16 %v596, %v594
    %vm793 = vcmask 130048
    %v795 = vsel %vm793, %v192, 0
    %797 = vmatprep.subr.bf16.mxu0 %v598
    %798 = vmatpush1.bf16.msra.mxu0 %v597
    %799 = vmatprep.subr.bf16.mxu0 %v600
    %800 = vmatpush1.bf16.msra.mxu0 %v599
    %801 = vmatprep.subr.bf16.mxu0 %v602
    %802 = vmatpush1.bf16.msra.mxu0 %v601
    %803 = vmatprep.subr.bf16.mxu0 %v604
    %804 = vmatpush1.bf16.msra.mxu0 %v603
    %805 = vmatprep.subr.bf16.mxu0 %v606
    %806 = vmatpush1.bf16.msra.mxu0 %v605
    %807 = vmatprep.subr.bf16.mxu0 %v608
    %808 = vmatpush1.bf16.msra.mxu0 %v607
    %809 = vmatprep.subr.bf16.mxu0 %v610
    %810 = vmatpush1.bf16.msra.mxu0 %v609
    %811 = vmatprep.subr.bf16.mxu0 %v612
    %812 = vmatpush1.bf16.msra.mxu0 %v611
    %813 = vmatprep.subr.bf16.mxu0 %v614
    %814 = vmatpush1.bf16.msra.mxu0 %v613
    %815 = vmatprep.subr.bf16.mxu0 %v616
    %816 = vmatpush1.bf16.msra.mxu0 %v615
    %817 = vmatprep.subr.bf16.mxu0 %v618
    %818 = vmatpush1.bf16.msra.mxu0 %v617
    %819 = vmatprep.subr.bf16.mxu0 %v620
    %820 = vmatpush1.bf16.msra.mxu0 %v619
    %821 = vmatprep.subr.bf16.mxu0 %v622
    %822 = vmatpush1.bf16.msra.mxu0 %v621
    %823 = vmatprep.subr.bf16.mxu0 %v624
    %824 = vmatpush1.bf16.msra.mxu0 %v623
    %825 = vmatprep.subr.bf16.mxu0 %v626
    %826 = vmatpush1.bf16.msra.mxu0 %v625
    %827 = vmatprep.subr.bf16.mxu0 %v628
    %828 = vmatpush1.bf16.msra.mxu0 %v627
    %829 = vmatprep.mubr.bf16.mxu0 %v187
    %830 = vmatmul.mubr.bf16.gmra.mrb[0].mxu0 %v186
    %v831 = vpop.f32.mrb[0].mxu0
    %v832 = vadd.f32 %v296, %v831
    %v833 = vpop.f32.mrb[0].mxu0
    %v834 = vadd.f32 %v300, %v833
    %v835 = vpop.f32.mrb[0].mxu0
    %v836 = vpop.f32.mrb[0].mxu0
    %837 = vdwg.mxu0
    %838 = vmatprep.subr.bf16.mxu0 %v630
    %839 = vmatpush1.bf16.msra.mxu0 %v629
    %840 = vmatprep.subr.bf16.mxu0 %v632
    %841 = vmatpush1.bf16.msra.mxu0 %v631
    %842 = vmatprep.subr.bf16.mxu0 %v634
    %843 = vmatpush1.bf16.msra.mxu0 %v633
    %844 = vmatprep.subr.bf16.mxu0 %v636
    %845 = vmatpush1.bf16.msra.mxu0 %v635
    %846 = vmatprep.subr.bf16.mxu0 %v638
    %847 = vmatpush1.bf16.msra.mxu0 %v637
    %848 = vmatprep.subr.bf16.mxu0 %v640
    %849 = vmatpush1.bf16.msra.mxu0 %v639
    %850 = vmatprep.subr.bf16.mxu0 %v642
    %851 = vmatpush1.bf16.msra.mxu0 %v641
    %852 = vmatprep.subr.bf16.mxu0 %v644
    %853 = vmatpush1.bf16.msra.mxu0 %v643
    %854 = vmatprep.subr.bf16.mxu0 %v646
    %855 = vmatpush1.bf16.msra.mxu0 %v645
    %856 = vmatprep.subr.bf16.mxu0 %v648
    %857 = vmatpush1.bf16.msra.mxu0 %v647
    %858 = vmatprep.subr.bf16.mxu0 %v650
    %859 = vmatpush1.bf16.msra.mxu0 %v649
    %860 = vmatprep.subr.bf16.mxu0 %v652
    %861 = vmatpush1.bf16.msra.mxu0 %v651
    %862 = vmatprep.subr.bf16.mxu0 %v654
    %863 = vmatpush1.bf16.msra.mxu0 %v653
    %864 = vmatprep.subr.bf16.mxu0 %v656
    %865 = vmatpush1.bf16.msra.mxu0 %v655
    %866 = vmatprep.subr.bf16.mxu0 %v658
    %867 = vmatpush1.bf16.msra.mxu0 %v657
    %868 = vmatprep.subr.bf16.mxu0 %v660
    %869 = vmatpush1.bf16.msra.mxu0 %v659
    %870 = vmatprep.mubr.bf16.mxu0 %v189
    %871 = vmatmul.mubr.bf16.gmra.mrb[0].mxu0 %v188
    %v872 = vpop.f32.mrb[0].mxu0
    %v873 = vadd.f32 %v832, %v872
    %v874 = vpop.f32.mrb[0].mxu0
    %v875 = vadd.f32 %v834, %v874
    %v876 = vpop.f32.mrb[0].mxu0
    %v877 = vpop.f32.mrb[0].mxu0
    %878 = vdwg.mxu0
    %879 = vmatprep.subr.bf16.mxu0 %v662
    %880 = vmatpush1.bf16.msra.mxu0 %v661
    %881 = vmatprep.subr.bf16.mxu0 %v664
    %882 = vmatpush1.bf16.msra.mxu0 %v663
    %883 = vmatprep.subr.bf16.mxu0 %v666
    %884 = vmatpush1.bf16.msra.mxu0 %v665
    %885 = vmatprep.subr.bf16.mxu0 %v668
    %886 = vmatpush1.bf16.msra.mxu0 %v667
    %887 = vmatprep.subr.bf16.mxu0 %v670
    %888 = vmatpush1.bf16.msra.mxu0 %v669
    %889 = vmatprep.subr.bf16.mxu0 %v672
    %890 = vmatpush1.bf16.msra.mxu0 %v671
    %891 = vmatprep.subr.bf16.mxu0 %v674
    %892 = vmatpush1.bf16.msra.mxu0 %v673
    %893 = vmatprep.subr.bf16.mxu0 %v676
    %894 = vmatpush1.bf16.msra.mxu0 %v675
    %895 = vmatprep.subr.bf16.mxu0 %v678
    %896 = vmatpush1.bf16.msra.mxu0 %v677
    %897 = vmatprep.subr.bf16.mxu0 %v680
    %898 = vmatpush1.bf16.msra.mxu0 %v679
    %899 = vmatprep.subr.bf16.mxu0 %v682
    %900 = vmatpush1.bf16.msra.mxu0 %v681
    %901 = vmatprep.subr.bf16.mxu0 %v684
    %902 = vmatpush1.bf16.msra.mxu0 %v683
    %903 = vmatprep.subr.bf16.mxu0 %v686
    %904 = vmatpush1.bf16.msra.mxu0 %v685
    %905 = vmatprep.subr.bf16.mxu0 %v688
    %906 = vmatpush1.bf16.msra.mxu0 %v687
    %907 = vmatprep.subr.bf16.mxu0 %v690
    %908 = vmatpush1.bf16.msra.mxu0 %v689
    %909 = vmatprep.subr.bf16.mxu0 %v692
    %910 = vmatpush1.bf16.msra.mxu0 %v691
    %911 = vmatprep.mubr.bf16.mxu0 %v191
    %912 = vmatmul.mubr.bf16.gmra.mrb[0].mxu0 %v190
    %v913 = vpop.f32.mrb[0].mxu0
    %v914 = vadd.f32 %v873, %v913
    %v915 = vpop.f32.mrb[0].mxu0
    %v916 = vadd.f32 %v875, %v915
    %v917 = vpop.f32.mrb[0].mxu0
    %v918 = vpop.f32.mrb[0].mxu0
    %919 = vdwg.mxu0
    %920 = vmatprep.subr.bf16.mxu0 %v694
    %921 = vmatpush1.bf16.msra.mxu0 %v693
    %922 = vmatprep.subr.bf16.mxu0 0
    %923 = vmatpush1.bf16.msra.mxu0 0
    %924 = vmatprep.subr.bf16.mxu0 0
    %925 = vmatpush1.bf16.msra.mxu0 0
    %926 = vmatprep.subr.bf16.mxu0 0
    %927 = vmatpush1.bf16.msra.mxu0 0
    %928 = vmatprep.subr.bf16.mxu0 0
    %929 = vmatpush1.bf16.msra.mxu0 0
    %930 = vmatprep.subr.bf16.mxu0 0
    %931 = vmatpush1.bf16.msra.mxu0 0
    %932 = vmatprep.subr.bf16.mxu0 0
    %933 = vmatpush1.bf16.msra.mxu0 0
    %934 = vmatprep.subr.bf16.mxu0 0
    %935 = vmatpush1.bf16.msra.mxu0 0
    %936 = vmatprep.subr.bf16.mxu0 0
    %937 = vmatpush1.bf16.msra.mxu0 0
    %938 = vmatprep.subr.bf16.mxu0 0
    %939 = vmatpush1.bf16.msra.mxu0 0
    %940 = vmatprep.subr.bf16.mxu0 0
    %941 = vmatpush1.bf16.msra.mxu0 0
    %942 = vmatprep.subr.bf16.mxu0 0
    %943 = vmatpush1.bf16.msra.mxu0 0
    %944 = vmatprep.subr.bf16.mxu0 0
    %945 = vmatpush1.bf16.msra.mxu0 0
    %946 = vmatprep.subr.bf16.mxu0 0
    %947 = vmatpush1.bf16.msra.mxu0 0
    %948 = vmatprep.subr.bf16.mxu0 0
    %949 = vmatpush1.bf16.msra.mxu0 0
    %950 = vmatprep.subr.bf16.mxu0 0
    %951 = vmatpush1.bf16.msra.mxu0 0
    %952 = vmatprep.mubr.bf16.mxu0 0
    %953 = vmatmul.mubr.bf16.gmra.mrb[0].mxu0 %v795
    %v954 = vpop.f32.mrb[0].mxu0
    %v955 = vadd.f32 %v914, %v954
    %v956 = vpop.f32.mrb[0].mxu0
    %v957 = vadd.f32 %v916, %v956
    %v958 = vpop.f32.mrb[0].mxu0
    %v959 = vpop.f32.mrb[0].mxu0
    %960 = vdwg.mxu0
    %v961 = vmax.f32 %v955, 0.0
    %v962 = vmax.f32 %v957, 0.0
    %v963 = vrot.slane %v961, 4
    %v964 = vadd.f32 %v961, %v963
    %v965 = vrot.slane %v964, 2
    %v966 = vadd.f32 %v964, %v965
    %v967 = vrot.slane %v966, 1
    %v968 = vadd.f32 %v966, %v967
    %v969 = vrot.slane %v962, 4
    %v970 = vadd.f32 %v962, %v969
    %v971 = vrot.slane %v970, 2
    %v972 = vadd.f32 %v970, %v971
    %v973 = vrot.slane %v972, 1
    %v974 = vadd.f32 %v972, %v973
    %v975 = vmul.f32 %v968, 0.125
    %v976 = vmul.f32 %v974, 0.125
    %v977 = vpack.c.bf16 %v975, %v975
    %v978 = vpack.c.bf16 %v976, %v976
    %v979 = vld [vmem:[%s3] sm:$0xf]
    %v980 = vld [vmem:[%s3 + $0x4] sm:$0xf]
    %v981 = vld [vmem:[%s3 + $0x8] sm:$0xf]
    %v982 = vld [vmem:[%s3 + $0xc] sm:$0xf]
    %v983 = vld [vmem:[%s3 + $0x10] sm:$0xf]
    %v984 = vld [vmem:[%s3 + $0x14] sm:$0xf]
    %v985 = vld [vmem:[%s3 + $0x18] sm:$0xf]
    %v986 = vld [vmem:[%s3 + $0x1c] sm:$0xf]
    %v987 = vld [vmem:[%s3 + $0x20] sm:$0xf]
    %v988 = vld [vmem:[%s3 + $0x24] sm:$0xf]
    %v989 = vld [vmem:[%s3 + $0x28] sm:$0xf]
    %v990 = vld [vmem:[%s3 + $0x2c] sm:$0xf]
    %v991 = vld [vmem:[%s3 + $0x30] sm:$0xf]
    %v992 = vld [vmem:[%s3 + $0x34] sm:$0xf]
    %v993 = vld [vmem:[%s3 + $0x38] sm:$0xf]
    %v994 = vld [vmem:[%s3 + $0x3c] sm:$0xf]
    %v995 = vld [vmem:[%s3 + $0x40] sm:$0xf]
    %v996 = vld [vmem:[%s3 + $0x44] sm:$0xf]
    %v997 = vld [vmem:[%s3 + $0x48] sm:$0xf]
    %v998 = vld [vmem:[%s3 + $0x4c] sm:$0xf]
    %v999 = vld [vmem:[%s3 + $0x50] sm:$0xf]
    %v1000 = vld [vmem:[%s3 + $0x54] sm:$0xf]
    %v1001 = vld [vmem:[%s3 + $0x58] sm:$0xf]
    %v1002 = vld [vmem:[%s3 + $0x5c] sm:$0xf]
    %v1003 = vld [vmem:[%s3 + $0x60] sm:$0xf]
    %v1004 = vld [vmem:[%s3 + $0x64] sm:$0xf]
    %v1005 = vld [vmem:[%s3 + $0x68] sm:$0xf]
    %v1006 = vld [vmem:[%s3 + $0x6c] sm:$0xf]
    %v1007 = vld [vmem:[%s3 + $0x70] sm:$0xf]
    %v1008 = vld [vmem:[%s3 + $0x74] sm:$0xf]
    %v1009 = vld [vmem:[%s3 + $0x78] sm:$0xf]
    %v1010 = vld [vmem:[%s3 + $0x7c] sm:$0xf]
    %v1011 = vld [vmem:[%s4] sm:$0x1]
    %v1044 = vunpack.c.l.b16 %v979
    %v1045 = vunpack.c.l.b16 %v980
    %v1046 = vunpack.c.l.b16 %v981
    %v1047 = vunpack.c.l.b16 %v982
    %v1048 = vunpack.c.l.b16 %v983
    %v1049 = vunpack.c.l.b16 %v984
    %v1050 = vunpack.c.l.b16 %v985
    %v1051 = vunpack.c.l.b16 %v986
    %v1052 = vunpack.c.l.b16 %v987
    %v1053 = vunpack.c.l.b16 %v988
    %v1054 = vunpack.c.l.b16 %v989
    %v1055 = vunpack.c.l.b16 %v990
    %v1056 = vunpack.c.l.b16 %v991
    %v1057 = vunpack.c.l.b16 %v992
    %v1058 = vunpack.c.l.b16 %v993
    %v1059 = vunpack.c.l.b16 %v994
    %v1060 = vunpack.c.l.b16 %v995
    %v1061 = vunpack.c.l.b16 %v996
    %v1062 = vunpack.c.l.b16 %v997
    %v1063 = vunpack.c.l.b16 %v998
    %v1064 = vunpack.c.l.b16 %v999
    %v1065 = vunpack.c.l.b16 %v1000
    %v1066 = vunpack.c.l.b16 %v1001
    %v1067 = vunpack.c.l.b16 %v1002
    %v1068 = vunpack.c.l.b16 %v1003
    %v1069 = vunpack.c.l.b16 %v1004
    %v1070 = vunpack.c.l.b16 %v1005
    %v1071 = vunpack.c.l.b16 %v1006
    %v1072 = vunpack.c.l.b16 %v1007
    %v1073 = vunpack.c.l.b16 %v1008
    %v1074 = vunpack.c.l.b16 %v1009
    %v1075 = vunpack.c.l.b16 %v1010
    %v1076 = vpack.c.b16 %v1045, %v1044
    %v1077 = vpack.c.b16 %v1047, %v1046
    %v1078 = vpack.c.b16 %v1049, %v1048
    %v1079 = vpack.c.b16 %v1051, %v1050
    %v1080 = vpack.c.b16 %v1053, %v1052
    %v1081 = vpack.c.b16 %v1055, %v1054
    %v1082 = vpack.c.b16 %v1057, %v1056
    %v1083 = vpack.c.b16 %v1059, %v1058
    %v1084 = vpack.c.b16 %v1061, %v1060
    %v1085 = vpack.c.b16 %v1063, %v1062
    %v1086 = vpack.c.b16 %v1065, %v1064
    %v1087 = vpack.c.b16 %v1067, %v1066
    %v1088 = vpack.c.b16 %v1069, %v1068
    %v1089 = vpack.c.b16 %v1071, %v1070
    %v1090 = vpack.c.b16 %v1073, %v1072
    %v1091 = vpack.c.b16 %v1075, %v1074
    %1108 = vmatprep.subr.bf16.mxu0 0
    %1109 = vmatpush1.bf16.msra.mxu0 %v1076
    %1110 = vmatprep.subr.bf16.mxu0 0
    %1111 = vmatpush1.bf16.msra.mxu0 %v1077
    %1112 = vmatprep.subr.bf16.mxu0 0
    %1113 = vmatpush1.bf16.msra.mxu0 %v1078
    %1114 = vmatprep.subr.bf16.mxu0 0
    %1115 = vmatpush1.bf16.msra.mxu0 %v1079
    %1116 = vmatprep.subr.bf16.mxu0 0
    %1117 = vmatpush1.bf16.msra.mxu0 %v1080
    %1118 = vmatprep.subr.bf16.mxu0 0
    %1119 = vmatpush1.bf16.msra.mxu0 %v1081
    %1120 = vmatprep.subr.bf16.mxu0 0
    %1121 = vmatpush1.bf16.msra.mxu0 %v1082
    %1122 = vmatprep.subr.bf16.mxu0 0
    %1123 = vmatpush1.bf16.msra.mxu0 %v1083
    %1124 = vmatprep.subr.bf16.mxu0 0
    %1125 = vmatpush1.bf16.msra.mxu0 %v1084
    %1126 = vmatprep.subr.bf16.mxu0 0
    %1127 = vmatpush1.bf16.msra.mxu0 %v1085
    %1128 = vmatprep.subr.bf16.mxu0 0
    %1129 = vmatpush1.bf16.msra.mxu0 %v1086
    %1130 = vmatprep.subr.bf16.mxu0 0
    %1131 = vmatpush1.bf16.msra.mxu0 %v1087
    %1132 = vmatprep.subr.bf16.mxu0 0
    %1133 = vmatpush1.bf16.msra.mxu0 %v1088
    %1134 = vmatprep.subr.bf16.mxu0 0
    %1135 = vmatpush1.bf16.msra.mxu0 %v1089
    %1136 = vmatprep.subr.bf16.mxu0 0
    %1137 = vmatpush1.bf16.msra.mxu0 %v1090
    %1138 = vmatprep.subr.bf16.mxu0 0
    %1139 = vmatpush1.bf16.msra.mxu0 %v1091
    %1140 = vmatprep.mubr.bf16.mxu0 %v978
    %1141 = vmatmul.mubr.bf16.gmra.mrb[0].mxu0 %v977
    %v1142 = vpop.f32.mrb[0].mxu0
    %v1143 = vadd.f32 %v1011, %v1142
    %v1144 = vpop.f32.mrb[0].mxu0
    %v1145 = vpop.f32.mrb[0].mxu0
    %v1146 = vpop.f32.mrb[0].mxu0
    %1147 = vdwg.mxu0
    %v1148 = vmax.f32 %v1143, 0.0
    %v1149 = vpack.c.bf16 %v1148, %v1148
    %v1150 = vld [vmem:[%s5] sm:$0xf]
    %v1151 = vld [vmem:[%s5 + $0x4] sm:$0xf]
    %v1152 = vld [vmem:[%s5 + $0x8] sm:$0xf]
    %v1153 = vld [vmem:[%s5 + $0xc] sm:$0xf]
    %v1154 = vld [vmem:[%s5 + $0x10] sm:$0xf]
    %v1155 = vld [vmem:[%s5 + $0x14] sm:$0xf]
    %v1156 = vld [vmem:[%s5 + $0x18] sm:$0xf]
    %v1157 = vld [vmem:[%s5 + $0x1c] sm:$0xf]
    %v1158 = vld [vmem:[%s5 + $0x20] sm:$0xf]
    %v1159 = vld [vmem:[%s5 + $0x24] sm:$0xf]
    %v1160 = vld [vmem:[%s5 + $0x28] sm:$0xf]
    %v1161 = vld [vmem:[%s5 + $0x2c] sm:$0xf]
    %v1162 = vld [vmem:[%s5 + $0x30] sm:$0xf]
    %v1163 = vld [vmem:[%s5 + $0x34] sm:$0xf]
    %v1164 = vld [vmem:[%s5 + $0x38] sm:$0xf]
    %v1165 = vld [vmem:[%s5 + $0x3c] sm:$0xf]
    %v1166 = vld [vmem:[%s6] sm:$0x1]
    %v1183 = vunpack.c.l.b16 %v1150
    %v1184 = vunpack.c.l.b16 %v1151
    %v1185 = vunpack.c.l.b16 %v1152
    %v1186 = vunpack.c.l.b16 %v1153
    %v1187 = vunpack.c.l.b16 %v1154
    %v1188 = vunpack.c.l.b16 %v1155
    %v1189 = vunpack.c.l.b16 %v1156
    %v1190 = vunpack.c.l.b16 %v1157
    %v1191 = vunpack.c.l.b16 %v1158
    %v1192 = vunpack.c.l.b16 %v1159
    %v1193 = vunpack.c.l.b16 %v1160
    %v1194 = vunpack.c.l.b16 %v1161
    %v1195 = vunpack.c.l.b16 %v1162
    %v1196 = vunpack.c.l.b16 %v1163
    %v1197 = vunpack.c.l.b16 %v1164
    %v1198 = vunpack.c.l.b16 %v1165
    %v1199 = vpack.c.b16 %v1184, %v1183
    %v1200 = vpack.c.b16 %v1186, %v1185
    %v1201 = vpack.c.b16 %v1188, %v1187
    %v1202 = vpack.c.b16 %v1190, %v1189
    %v1203 = vpack.c.b16 %v1192, %v1191
    %v1204 = vpack.c.b16 %v1194, %v1193
    %v1205 = vpack.c.b16 %v1196, %v1195
    %v1206 = vpack.c.b16 %v1198, %v1197
    %1215 = vmatprep.subr.bf16.mxu0 0
    %1216 = vmatpush1.bf16.msra.mxu0 %v1199
    %1217 = vmatprep.subr.bf16.mxu0 0
    %1218 = vmatpush1.bf16.msra.mxu0 %v1200
    %1219 = vmatprep.subr.bf16.mxu0 0
    %1220 = vmatpush1.bf16.msra.mxu0 %v1201
    %1221 = vmatprep.subr.bf16.mxu0 0
    %1222 = vmatpush1.bf16.msra.mxu0 %v1202
    %1223 = vmatprep.subr.bf16.mxu0 0
    %1224 = vmatpush1.bf16.msra.mxu0 %v1203
    %1225 = vmatprep.subr.bf16.mxu0 0
    %1226 = vmatpush1.bf16.msra.mxu0 %v1204
    %1227 = vmatprep.subr.bf16.mxu0 0
    %1228 = vmatpush1.bf16.msra.mxu0 %v1205
    %1229 = vmatprep.subr.bf16.mxu0 0
    %1230 = vmatpush1.bf16.msra.mxu0 %v1206
    %1231 = vmatprep.subr.bf16.mxu0 0
    %1232 = vmatpush1.bf16.msra.mxu0 0
    %1233 = vmatprep.subr.bf16.mxu0 0
    %1234 = vmatpush1.bf16.msra.mxu0 0
    %1235 = vmatprep.subr.bf16.mxu0 0
    %1236 = vmatpush1.bf16.msra.mxu0 0
    %1237 = vmatprep.subr.bf16.mxu0 0
    %1238 = vmatpush1.bf16.msra.mxu0 0
    %1239 = vmatprep.subr.bf16.mxu0 0
    %1240 = vmatpush1.bf16.msra.mxu0 0
    %1241 = vmatprep.subr.bf16.mxu0 0
    %1242 = vmatpush1.bf16.msra.mxu0 0
    %1243 = vmatprep.subr.bf16.mxu0 0
    %1244 = vmatpush1.bf16.msra.mxu0 0
    %1245 = vmatprep.subr.bf16.mxu0 0
    %1246 = vmatpush1.bf16.msra.mxu0 0
    %1247 = vmatprep.mubr.bf16.mxu0 0
    %1248 = vmatmul.mubr.bf16.gmra.mrb[0].mxu0 %v1149
    %v1249 = vpop.f32.mrb[0].mxu0
    %v1250 = vadd.f32 %v1166, %v1249
    %v1251 = vpop.f32.mrb[0].mxu0
    %v1252 = vpop.f32.mrb[0].mxu0
    %v1253 = vpop.f32.mrb[0].mxu0
    %1254 = vdwg.mxu0
    %vm1255 = vcmask 516096
    %1256 = vst.msk [vmem:[#allocation20] sm:$0x1] %vm1255, %v1250
    %v1257 = vpack.c.bf16 %v1250, %v1250
    %v1258 = vld [vmem:[#allocation8] sm:$0xff]
    %v1259 = vld [vmem:[#allocation8 + $0x8] sm:$0xff]
    %v1260 = vld [vmem:[#allocation8 + $0x10] sm:$0xff]
    %v1261 = vld [vmem:[#allocation8 + $0x18] sm:$0xff]
    %v1262 = vld [vmem:[#allocation8 + $0x20] sm:$0xff]
    %v1263 = vld [vmem:[#allocation8 + $0x28] sm:$0xff]
    %v1264 = vld [vmem:[#allocation8 + $0x30] sm:$0xff]
    %v1265 = vld [vmem:[#allocation8 + $0x38] sm:$0xff]
    %v1266 = vld [vmem:[#allocation8 + $0x40] sm:$0xff]
    %v1267 = vld [vmem:[#allocation8 + $0x48] sm:$0xff]
    %v1268 = vld [vmem:[#allocation8 + $0x50] sm:$0xff]
    %v1269 = vld [vmem:[#allocation8 + $0x58] sm:$0xff]
    %v1270 = vld [vmem:[#allocation8 + $0x60] sm:$0xff]
    %v1271 = vld [vmem:[#allocation8 + $0x68] sm:$0xff]
    %v1272 = vld [vmem:[#allocation8 + $0x70] sm:$0xff]
    %v1273 = vld [vmem:[#allocation8 + $0x78] sm:$0xff]
    %v1274 = vld [vmem:[#allocation8 + $0x80] sm:$0xff]
    %v1275 = vld [vmem:[#allocation8 + $0x88] sm:$0xff]
    %v1276 = vld [vmem:[#allocation8 + $0x90] sm:$0xff]
    %v1277 = vld [vmem:[#allocation8 + $0x98] sm:$0xff]
    %v1278 = vld [vmem:[#allocation8 + $0xa0] sm:$0xff]
    %v1279 = vld [vmem:[#allocation8 + $0xa8] sm:$0xff]
    %v1280 = vld [vmem:[#allocation8 + $0xb0] sm:$0xff]
    %v1281 = vld [vmem:[#allocation8 + $0xb8] sm:$0xff]
    %v1282 = vld [vmem:[#allocation8 + $0xc0] sm:$0xff]
    %v1283 = vld [vmem:[#allocation8 + $0xc8] sm:$0xff]
    %v1284 = vld [vmem:[#allocation8 + $0xd0] sm:$0xff]
    %v1285 = vld [vmem:[#allocation8 + $0xd8] sm:$0xff]
    %v1286 = vld [vmem:[#allocation8 + $0xe0] sm:$0xff]
    %v1287 = vld [vmem:[#allocation8 + $0xe8] sm:$0xff]
    %v1288 = vld [vmem:[#allocation8 + $0xf0] sm:$0xff]
    %v1289 = vld [vmem:[#allocation8 + $0xf8] sm:$0xff]
    %v1290 = vld [vmem:[#allocation8 + $0x100] sm:$0xff]
    %v1291 = vld [vmem:[#allocation8 + $0x108] sm:$0xff]
    %v1292 = vld [vmem:[#allocation8 + $0x110] sm:$0xff]
    %v1293 = vld [vmem:[#allocation8 + $0x118] sm:$0xff]
    %v1294 = vld [vmem:[#allocation8 + $0x120] sm:$0xff]
    %v1295 = vld [vmem:[#allocation8 + $0x128] sm:$0xff]
    %v1296 = vld [vmem:[#allocation8 + $0x130] sm:$0xff]
    %v1297 = vld [vmem:[#allocation8 + $0x138] sm:$0xff]
    %v1298 = vld [vmem:[#allocation8 + $0x140] sm:$0xff]
    %v1299 = vld [vmem:[#allocation8 + $0x148] sm:$0xff]
    %v1300 = vld [vmem:[#allocation8 + $0x150] sm:$0xff]
    %v1301 = vld [vmem:[#allocation8 + $0x158] sm:$0xff]
    %v1302 = vld [vmem:[#allocation8 + $0x160] sm:$0xff]
    %v1303 = vld [vmem:[#allocation8 + $0x168] sm:$0xff]
    %v1304 = vld [vmem:[#allocation8 + $0x170] sm:$0xff]
    %v1305 = vld [vmem:[#allocation8 + $0x178] sm:$0xff]
    %v1306 = vld [vmem:[%s9] sm:$0xff]
    %v1307 = vld [vmem:[%s9 + $0x8] sm:$0xf]
    %v1356 = vunpack.c.l.b16 %v1258
    %v1357 = vunpack.c.h.b16 %v1258
    %v1358 = vunpack.c.l.b16 %v1259
    %v1359 = vunpack.c.h.b16 %v1259
    %v1360 = vunpack.c.l.b16 %v1260
    %v1361 = vunpack.c.h.b16 %v1260
    %v1362 = vunpack.c.l.b16 %v1261
    %v1363 = vunpack.c.h.b16 %v1261
    %v1364 = vunpack.c.l.b16 %v1262
    %v1365 = vunpack.c.h.b16 %v1262
    %v1366 = vunpack.c.l.b16 %v1263
    %v1367 = vunpack.c.h.b16 %v1263
    %v1368 = vunpack.c.l.b16 %v1264
    %v1369 = vunpack.c.h.b16 %v1264
    %v1370 = vunpack.c.l.b16 %v1265
    %v1371 = vunpack.c.h.b16 %v1265
    %v1372 = vunpack.c.l.b16 %v1266
    %v1373 = vunpack.c.h.b16 %v1266
    %v1374 = vunpack.c.l.b16 %v1267
    %v1375 = vunpack.c.h.b16 %v1267
    %v1376 = vunpack.c.l.b16 %v1268
    %v1377 = vunpack.c.h.b16 %v1268
    %v1378 = vunpack.c.l.b16 %v1269
    %v1379 = vunpack.c.h.b16 %v1269
    %v1380 = vunpack.c.l.b16 %v1270
    %v1381 = vunpack.c.h.b16 %v1270
    %v1382 = vunpack.c.l.b16 %v1271
    %v1383 = vunpack.c.h.b16 %v1271
    %v1384 = vunpack.c.l.b16 %v1272
    %v1385 = vunpack.c.h.b16 %v1272
    %v1386 = vunpack.c.l.b16 %v1273
    %v1387 = vunpack.c.h.b16 %v1273
    %v1388 = vunpack.c.l.b16 %v1274
    %v1389 = vunpack.c.h.b16 %v1274
    %v1390 = vunpack.c.l.b16 %v1275
    %v1391 = vunpack.c.h.b16 %v1275
    %v1392 = vunpack.c.l.b16 %v1276
    %v1393 = vunpack.c.h.b16 %v1276
    %v1394 = vunpack.c.l.b16 %v1277
    %v1395 = vunpack.c.h.b16 %v1277
    %v1396 = vunpack.c.l.b16 %v1278
    %v1397 = vunpack.c.h.b16 %v1278
    %v1398 = vunpack.c.l.b16 %v1279
    %v1399 = vunpack.c.h.b16 %v1279
    %v1400 = vunpack.c.l.b16 %v1280
    %v1401 = vunpack.c.h.b16 %v1280
    %v1402 = vunpack.c.l.b16 %v1281
    %v1403 = vunpack.c.h.b16 %v1281
    %v1404 = vunpack.c.l.b16 %v1282
    %v1405 = vunpack.c.h.b16 %v1282
    %v1406 = vunpack.c.l.b16 %v1283
    %v1407 = vunpack.c.h.b16 %v1283
    %v1408 = vunpack.c.l.b16 %v1284
    %v1409 = vunpack.c.h.b16 %v1284
    %v1410 = vunpack.c.l.b16 %v1285
    %v1411 = vunpack.c.h.b16 %v1285
    %v1412 = vunpack.c.l.b16 %v1286
    %v1413 = vunpack.c.h.b16 %v1286
    %v1414 = vunpack.c.l.b16 %v1287
    %v1415 = vunpack.c.h.b16 %v1287
    %v1416 = vunpack.c.l.b16 %v1288
    %v1417 = vunpack.c.h.b16 %v1288
    %v1418 = vunpack.c.l.b16 %v1289
    %v1419 = vunpack.c.h.b16 %v1289
    %v1420 = vunpack.c.l.b16 %v1290
    %v1421 = vunpack.c.h.b16 %v1290
    %v1422 = vunpack.c.l.b16 %v1291
    %v1423 = vunpack.c.h.b16 %v1291
    %v1424 = vunpack.c.l.b16 %v1292
    %v1425 = vunpack.c.h.b16 %v1292
    %v1426 = vunpack.c.l.b16 %v1293
    %v1427 = vunpack.c.h.b16 %v1293
    %v1428 = vunpack.c.l.b16 %v1294
    %v1429 = vunpack.c.h.b16 %v1294
    %v1430 = vunpack.c.l.b16 %v1295
    %v1431 = vunpack.c.h.b16 %v1295
    %v1432 = vunpack.c.l.b16 %v1296
    %v1433 = vunpack.c.h.b16 %v1296
    %v1434 = vunpack.c.l.b16 %v1297
    %v1435 = vunpack.c.h.b16 %v1297
    %v1436 = vunpack.c.l.b16 %v1298
    %v1437 = vunpack.c.h.b16 %v1298
    %v1438 = vunpack.c.l.b16 %v1299
    %v1439 = vunpack.c.h.b16 %v1299
    %v1440 = vunpack.c.l.b16 %v1300
    %v1441 = vunpack.c.h.b16 %v1300
    %v1442 = vunpack.c.l.b16 %v1301
    %v1443 = vunpack.c.h.b16 %v1301
    %v1444 = vunpack.c.l.b16 %v1302
    %v1445 = vunpack.c.h.b16 %v1302
    %v1446 = vunpack.c.l.b16 %v1303
    %v1447 = vunpack.c.h.b16 %v1303
    %v1448 = vunpack.c.l.b16 %v1304
    %v1449 = vunpack.c.h.b16 %v1304
    %v1450 = vunpack.c.l.b16 %v1305
    %v1451 = vunpack.c.h.b16 %v1305
    %v1452 = vpack.c.b16 %v1368, %v1356
    %v1453 = vpack.c.b16 %v1369, %v1357
    %v1454 = vpack.c.b16 %v1370, %v1358
    %v1455 = vpack.c.b16 %v1371, %v1359
    %v1456 = vpack.c.b16 %v1372, %v1360
    %v1457 = vpack.c.b16 %v1373, %v1361
    %v1458 = vpack.c.b16 %v1374, %v1362
    %v1459 = vpack.c.b16 %v1375, %v1363
    %v1460 = vpack.c.b16 %v1376, %v1364
    %v1461 = vpack.c.b16 %v1377, %v1365
    %v1462 = vpack.c.b16 %v1378, %v1366
    %v1463 = vpack.c.b16 %v1379, %v1367
    %v1464 = vpack.c.b16 %v1392, %v1380
    %v1465 = vpack.c.b16 %v1393, %v1381
    %v1466 = vpack.c.b16 %v1394, %v1382
    %v1467 = vpack.c.b16 %v1395, %v1383
    %v1468 = vpack.c.b16 %v1396, %v1384
    %v1469 = vpack.c.b16 %v1397, %v1385
    %v1470 = vpack.c.b16 %v1398, %v1386
    %v1471 = vpack.c.b16 %v1399, %v1387
    %v1472 = vpack.c.b16 %v1400, %v1388
    %v1473 = vpack.c.b16 %v1401, %v1389
    %v1474 = vpack.c.b16 %v1402, %v1390
    %v1475 = vpack.c.b16 %v1403, %v1391
    %v1476 = vpack.c.b16 %v1416, %v1404
    %v1477 = vpack.c.b16 %v1417, %v1405
    %v1478 = vpack.c.b16 %v1418, %v1406
    %v1479 = vpack.c.b16 %v1419, %v1407
    %v1480 = vpack.c.b16 %v1420, %v1408
    %v1481 = vpack.c.b16 %v1421, %v1409
    %v1482 = vpack.c.b16 %v1422, %v1410
    %v1483 = vpack.c.b16 %v1423, %v1411
    %v1484 = vpack.c.b16 %v1424, %v1412
    %v1485 = vpack.c.b16 %v1425, %v1413
    %v1486 = vpack.c.b16 %v1426, %v1414
    %v1487 = vpack.c.b16 %v1427, %v1415
    %v1488 = vpack.c.b16 %v1440, %v1428
    %v1489 = vpack.c.b16 %v1441, %v1429
    %v1490 = vpack.c.b16 %v1442, %v1430
    %v1491 = vpack.c.b16 %v1443, %v1431
    %v1492 = vpack.c.b16 %v1444, %v1432
    %v1493 = vpack.c.b16 %v1445, %v1433
    %v1494 = vpack.c.b16 %v1446, %v1434
    %v1495 = vpack.c.b16 %v1447, %v1435
    %v1496 = vpack.c.b16 %v1448, %v1436
    %v1497 = vpack.c.b16 %v1449, %v1437
    %v1498 = vpack.c.b16 %v1450, %v1438
    %v1499 = vpack.c.b16 %v1451, %v1439
    %v1550 = vlaneseq
    %v1551 = vshrl.u32 %v1550, 7
    %v1552 = vsub.s32 0, %v1551
    %v1553 = vrot.slane %v1306, %v1552
    %v1554 = vlaneseq
    %v1555 = vshrl.u32 %v1554, 7
    %v1556 = vsub.s32 1, %v1555
    %v1557 = vrot.slane %v1306, %v1556
    %v1558 = vlaneseq
    %v1559 = vshrl.u32 %v1558, 7
    %v1560 = vsub.s32 2, %v1559
    %v1561 = vrot.slane %v1306, %v1560
    %v1562 = vlaneseq
    %v1563 = vshrl.u32 %v1562, 7
    %v1564 = vsub.s32 3, %v1563
    %v1565 = vrot.slane %v1306, %v1564
    %v1566 = vlaneseq
    %v1567 = vshrl.u32 %v1566, 7
    %v1568 = vsub.s32 4, %v1567
    %v1569 = vrot.slane %v1306, %v1568
    %v1570 = vlaneseq
    %v1571 = vshrl.u32 %v1570, 7
    %v1572 = vsub.s32 5, %v1571
    %v1573 = vrot.slane %v1306, %v1572
    %v1574 = vlaneseq
    %v1575 = vshrl.u32 %v1574, 7
    %v1576 = vsub.s32 6, %v1575
    %v1577 = vrot.slane %v1306, %v1576
    %v1578 = vlaneseq
    %v1579 = vshrl.u32 %v1578, 7
    %v1580 = vsub.s32 7, %v1579
    %v1581 = vrot.slane %v1306, %v1580
    %v1582 = vlaneseq
    %v1583 = vshrl.u32 %v1582, 7
    %v1584 = vsub.s32 0, %v1583
    %v1585 = vrot.slane %v1307, %v1584
    %v1586 = vlaneseq
    %v1587 = vshrl.u32 %v1586, 7
    %v1588 = vsub.s32 1, %v1587
    %v1589 = vrot.slane %v1307, %v1588
    %v1590 = vlaneseq
    %v1591 = vshrl.u32 %v1590, 7
    %v1592 = vsub.s32 2, %v1591
    %v1593 = vrot.slane %v1307, %v1592
    %v1594 = vlaneseq
    %v1595 = vshrl.u32 %v1594, 7
    %v1596 = vsub.s32 3, %v1595
    %v1597 = vrot.slane %v1307, %v1596
    %vm1610 = vcmask 523264
    %v1612 = vsel %vm1610, %v1257, 0
    %1614 = vmatprep.subr.bf16.mxu0 %v1453
    %1615 = vmatpush1.bf16.msra.mxu0 %v1452
    %1616 = vmatprep.subr.bf16.mxu0 %v1465
    %1617 = vmatpush1.bf16.msra.mxu0 %v1464
    %1618 = vmatprep.subr.bf16.mxu0 %v1477
    %1619 = vmatpush1.bf16.msra.mxu0 %v1476
    %1620 = vmatprep.subr.bf16.mxu0 %v1489
    %1621 = vmatpush1.bf16.msra.mxu0 %v1488
    %1622 = vmatprep.subr.bf16.mxu0 0
    %1623 = vmatpush1.bf16.msra.mxu0 0
    %1624 = vmatprep.subr.bf16.mxu0 0
    %1625 = vmatpush1.bf16.msra.mxu0 0
    %1626 = vmatprep.subr.bf16.mxu0 0
    %1627 = vmatpush1.bf16.msra.mxu0 0
    %1628 = vmatprep.subr.bf16.mxu0 0
    %1629 = vmatpush1.bf16.msra.mxu0 0
    %1630 = vmatprep.subr.bf16.mxu0 0
    %1631 = vmatpush1.bf16.msra.mxu0 0
    %1632 = vmatprep.subr.bf16.mxu0 0
    %1633 = vmatpush1.bf16.msra.mxu0 0
    %1634 = vmatprep.subr.bf16.mxu0 0
    %1635 = vmatpush1.bf16.msra.mxu0 0
    %1636 = vmatprep.subr.bf16.mxu0 0
    %1637 = vmatpush1.bf16.msra.mxu0 0
    %1638 = vmatprep.subr.bf16.mxu0 0
    %1639 = vmatpush1.bf16.msra.mxu0 0
    %1640 = vmatprep.subr.bf16.mxu0 0
    %1641 = vmatpush1.bf16.msra.mxu0 0
    %1642 = vmatprep.subr.bf16.mxu0 0
    %1643 = vmatpush1.bf16.msra.mxu0 0
    %1644 = vmatprep.subr.bf16.mxu0 0
    %1645 = vmatpush1.bf16.msra.mxu0 0
    %1646 = vmatprep.mubr.bf16.mxu0 0
    %1647 = vmatmul.mubr.bf16.gmra.mrb[0].mxu0 %v1612
    %v1648 = vpop.f32.mrb[0].mxu0
    %v1649 = vadd.f32 %v1553, %v1648
    %v1650 = vpop.f32.mrb[0].mxu0
    %v1651 = vadd.f32 %v1557, %v1650
    %v1652 = vpop.f32.mrb[0].mxu0
    %v1653 = vpop.f32.mrb[0].mxu0
    %1654 = vdwg.mxu0
    %1655 = vmatprep.subr.bf16.mxu0 %v1455
    %1656 = vmatpush1.bf16.msra.mxu0 %v1454
    %1657 = vmatprep.subr.bf16.mxu0 %v1467
    %1658 = vmatpush1.bf16.msra.mxu0 %v1466
    %1659 = vmatprep.subr.bf16.mxu0 %v1479
    %1660 = vmatpush1.bf16.msra.mxu0 %v1478
    %1661 = vmatprep.subr.bf16.mxu0 %v1491
    %1662 = vmatpush1.bf16.msra.mxu0 %v1490
    %1663 = vmatprep.subr.bf16.mxu0 0
    %1664 = vmatpush1.bf16.msra.mxu0 0
    %1665 = vmatprep.subr.bf16.mxu0 0
    %1666 = vmatpush1.bf16.msra.mxu0 0
    %1667 = vmatprep.subr.bf16.mxu0 0
    %1668 = vmatpush1.bf16.msra.mxu0 0
    %1669 = vmatprep.subr.bf16.mxu0 0
    %1670 = vmatpush1.bf16.msra.mxu0 0
    %1671 = vmatprep.subr.bf16.mxu0 0
    %1672 = vmatpush1.bf16.msra.mxu0 0
    %1673 = vmatprep.subr.bf16.mxu0 0
    %1674 = vmatpush1.bf16.msra.mxu0 0
    %1675 = vmatprep.subr.bf16.mxu0 0
    %1676 = vmatpush1.bf16.msra.mxu0 0
    %1677 = vmatprep.subr.bf16.mxu0 0
    %1678 = vmatpush1.bf16.msra.mxu0 0
    %1679 = vmatprep.subr.bf16.mxu0 0
    %1680 = vmatpush1.bf16.msra.mxu0 0
    %1681 = vmatprep.subr.bf16.mxu0 0
    %1682 = vmatpush1.bf16.msra.mxu0 0
    %1683 = vmatprep.subr.bf16.mxu0 0
    %1684 = vmatpush1.bf16.msra.mxu0 0
    %1685 = vmatprep.subr.bf16.mxu0 0
    %1686 = vmatpush1.bf16.msra.mxu0 0
    %1687 = vmatprep.mubr.bf16.mxu0 0
    %1688 = vmatmul.mubr.bf16.gmra.mrb[0].mxu0 %v1612
    %v1689 = vpop.f32.mrb[0].mxu0
    %v1690 = vadd.f32 %v1561, %v1689
    %v1691 = vpop.f32.mrb[0].mxu0
    %v1692 = vadd.f32 %v1565, %v1691
    %v1693 = vpop.f32.mrb[0].mxu0
    %v1694 = vpop.f32.mrb[0].mxu0
    %1695 = vdwg.mxu0
    %1696 = vmatprep.subr.bf16.mxu0 %v1457
    %1697 = vmatpush1.bf16.msra.mxu0 %v1456
    %1698 = vmatprep.subr.bf16.mxu0 %v1469
    %1699 = vmatpush1.bf16.msra.mxu0 %v1468
    %1700 = vmatprep.subr.bf16.mxu0 %v1481
    %1701 = vmatpush1.bf16.msra.mxu0 %v1480
    %1702 = vmatprep.subr.bf16.mxu0 %v1493
    %1703 = vmatpush1.bf16.msra.mxu0 %v1492
    %1704 = vmatprep.subr.bf16.mxu0 0
    %1705 = vmatpush1.bf16.msra.mxu0 0
    %1706 = vmatprep.subr.bf16.mxu0 0
    %1707 = vmatpush1.bf16.msra.mxu0 0
    %1708 = vmatprep.subr.bf16.mxu0 0
    %1709 = vmatpush1.bf16.msra.mxu0 0
    %1710 = vmatprep.subr.bf16.mxu0 0
    %1711 = vmatpush1.bf16.msra.mxu0 0
    %1712 = vmatprep.subr.bf16.mxu0 0
    %1713 = vmatpush1.bf16.msra.mxu0 0
    %1714 = vmatprep.subr.bf16.mxu0 0
    %1715 = vmatpush1.bf16.msra.mxu0 0
    %1716 = vmatprep.subr.bf16.mxu0 0
    %1717 = vmatpush1.bf16.msra.mxu0 0
    %1718 = vmatprep.subr.bf16.mxu0 0
    %1719 = vmatpush1.bf16.msra.mxu0 0
    %1720 = vmatprep.subr.bf16.mxu0 0
    %1721 = vmatpush1.bf16.msra.mxu0 0
    %1722 = vmatprep.subr.bf16.mxu0 0
    %1723 = vmatpush1.bf16.msra.mxu0 0
    %1724 = vmatprep.subr.bf16.mxu0 0
    %1725 = vmatpush1.bf16.msra.mxu0 0
    %1726 = vmatprep.subr.bf16.mxu0 0
    %1727 = vmatpush1.bf16.msra.mxu0 0
    %1728 = vmatprep.mubr.bf16.mxu0 0
    %1729 = vmatmul.mubr.bf16.gmra.mrb[0].mxu0 %v1612
    %v1730 = vpop.f32.mrb[0].mxu0
    %v1731 = vadd.f32 %v1569, %v1730
    %v1732 = vpop.f32.mrb[0].mxu0
    %v1733 = vadd.f32 %v1573, %v1732
    %v1734 = vpop.f32.mrb[0].mxu0
    %v1735 = vpop.f32.mrb[0].mxu0
    %1736 = vdwg.mxu0
    %1737 = vmatprep.subr.bf16.mxu0 %v1459
    %1738 = vmatpush1.bf16.msra.mxu0 %v1458
    %1739 = vmatprep.subr.bf16.mxu0 %v1471
    %1740 = vmatpush1.bf16.msra.mxu0 %v1470
    %1741 = vmatprep.subr.bf16.mxu0 %v1483
    %1742 = vmatpush1.bf16.msra.mxu0 %v1482
    %1743 = vmatprep.subr.bf16.mxu0 %v1495
    %1744 = vmatpush1.bf16.msra.mxu0 %v1494
    %1745 = vmatprep.subr.bf16.mxu0 0
    %1746 = vmatpush1.bf16.msra.mxu0 0
    %1747 = vmatprep.subr.bf16.mxu0 0
    %1748 = vmatpush1.bf16.msra.mxu0 0
    %1749 = vmatprep.subr.bf16.mxu0 0
    %1750 = vmatpush1.bf16.msra.mxu0 0
    %1751 = vmatprep.subr.bf16.mxu0 0
    %1752 = vmatpush1.bf16.msra.mxu0 0
    %1753 = vmatprep.subr.bf16.mxu0 0
    %1754 = vmatpush1.bf16.msra.mxu0 0
    %1755 = vmatprep.subr.bf16.mxu0 0
    %1756 = vmatpush1.bf16.msra.mxu0 0
    %1757 = vmatprep.subr.bf16.mxu0 0
    %1758 = vmatpush1.bf16.msra.mxu0 0
    %1759 = vmatprep.subr.bf16.mxu0 0
    %1760 = vmatpush1.bf16.msra.mxu0 0
    %1761 = vmatprep.subr.bf16.mxu0 0
    %1762 = vmatpush1.bf16.msra.mxu0 0
    %1763 = vmatprep.subr.bf16.mxu0 0
    %1764 = vmatpush1.bf16.msra.mxu0 0
    %1765 = vmatprep.subr.bf16.mxu0 0
    %1766 = vmatpush1.bf16.msra.mxu0 0
    %1767 = vmatprep.subr.bf16.mxu0 0
    %1768 = vmatpush1.bf16.msra.mxu0 0
    %1769 = vmatprep.mubr.bf16.mxu0 0
    %1770 = vmatmul.mubr.bf16.gmra.mrb[0].mxu0 %v1612
    %v1771 = vpop.f32.mrb[0].mxu0
    %v1772 = vadd.f32 %v1577, %v1771
    %v1773 = vpop.f32.mrb[0].mxu0
    %v1774 = vadd.f32 %v1581, %v1773
    %v1775 = vpop.f32.mrb[0].mxu0
    %v1776 = vpop.f32.mrb[0].mxu0
    %1777 = vdwg.mxu0
    %1778 = vmatprep.subr.bf16.mxu0 %v1461
    %1779 = vmatpush1.bf16.msra.mxu0 %v1460
    %1780 = vmatprep.subr.bf16.mxu0 %v1473
    %1781 = vmatpush1.bf16.msra.mxu0 %v1472
    %1782 = vmatprep.subr.bf16.mxu0 %v1485
    %1783 = vmatpush1.bf16.msra.mxu0 %v1484
    %1784 = vmatprep.subr.bf16.mxu0 %v1497
    %1785 = vmatpush1.bf16.msra.mxu0 %v1496
    %1786 = vmatprep.subr.bf16.mxu0 0
    %1787 = vmatpush1.bf16.msra.mxu0 0
    %1788 = vmatprep.subr.bf16.mxu0 0
    %1789 = vmatpush1.bf16.msra.mxu0 0
    %1790 = vmatprep.subr.bf16.mxu0 0
    %1791 = vmatpush1.bf16.msra.mxu0 0
    %1792 = vmatprep.subr.bf16.mxu0 0
    %1793 = vmatpush1.bf16.msra.mxu0 0
    %1794 = vmatprep.subr.bf16.mxu0 0
    %1795 = vmatpush1.bf16.msra.mxu0 0
    %1796 = vmatprep.subr.bf16.mxu0 0
    %1797 = vmatpush1.bf16.msra.mxu0 0
    %1798 = vmatprep.subr.bf16.mxu0 0
    %1799 = vmatpush1.bf16.msra.mxu0 0
    %1800 = vmatprep.subr.bf16.mxu0 0
    %1801 = vmatpush1.bf16.msra.mxu0 0
    %1802 = vmatprep.subr.bf16.mxu0 0
    %1803 = vmatpush1.bf16.msra.mxu0 0
    %1804 = vmatprep.subr.bf16.mxu0 0
    %1805 = vmatpush1.bf16.msra.mxu0 0
    %1806 = vmatprep.subr.bf16.mxu0 0
    %1807 = vmatpush1.bf16.msra.mxu0 0
    %1808 = vmatprep.subr.bf16.mxu0 0
    %1809 = vmatpush1.bf16.msra.mxu0 0
    %1810 = vmatprep.mubr.bf16.mxu0 0
    %1811 = vmatmul.mubr.bf16.gmra.mrb[0].mxu0 %v1612
    %v1812 = vpop.f32.mrb[0].mxu0
    %v1813 = vadd.f32 %v1585, %v1812
    %v1814 = vpop.f32.mrb[0].mxu0
    %v1815 = vadd.f32 %v1589, %v1814
    %v1816 = vpop.f32.mrb[0].mxu0
    %v1817 = vpop.f32.mrb[0].mxu0
    %1818 = vdwg.mxu0
    %1819 = vmatprep.subr.bf16.mxu0 %v1463
    %1820 = vmatpush1.bf16.msra.mxu0 %v1462
    %1821 = vmatprep.subr.bf16.mxu0 %v1475
    %1822 = vmatpush1.bf16.msra.mxu0 %v1474
    %1823 = vmatprep.subr.bf16.mxu0 %v1487
    %1824 = vmatpush1.bf16.msra.mxu0 %v1486
    %1825 = vmatprep.subr.bf16.mxu0 %v1499
    %1826 = vmatpush1.bf16.msra.mxu0 %v1498
    %1827 = vmatprep.subr.bf16.mxu0 0
    %1828 = vmatpush1.bf16.msra.mxu0 0
    %1829 = vmatprep.subr.bf16.mxu0 0
    %1830 = vmatpush1.bf16.msra.mxu0 0
    %1831 = vmatprep.subr.bf16.mxu0 0
    %1832 = vmatpush1.bf16.msra.mxu0 0
    %1833 = vmatprep.subr.bf16.mxu0 0
    %1834 = vmatpush1.bf16.msra.mxu0 0
    %1835 = vmatprep.subr.bf16.mxu0 0
    %1836 = vmatpush1.bf16.msra.mxu0 0
    %1837 = vmatprep.subr.bf16.mxu0 0
    %1838 = vmatpush1.bf16.msra.mxu0 0
    %1839 = vmatprep.subr.bf16.mxu0 0
    %1840 = vmatpush1.bf16.msra.mxu0 0
    %1841 = vmatprep.subr.bf16.mxu0 0
    %1842 = vmatpush1.bf16.msra.mxu0 0
    %1843 = vmatprep.subr.bf16.mxu0 0
    %1844 = vmatpush1.bf16.msra.mxu0 0
    %1845 = vmatprep.subr.bf16.mxu0 0
    %1846 = vmatpush1.bf16.msra.mxu0 0
    %1847 = vmatprep.subr.bf16.mxu0 0
    %1848 = vmatpush1.bf16.msra.mxu0 0
    %1849 = vmatprep.subr.bf16.mxu0 0
    %1850 = vmatpush1.bf16.msra.mxu0 0
    %1851 = vmatprep.mubr.bf16.mxu0 0
    %1852 = vmatmul.mubr.bf16.gmra.mrb[0].mxu0 %v1612
    %v1853 = vpop.f32.mrb[0].mxu0
    %v1854 = vadd.f32 %v1593, %v1853
    %v1855 = vpop.f32.mrb[0].mxu0
    %v1856 = vadd.f32 %v1597, %v1855
    %v1857 = vpop.f32.mrb[0].mxu0
    %v1858 = vpop.f32.mrb[0].mxu0
    %1859 = vdwg.mxu0
    %v1860 = vpack.c.bf16 %v961, %v961
    %v1861 = vld [vmem:[#allocation7] sm:$0xff]
    %v1862 = vld [vmem:[#allocation7 + $0x8] sm:$0xff]
    %v1863 = vld [vmem:[#allocation7 + $0x10] sm:$0xff]
    %v1864 = vld [vmem:[#allocation7 + $0x18] sm:$0xff]
    %v1865 = vld [vmem:[#allocation7 + $0x20] sm:$0xff]
    %v1866 = vld [vmem:[#allocation7 + $0x28] sm:$0xff]
    %v1867 = vld [vmem:[#allocation7 + $0x30] sm:$0xff]
    %v1868 = vld [vmem:[#allocation7 + $0x38] sm:$0xff]
    %v1869 = vld [vmem:[#allocation7 + $0x40] sm:$0xff]
    %v1870 = vld [vmem:[#allocation7 + $0x48] sm:$0xff]
    %v1871 = vld [vmem:[#allocation7 + $0x50] sm:$0xff]
    %v1872 = vld [vmem:[#allocation7 + $0x58] sm:$0xff]
    %v1873 = vld [vmem:[#allocation7 + $0x60] sm:$0xff]
    %v1874 = vld [vmem:[#allocation7 + $0x68] sm:$0xff]
    %v1875 = vld [vmem:[#allocation7 + $0x70] sm:$0xff]
    %v1876 = vld [vmem:[#allocation7 + $0x78] sm:$0xff]
    %v1877 = vld [vmem:[#allocation7 + $0x80] sm:$0xff]
    %v1878 = vld [vmem:[#allocation7 + $0x88] sm:$0xff]
    %v1879 = vld [vmem:[#allocation7 + $0x90] sm:$0xff]
    %v1880 = vld [vmem:[#allocation7 + $0x98] sm:$0xff]
    %v1881 = vld [vmem:[#allocation7 + $0xa0] sm:$0xff]
    %v1882 = vld [vmem:[#allocation7 + $0xa8] sm:$0xff]
    %v1883 = vld [vmem:[#allocation7 + $0xb0] sm:$0xff]
    %v1884 = vld [vmem:[#allocation7 + $0xb8] sm:$0xff]
    %v1885 = vld [vmem:[#allocation7 + $0xc0] sm:$0xff]
    %v1886 = vld [vmem:[#allocation7 + $0xc8] sm:$0xff]
    %v1887 = vld [vmem:[#allocation7 + $0xd0] sm:$0xff]
    %v1888 = vld [vmem:[#allocation7 + $0xd8] sm:$0xff]
    %v1889 = vld [vmem:[#allocation7 + $0xe0] sm:$0xff]
    %v1890 = vld [vmem:[#allocation7 + $0xe8] sm:$0xff]
    %v1891 = vld [vmem:[#allocation7 + $0xf0] sm:$0xff]
    %v1892 = vld [vmem:[#allocation7 + $0xf8] sm:$0xff]
    %v1893 = vld [vmem:[#allocation7 + $0x100] sm:$0xff]
    %v1894 = vld [vmem:[#allocation7 + $0x108] sm:$0xff]
    %v1895 = vld [vmem:[#allocation7 + $0x110] sm:$0xff]
    %v1896 = vld [vmem:[#allocation7 + $0x118] sm:$0xff]
    %v1897 = vld [vmem:[#allocation7 + $0x120] sm:$0xff]
    %v1898 = vld [vmem:[#allocation7 + $0x128] sm:$0xff]
    %v1899 = vld [vmem:[#allocation7 + $0x130] sm:$0xff]
    %v1900 = vld [vmem:[#allocation7 + $0x138] sm:$0xff]
    %v1901 = vld [vmem:[#allocation7 + $0x140] sm:$0xff]
    %v1902 = vld [vmem:[#allocation7 + $0x148] sm:$0xff]
    %v1903 = vld [vmem:[#allocation7 + $0x150] sm:$0xff]
    %v1904 = vld [vmem:[#allocation7 + $0x158] sm:$0xff]
    %v1905 = vld [vmem:[#allocation7 + $0x160] sm:$0xff]
    %v1906 = vld [vmem:[#allocation7 + $0x168] sm:$0xff]
    %v1907 = vld [vmem:[#allocation7 + $0x170] sm:$0xff]
    %v1908 = vld [vmem:[#allocation7 + $0x178] sm:$0xff]
    %v1909 = vld [vmem:[#allocation7 + $0x180] sm:$0xff]
    %v1910 = vld [vmem:[#allocation7 + $0x188] sm:$0xff]
    %v1911 = vld [vmem:[#allocation7 + $0x190] sm:$0xff]
    %v1912 = vld [vmem:[#allocation7 + $0x198] sm:$0xff]
    %v1913 = vld [vmem:[#allocation7 + $0x1a0] sm:$0xff]
    %v1914 = vld [vmem:[#allocation7 + $0x1a8] sm:$0xff]
    %v1915 = vld [vmem:[#allocation7 + $0x1b0] sm:$0xff]
    %v1916 = vld [vmem:[#allocation7 + $0x1b8] sm:$0xff]
    %v1917 = vld [vmem:[#allocation7 + $0x1c0] sm:$0xff]
    %v1918 = vld [vmem:[#allocation7 + $0x1c8] sm:$0xff]
    %v1919 = vld [vmem:[#allocation7 + $0x1d0] sm:$0xff]
    %v1920 = vld [vmem:[#allocation7 + $0x1d8] sm:$0xff]
    %v1921 = vld [vmem:[#allocation7 + $0x1e0] sm:$0xff]
    %v1922 = vld [vmem:[#allocation7 + $0x1e8] sm:$0xff]
    %v1923 = vld [vmem:[#allocation7 + $0x1f0] sm:$0xff]
    %v1924 = vld [vmem:[#allocation7 + $0x1f8] sm:$0xff]
    %v1925 = vld [vmem:[#allocation7 + $0x200] sm:$0xff]
    %v1926 = vld [vmem:[#allocation7 + $0x208] sm:$0xff]
    %v1927 = vld [vmem:[#allocation7 + $0x210] sm:$0xff]
    %v1928 = vld [vmem:[#allocation7 + $0x218] sm:$0xff]
    %v1929 = vld [vmem:[#allocation7 + $0x220] sm:$0xff]
    %v1930 = vld [vmem:[#allocation7 + $0x228] sm:$0xff]
    %v1931 = vld [vmem:[#allocation7 + $0x230] sm:$0xff]
    %v1932 = vld [vmem:[#allocation7 + $0x238] sm:$0xff]
    %v1933 = vld [vmem:[#allocation7 + $0x240] sm:$0xff]
    %v1934 = vld [vmem:[#allocation7 + $0x248] sm:$0xff]
    %v1935 = vld [vmem:[#allocation7 + $0x250] sm:$0xff]
    %v1936 = vld [vmem:[#allocation7 + $0x258] sm:$0xff]
    %v1937 = vld [vmem:[#allocation7 + $0x260] sm:$0xff]
    %v1938 = vld [vmem:[#allocation7 + $0x268] sm:$0xff]
    %v1939 = vld [vmem:[#allocation7 + $0x270] sm:$0xff]
    %v1940 = vld [vmem:[#allocation7 + $0x278] sm:$0xff]
    %v1941 = vld [vmem:[#allocation7 + $0x280] sm:$0xff]
    %v1942 = vld [vmem:[#allocation7 + $0x288] sm:$0xff]
    %v1943 = vld [vmem:[#allocation7 + $0x290] sm:$0xff]
    %v1944 = vld [vmem:[#allocation7 + $0x298] sm:$0xff]
    %v1945 = vld [vmem:[#allocation7 + $0x2a0] sm:$0xff]
    %v1946 = vld [vmem:[#allocation7 + $0x2a8] sm:$0xff]
    %v1947 = vld [vmem:[#allocation7 + $0x2b0] sm:$0xff]
    %v1948 = vld [vmem:[#allocation7 + $0x2b8] sm:$0xff]
    %v1949 = vld [vmem:[#allocation7 + $0x2c0] sm:$0xff]
    %v1950 = vld [vmem:[#allocation7 + $0x2c8] sm:$0xff]
    %v1951 = vld [vmem:[#allocation7 + $0x2d0] sm:$0xff]
    %v1952 = vld [vmem:[#allocation7 + $0x2d8] sm:$0xff]
    %v1953 = vld [vmem:[#allocation7 + $0x2e0] sm:$0xff]
    %v1954 = vld [vmem:[#allocation7 + $0x2e8] sm:$0xff]
    %v1955 = vld [vmem:[#allocation7 + $0x2f0] sm:$0xff]
    %v1956 = vld [vmem:[#allocation7 + $0x2f8] sm:$0xff]
    %v1957 = vlaneseq
    %v1958 = vshrl.u32 %v1957, 7
    %v1959 = vsub.s32 0, %v1958
    %v1960 = vrot.slane %v1649, %v1959
    %v1961 = vlaneseq
    %v1962 = vshrl.u32 %v1961, 7
    %v1963 = vsub.s32 0, %v1962
    %v1964 = vrot.slane %v1651, %v1963
    %v1965 = vlaneseq
    %v1966 = vshrl.u32 %v1965, 7
    %v1967 = vsub.s32 0, %v1966
    %v1968 = vrot.slane %v1690, %v1967
    %v1969 = vlaneseq
    %v1970 = vshrl.u32 %v1969, 7
    %v1971 = vsub.s32 0, %v1970
    %v1972 = vrot.slane %v1692, %v1971
    %v1973 = vlaneseq
    %v1974 = vshrl.u32 %v1973, 7
    %v1975 = vsub.s32 0, %v1974
    %v1976 = vrot.slane %v1731, %v1975
    %v1977 = vlaneseq
    %v1978 = vshrl.u32 %v1977, 7
    %v1979 = vsub.s32 0, %v1978
    %v1980 = vrot.slane %v1733, %v1979
    %v1981 = vlaneseq
    %v1982 = vshrl.u32 %v1981, 7
    %v1983 = vsub.s32 0, %v1982
    %v1984 = vrot.slane %v1772, %v1983
    %v1985 = vlaneseq
    %v1986 = vshrl.u32 %v1985, 7
    %v1987 = vsub.s32 0, %v1986
    %v1988 = vrot.slane %v1774, %v1987
    %v1989 = vlaneseq
    %v1990 = vshrl.u32 %v1989, 7
    %v1991 = vsub.s32 0, %v1990
    %v1992 = vrot.slane %v1813, %v1991
    %v1993 = vlaneseq
    %v1994 = vshrl.u32 %v1993, 7
    %v1995 = vsub.s32 0, %v1994
    %v1996 = vrot.slane %v1815, %v1995
    %v1997 = vlaneseq
    %v1998 = vshrl.u32 %v1997, 7
    %v1999 = vsub.s32 0, %v1998
    %v2000 = vrot.slane %v1854, %v1999
    %v2001 = vlaneseq
    %v2002 = vshrl.u32 %v2001, 7
    %v2003 = vsub.s32 0, %v2002
    %v2004 = vrot.slane %v1856, %v2003
    %v2101 = vunpack.c.l.b16 %v1861
    %v2102 = vunpack.c.h.b16 %v1861
    %v2103 = vunpack.c.l.b16 %v1862
    %v2104 = vunpack.c.h.b16 %v1862
    %v2105 = vunpack.c.l.b16 %v1863
    %v2106 = vunpack.c.h.b16 %v1863
    %v2107 = vunpack.c.l.b16 %v1864
    %v2108 = vunpack.c.h.b16 %v1864
    %v2109 = vunpack.c.l.b16 %v1865
    %v2110 = vunpack.c.h.b16 %v1865
    %v2111 = vunpack.c.l.b16 %v1866
    %v2112 = vunpack.c.h.b16 %v1866
    %v2113 = vunpack.c.l.b16 %v1867
    %v2114 = vunpack.c.h.b16 %v1867
    %v2115 = vunpack.c.l.b16 %v1868
    %v2116 = vunpack.c.h.b16 %v1868
    %v2117 = vunpack.c.l.b16 %v1869
    %v2118 = vunpack.c.h.b16 %v1869
    %v2119 = vunpack.c.l.b16 %v1870
    %v2120 = vunpack.c.h.b16 %v1870
    %v2121 = vunpack.c.l.b16 %v1871
    %v2122 = vunpack.c.h.b16 %v1871
    %v2123 = vunpack.c.l.b16 %v1872
    %v2124 = vunpack.c.h.b16 %v1872
    %v2125 = vunpack.c.l.b16 %v1873
    %v2126 = vunpack.c.h.b16 %v1873
    %v2127 = vunpack.c.l.b16 %v1874
    %v2128 = vunpack.c.h.b16 %v1874
    %v2129 = vunpack.c.l.b16 %v1875
    %v2130 = vunpack.c.h.b16 %v1875
    %v2131 = vunpack.c.l.b16 %v1876
    %v2132 = vunpack.c.h.b16 %v1876
    %v2133 = vunpack.c.l.b16 %v1877
    %v2134 = vunpack.c.h.b16 %v1877
    %v2135 = vunpack.c.l.b16 %v1878
    %v2136 = vunpack.c.h.b16 %v1878
    %v2137 = vunpack.c.l.b16 %v1879
    %v2138 = vunpack.c.h.b16 %v1879
    %v2139 = vunpack.c.l.b16 %v1880
    %v2140 = vunpack.c.h.b16 %v1880
    %v2141 = vunpack.c.l.b16 %v1881
    %v2142 = vunpack.c.h.b16 %v1881
    %v2143 = vunpack.c.l.b16 %v1882
    %v2144 = vunpack.c.h.b16 %v1882
    %v2145 = vunpack.c.l.b16 %v1883
    %v2146 = vunpack.c.h.b16 %v1883
    %v2147 = vunpack.c.l.b16 %v1884
    %v2148 = vunpack.c.h.b16 %v1884
    %v2149 = vunpack.c.l.b16 %v1885
    %v2150 = vunpack.c.h.b16 %v1885
    %v2151 = vunpack.c.l.b16 %v1886
    %v2152 = vunpack.c.h.b16 %v1886
    %v2153 = vunpack.c.l.b16 %v1887
    %v2154 = vunpack.c.h.b16 %v1887
    %v2155 = vunpack.c.l.b16 %v1888
    %v2156 = vunpack.c.h.b16 %v1888
    %v2157 = vunpack.c.l.b16 %v1889
    %v2158 = vunpack.c.h.b16 %v1889
    %v2159 = vunpack.c.l.b16 %v1890
    %v2160 = vunpack.c.h.b16 %v1890
    %v2161 = vunpack.c.l.b16 %v1891
    %v2162 = vunpack.c.h.b16 %v1891
    %v2163 = vunpack.c.l.b16 %v1892
    %v2164 = vunpack.c.h.b16 %v1892
    %v2165 = vunpack.c.l.b16 %v1893
    %v2166 = vunpack.c.h.b16 %v1893
    %v2167 = vunpack.c.l.b16 %v1894
    %v2168 = vunpack.c.h.b16 %v1894
    %v2169 = vunpack.c.l.b16 %v1895
    %v2170 = vunpack.c.h.b16 %v1895
    %v2171 = vunpack.c.l.b16 %v1896
    %v2172 = vunpack.c.h.b16 %v1896
    %v2173 = vunpack.c.l.b16 %v1897
    %v2174 = vunpack.c.h.b16 %v1897
    %v2175 = vunpack.c.l.b16 %v1898
    %v2176 = vunpack.c.h.b16 %v1898
    %v2177 = vunpack.c.l.b16 %v1899
    %v2178 = vunpack.c.h.b16 %v1899
    %v2179 = vunpack.c.l.b16 %v1900
    %v2180 = vunpack.c.h.b16 %v1900
    %v2181 = vunpack.c.l.b16 %v1901
    %v2182 = vunpack.c.h.b16 %v1901
    %v2183 = vunpack.c.l.b16 %v1902
    %v2184 = vunpack.c.h.b16 %v1902
    %v2185 = vunpack.c.l.b16 %v1903
    %v2186 = vunpack.c.h.b16 %v1903
    %v2187 = vunpack.c.l.b16 %v1904
    %v2188 = vunpack.c.h.b16 %v1904
    %v2189 = vunpack.c.l.b16 %v1905
    %v2190 = vunpack.c.h.b16 %v1905
    %v2191 = vunpack.c.l.b16 %v1906
    %v2192 = vunpack.c.h.b16 %v1906
    %v2193 = vunpack.c.l.b16 %v1907
    %v2194 = vunpack.c.h.b16 %v1907
    %v2195 = vunpack.c.l.b16 %v1908
    %v2196 = vunpack.c.h.b16 %v1908
    %v2197 = vunpack.c.l.b16 %v1909
    %v2198 = vunpack.c.h.b16 %v1909
    %v2199 = vunpack.c.l.b16 %v1910
    %v2200 = vunpack.c.h.b16 %v1910
    %v2201 = vunpack.c.l.b16 %v1911
    %v2202 = vunpack.c.h.b16 %v1911
    %v2203 = vunpack.c.l.b16 %v1912
    %v2204 = vunpack.c.h.b16 %v1912
    %v2205 = vunpack.c.l.b16 %v1913
    %v2206 = vunpack.c.h.b16 %v1913
    %v2207 = vunpack.c.l.b16 %v1914
    %v2208 = vunpack.c.h.b16 %v1914
    %v2209 = vunpack.c.l.b16 %v1915
    %v2210 = vunpack.c.h.b16 %v1915
    %v2211 = vunpack.c.l.b16 %v1916
    %v2212 = vunpack.c.h.b16 %v1916
    %v2213 = vunpack.c.l.b16 %v1917
    %v2214 = vunpack.c.h.b16 %v1917
    %v2215 = vunpack.c.l.b16 %v1918
    %v2216 = vunpack.c.h.b16 %v1918
    %v2217 = vunpack.c.l.b16 %v1919
    %v2218 = vunpack.c.h.b16 %v1919
    %v2219 = vunpack.c.l.b16 %v1920
    %v2220 = vunpack.c.h.b16 %v1920
    %v2221 = vunpack.c.l.b16 %v1921
    %v2222 = vunpack.c.h.b16 %v1921
    %v2223 = vunpack.c.l.b16 %v1922
    %v2224 = vunpack.c.h.b16 %v1922
    %v2225 = vunpack.c.l.b16 %v1923
    %v2226 = vunpack.c.h.b16 %v1923
    %v2227 = vunpack.c.l.b16 %v1924
    %v2228 = vunpack.c.h.b16 %v1924
    %v2229 = vunpack.c.l.b16 %v1925
    %v2230 = vunpack.c.h.b16 %v1925
    %v2231 = vunpack.c.l.b16 %v1926
    %v2232 = vunpack.c.h.b16 %v1926
    %v2233 = vunpack.c.l.b16 %v1927
    %v2234 = vunpack.c.h.b16 %v1927
    %v2235 = vunpack.c.l.b16 %v1928
    %v2236 = vunpack.c.h.b16 %v1928
    %v2237 = vunpack.c.l.b16 %v1929
    %v2238 = vunpack.c.h.b16 %v1929
    %v2239 = vunpack.c.l.b16 %v1930
    %v2240 = vunpack.c.h.b16 %v1930
    %v2241 = vunpack.c.l.b16 %v1931
    %v2242 = vunpack.c.h.b16 %v1931
    %v2243 = vunpack.c.l.b16 %v1932
    %v2244 = vunpack.c.h.b16 %v1932
    %v2245 = vunpack.c.l.b16 %v1933
    %v2246 = vunpack.c.h.b16 %v1933
    %v2247 = vunpack.c.l.b16 %v1934
    %v2248 = vunpack.c.h.b16 %v1934
    %v2249 = vunpack.c.l.b16 %v1935
    %v2250 = vunpack.c.h.b16 %v1935
    %v2251 = vunpack.c.l.b16 %v1936
    %v2252 = vunpack.c.h.b16 %v1936
    %v2253 = vunpack.c.l.b16 %v1937
    %v2254 = vunpack.c.h.b16 %v1937
    %v2255 = vunpack.c.l.b16 %v1938
    %v2256 = vunpack.c.h.b16 %v1938
    %v2257 = vunpack.c.l.b16 %v1939
    %v2258 = vunpack.c.h.b16 %v1939
    %v2259 = vunpack.c.l.b16 %v1940
    %v2260 = vunpack.c.h.b16 %v1940
    %v2261 = vunpack.c.l.b16 %v1941
    %v2262 = vunpack.c.h.b16 %v1941
    %v2263 = vunpack.c.l.b16 %v1942
    %v2264 = vunpack.c.h.b16 %v1942
    %v2265 = vunpack.c.l.b16 %v1943
    %v2266 = vunpack.c.h.b16 %v1943
    %v2267 = vunpack.c.l.b16 %v1944
    %v2268 = vunpack.c.h.b16 %v1944
    %v2269 = vunpack.c.l.b16 %v1945
    %v2270 = vunpack.c.h.b16 %v1945
    %v2271 = vunpack.c.l.b16 %v1946
    %v2272 = vunpack.c.h.b16 %v1946
    %v2273 = vunpack.c.l.b16 %v1947
    %v2274 = vunpack.c.h.b16 %v1947
    %v2275 = vunpack.c.l.b16 %v1948
    %v2276 = vunpack.c.h.b16 %v1948
    %v2277 = vunpack.c.l.b16 %v1949
    %v2278 = vunpack.c.h.b16 %v1949
    %v2279 = vunpack.c.l.b16 %v1950
    %v2280 = vunpack.c.h.b16 %v1950
    %v2281 = vunpack.c.l.b16 %v1951
    %v2282 = vunpack.c.h.b16 %v1951
    %v2283 = vunpack.c.l.b16 %v1952
    %v2284 = vunpack.c.h.b16 %v1952
    %v2285 = vunpack.c.l.b16 %v1953
    %v2286 = vunpack.c.h.b16 %v1953
    %v2287 = vunpack.c.l.b16 %v1954
    %v2288 = vunpack.c.h.b16 %v1954
    %v2289 = vunpack.c.l.b16 %v1955
    %v2290 = vunpack.c.h.b16 %v1955
    %v2291 = vunpack.c.l.b16 %v1956
    %v2292 = vunpack.c.h.b16 %v1956
    %v2293 = vpack.c.b16 %v2113, %v2101
    %v2294 = vpack.c.b16 %v2114, %v2102
    %v2295 = vpack.c.b16 %v2115, %v2103
    %v2296 = vpack.c.b16 %v2116, %v2104
    %v2297 = vpack.c.b16 %v2117, %v2105
    %v2298 = vpack.c.b16 %v2118, %v2106
    %v2299 = vpack.c.b16 %v2119, %v2107
    %v2300 = vpack.c.b16 %v2120, %v2108
    %v2301 = vpack.c.b16 %v2121, %v2109
    %v2302 = vpack.c.b16 %v2122, %v2110
    %v2303 = vpack.c.b16 %v2123, %v2111
    %v2304 = vpack.c.b16 %v2124, %v2112
    %v2305 = vpack.c.b16 %v2137, %v2125
    %v2306 = vpack.c.b16 %v2138, %v2126
    %v2307 = vpack.c.b16 %v2139, %v2127
    %v2308 = vpack.c.b16 %v2140, %v2128
    %v2309 = vpack.c.b16 %v2141, %v2129
    %v2310 = vpack.c.b16 %v2142, %v2130
    %v2311 = vpack.c.b16 %v2143, %v2131
    %v2312 = vpack.c.b16 %v2144, %v2132
    %v2313 = vpack.c.b16 %v2145, %v2133
    %v2314 = vpack.c.b16 %v2146, %v2134
    %v2315 = vpack.c.b16 %v2147, %v2135
    %v2316 = vpack.c.b16 %v2148, %v2136
    %v2317 = vpack.c.b16 %v2161, %v2149
    %v2318 = vpack.c.b16 %v2162, %v2150
    %v2319 = vpack.c.b16 %v2163, %v2151
    %v2320 = vpack.c.b16 %v2164, %v2152
    %v2321 = vpack.c.b16 %v2165, %v2153
    %v2322 = vpack.c.b16 %v2166, %v2154
    %v2323 = vpack.c.b16 %v2167, %v2155
    %v2324 = vpack.c.b16 %v2168, %v2156
    %v2325 = vpack.c.b16 %v2169, %v2157
    %v2326 = vpack.c.b16 %v2170, %v2158
    %v2327 = vpack.c.b16 %v2171, %v2159
    %v2328 = vpack.c.b16 %v2172, %v2160
    %v2329 = vpack.c.b16 %v2185, %v2173
    %v2330 = vpack.c.b16 %v2186, %v2174
    %v2331 = vpack.c.b16 %v2187, %v2175
    %v2332 = vpack.c.b16 %v2188, %v2176
    %v2333 = vpack.c.b16 %v2189, %v2177
    %v2334 = vpack.c.b16 %v2190, %v2178
    %v2335 = vpack.c.b16 %v2191, %v2179
    %v2336 = vpack.c.b16 %v2192, %v2180
    %v2337 = vpack.c.b16 %v2193, %v2181
    %v2338 = vpack.c.b16 %v2194, %v2182
    %v2339 = vpack.c.b16 %v2195, %v2183
    %v2340 = vpack.c.b16 %v2196, %v2184
    %v2341 = vpack.c.b16 %v2209, %v2197
    %v2342 = vpack.c.b16 %v2210, %v2198
    %v2343 = vpack.c.b16 %v2211, %v2199
    %v2344 = vpack.c.b16 %v2212, %v2200
    %v2345 = vpack.c.b16 %v2213, %v2201
    %v2346 = vpack.c.b16 %v2214, %v2202
    %v2347 = vpack.c.b16 %v2215, %v2203
    %v2348 = vpack.c.b16 %v2216, %v2204
    %v2349 = vpack.c.b16 %v2217, %v2205
    %v2350 = vpack.c.b16 %v2218, %v2206
    %v2351 = vpack.c.b16 %v2219, %v2207
    %v2352 = vpack.c.b16 %v2220, %v2208
    %v2353 = vpack.c.b16 %v2233, %v2221
    %v2354 = vpack.c.b16 %v2234, %v2222
    %v2355 = vpack.c.b16 %v2235, %v2223
    %v2356 = vpack.c.b16 %v2236, %v2224
    %v2357 = vpack.c.b16 %v2237, %v2225
    %v2358 = vpack.c.b16 %v2238, %v2226
    %v2359 = vpack.c.b16 %v2239, %v2227
    %v2360 = vpack.c.b16 %v2240, %v2228
    %v2361 = vpack.c.b16 %v2241, %v2229
    %v2362 = vpack.c.b16 %v2242, %v2230
    %v2363 = vpack.c.b16 %v2243, %v2231
    %v2364 = vpack.c.b16 %v2244, %v2232
    %v2365 = vpack.c.b16 %v2257, %v2245
    %v2366 = vpack.c.b16 %v2258, %v2246
    %v2367 = vpack.c.b16 %v2259, %v2247
    %v2368 = vpack.c.b16 %v2260, %v2248
    %v2369 = vpack.c.b16 %v2261, %v2249
    %v2370 = vpack.c.b16 %v2262, %v2250
    %v2371 = vpack.c.b16 %v2263, %v2251
    %v2372 = vpack.c.b16 %v2264, %v2252
    %v2373 = vpack.c.b16 %v2265, %v2253
    %v2374 = vpack.c.b16 %v2266, %v2254
    %v2375 = vpack.c.b16 %v2267, %v2255
    %v2376 = vpack.c.b16 %v2268, %v2256
    %v2377 = vpack.c.b16 %v2281, %v2269
    %v2378 = vpack.c.b16 %v2282, %v2270
    %v2379 = vpack.c.b16 %v2283, %v2271
    %v2380 = vpack.c.b16 %v2284, %v2272
    %v2381 = vpack.c.b16 %v2285, %v2273
    %v2382 = vpack.c.b16 %v2286, %v2274
    %v2383 = vpack.c.b16 %v2287, %v2275
    %v2384 = vpack.c.b16 %v2288, %v2276
    %v2385 = vpack.c.b16 %v2289, %v2277
    %v2386 = vpack.c.b16 %v2290, %v2278
    %v2387 = vpack.c.b16 %v2291, %v2279
    %v2388 = vpack.c.b16 %v2292, %v2280
    %2485 = vmatprep.subr.bf16.mxu0 %v2294
    %2486 = vmatpush1.bf16.msra.mxu0 %v2293
    %2487 = vmatprep.subr.bf16.mxu0 %v2306
    %2488 = vmatpush1.bf16.msra.mxu0 %v2305
    %2489 = vmatprep.subr.bf16.mxu0 %v2318
    %2490 = vmatpush1.bf16.msra.mxu0 %v2317
    %2491 = vmatprep.subr.bf16.mxu0 %v2330
    %2492 = vmatpush1.bf16.msra.mxu0 %v2329
    %2493 = vmatprep.subr.bf16.mxu0 %v2342
    %2494 = vmatpush1.bf16.msra.mxu0 %v2341
    %2495 = vmatprep.subr.bf16.mxu0 %v2354
    %2496 = vmatpush1.bf16.msra.mxu0 %v2353
    %2497 = vmatprep.subr.bf16.mxu0 %v2366
    %2498 = vmatpush1.bf16.msra.mxu0 %v2365
    %2499 = vmatprep.subr.bf16.mxu0 %v2378
    %2500 = vmatpush1.bf16.msra.mxu0 %v2377
    %2501 = vmatprep.subr.bf16.mxu0 0
    %2502 = vmatpush1.bf16.msra.mxu0 0
    %2503 = vmatprep.subr.bf16.mxu0 0
    %2504 = vmatpush1.bf16.msra.mxu0 0
    %2505 = vmatprep.subr.bf16.mxu0 0
    %2506 = vmatpush1.bf16.msra.mxu0 0
    %2507 = vmatprep.subr.bf16.mxu0 0
    %2508 = vmatpush1.bf16.msra.mxu0 0
    %2509 = vmatprep.subr.bf16.mxu0 0
    %2510 = vmatpush1.bf16.msra.mxu0 0
    %2511 = vmatprep.subr.bf16.mxu0 0
    %2512 = vmatpush1.bf16.msra.mxu0 0
    %2513 = vmatprep.subr.bf16.mxu0 0
    %2514 = vmatpush1.bf16.msra.mxu0 0
    %2515 = vmatprep.subr.bf16.mxu0 0
    %2516 = vmatpush1.bf16.msra.mxu0 0
    %2517 = vmatprep.mubr.bf16.mxu0 0
    %2518 = vmatmul.mubr.bf16.gmra.mrb[0].mxu0 %v1860
    %v2519 = vpop.f32.mrb[0].mxu0
    %v2520 = vadd.f32 %v1960, %v2519
    %v2521 = vpop.f32.mrb[0].mxu0
    %v2522 = vadd.f32 %v1964, %v2521
    %v2523 = vpop.f32.mrb[0].mxu0
    %v2524 = vpop.f32.mrb[0].mxu0
    %2525 = vdwg.mxu0
    %2526 = vmatprep.subr.bf16.mxu0 %v2296
    %2527 = vmatpush1.bf16.msra.mxu0 %v2295
    %2528 = vmatprep.subr.bf16.mxu0 %v2308
    %2529 = vmatpush1.bf16.msra.mxu0 %v2307
    %2530 = vmatprep.subr.bf16.mxu0 %v2320
    %2531 = vmatpush1.bf16.msra.mxu0 %v2319
    %2532 = vmatprep.subr.bf16.mxu0 %v2332
    %2533 = vmatpush1.bf16.msra.mxu0 %v2331
    %2534 = vmatprep.subr.bf16.mxu0 %v2344
    %2535 = vmatpush1.bf16.msra.mxu0 %v2343
    %2536 = vmatprep.subr.bf16.mxu0 %v2356
    %2537 = vmatpush1.bf16.msra.mxu0 %v2355
    %2538 = vmatprep.subr.bf16.mxu0 %v2368
    %2539 = vmatpush1.bf16.msra.mxu0 %v2367
    %2540 = vmatprep.subr.bf16.mxu0 %v2380
    %2541 = vmatpush1.bf16.msra.mxu0 %v2379
    %2542 = vmatprep.subr.bf16.mxu0 0
    %2543 = vmatpush1.bf16.msra.mxu0 0
    %2544 = vmatprep.subr.bf16.mxu0 0
    %2545 = vmatpush1.bf16.msra.mxu0 0
    %2546 = vmatprep.subr.bf16.mxu0 0
    %2547 = vmatpush1.bf16.msra.mxu0 0
    %2548 = vmatprep.subr.bf16.mxu0 0
    %2549 = vmatpush1.bf16.msra.mxu0 0
    %2550 = vmatprep.subr.bf16.mxu0 0
    %2551 = vmatpush1.bf16.msra.mxu0 0
    %2552 = vmatprep.subr.bf16.mxu0 0
    %2553 = vmatpush1.bf16.msra.mxu0 0
    %2554 = vmatprep.subr.bf16.mxu0 0
    %2555 = vmatpush1.bf16.msra.mxu0 0
    %2556 = vmatprep.subr.bf16.mxu0 0
    %2557 = vmatpush1.bf16.msra.mxu0 0
    %2558 = vmatprep.mubr.bf16.mxu0 0
    %2559 = vmatmul.mubr.bf16.gmra.mrb[0].mxu0 %v1860
    %v2560 = vpop.f32.mrb[0].mxu0
    %v2561 = vadd.f32 %v1968, %v2560
    %v2562 = vpop.f32.mrb[0].mxu0
    %v2563 = vadd.f32 %v1972, %v2562
    %v2564 = vpop.f32.mrb[0].mxu0
    %v2565 = vpop.f32.mrb[0].mxu0
    %2566 = vdwg.mxu0
    %2567 = vmatprep.subr.bf16.mxu0 %v2298
    %2568 = vmatpush1.bf16.msra.mxu0 %v2297
    %2569 = vmatprep.subr.bf16.mxu0 %v2310
    %2570 = vmatpush1.bf16.msra.mxu0 %v2309
    %2571 = vmatprep.subr.bf16.mxu0 %v2322
    %2572 = vmatpush1.bf16.msra.mxu0 %v2321
    %2573 = vmatprep.subr.bf16.mxu0 %v2334
    %2574 = vmatpush1.bf16.msra.mxu0 %v2333
    %2575 = vmatprep.subr.bf16.mxu0 %v2346
    %2576 = vmatpush1.bf16.msra.mxu0 %v2345
    %2577 = vmatprep.subr.bf16.mxu0 %v2358
    %2578 = vmatpush1.bf16.msra.mxu0 %v2357
    %2579 = vmatprep.subr.bf16.mxu0 %v2370
    %2580 = vmatpush1.bf16.msra.mxu0 %v2369
    %2581 = vmatprep.subr.bf16.mxu0 %v2382
    %2582 = vmatpush1.bf16.msra.mxu0 %v2381
    %2583 = vmatprep.subr.bf16.mxu0 0
    %2584 = vmatpush1.bf16.msra.mxu0 0
    %2585 = vmatprep.subr.bf16.mxu0 0
    %2586 = vmatpush1.bf16.msra.mxu0 0
    %2587 = vmatprep.subr.bf16.mxu0 0
    %2588 = vmatpush1.bf16.msra.mxu0 0
    %2589 = vmatprep.subr.bf16.mxu0 0
    %2590 = vmatpush1.bf16.msra.mxu0 0
    %2591 = vmatprep.subr.bf16.mxu0 0
    %2592 = vmatpush1.bf16.msra.mxu0 0
    %2593 = vmatprep.subr.bf16.mxu0 0
    %2594 = vmatpush1.bf16.msra.mxu0 0
    %2595 = vmatprep.subr.bf16.mxu0 0
    %2596 = vmatpush1.bf16.msra.mxu0 0
    %2597 = vmatprep.subr.bf16.mxu0 0
    %2598 = vmatpush1.bf16.msra.mxu0 0
    %2599 = vmatprep.mubr.bf16.mxu0 0
    %2600 = vmatmul.mubr.bf16.gmra.mrb[0].mxu0 %v1860
    %v2601 = vpop.f32.mrb[0].mxu0
    %v2602 = vadd.f32 %v1976, %v2601
    %v2603 = vpop.f32.mrb[0].mxu0
    %v2604 = vadd.f32 %v1980, %v2603
    %v2605 = vpop.f32.mrb[0].mxu0
    %v2606 = vpop.f32.mrb[0].mxu0
    %2607 = vdwg.mxu0
    %2608 = vmatprep.subr.bf16.mxu0 %v2300
    %2609 = vmatpush1.bf16.msra.mxu0 %v2299
    %2610 = vmatprep.subr.bf16.mxu0 %v2312
    %2611 = vmatpush1.bf16.msra.mxu0 %v2311
    %2612 = vmatprep.subr.bf16.mxu0 %v2324
    %2613 = vmatpush1.bf16.msra.mxu0 %v2323
    %2614 = vmatprep.subr.bf16.mxu0 %v2336
    %2615 = vmatpush1.bf16.msra.mxu0 %v2335
    %2616 = vmatprep.subr.bf16.mxu0 %v2348
    %2617 = vmatpush1.bf16.msra.mxu0 %v2347
    %2618 = vmatprep.subr.bf16.mxu0 %v2360
    %2619 = vmatpush1.bf16.msra.mxu0 %v2359
    %2620 = vmatprep.subr.bf16.mxu0 %v2372
    %2621 = vmatpush1.bf16.msra.mxu0 %v2371
    %2622 = vmatprep.subr.bf16.mxu0 %v2384
    %2623 = vmatpush1.bf16.msra.mxu0 %v2383
    %2624 = vmatprep.subr.bf16.mxu0 0
    %2625 = vmatpush1.bf16.msra.mxu0 0
    %2626 = vmatprep.subr.bf16.mxu0 0
    %2627 = vmatpush1.bf16.msra.mxu0 0
    %2628 = vmatprep.subr.bf16.mxu0 0
    %2629 = vmatpush1.bf16.msra.mxu0 0
    %2630 = vmatprep.subr.bf16.mxu0 0
    %2631 = vmatpush1.bf16.msra.mxu0 0
    %2632 = vmatprep.subr.bf16.mxu0 0
    %2633 = vmatpush1.bf16.msra.mxu0 0
    %2634 = vmatprep.subr.bf16.mxu0 0
    %2635 = vmatpush1.bf16.msra.mxu0 0
    %2636 = vmatprep.subr.bf16.mxu0 0
    %2637 = vmatpush1.bf16.msra.mxu0 0
    %2638 = vmatprep.subr.bf16.mxu0 0
    %2639 = vmatpush1.bf16.msra.mxu0 0
    %2640 = vmatprep.mubr.bf16.mxu0 0
    %2641 = vmatmul.mubr.bf16.gmra.mrb[0].mxu0 %v1860
    %v2642 = vpop.f32.mrb[0].mxu0
    %v2643 = vadd.f32 %v1984, %v2642
    %v2644 = vpop.f32.mrb[0].mxu0
    %v2645 = vadd.f32 %v1988, %v2644
    %v2646 = vpop.f32.mrb[0].mxu0
    %v2647 = vpop.f32.mrb[0].mxu0
    %2648 = vdwg.mxu0
    %2649 = vmatprep.subr.bf16.mxu0 %v2302
    %2650 = vmatpush1.bf16.msra.mxu0 %v2301
    %2651 = vmatprep.subr.bf16.mxu0 %v2314
    %2652 = vmatpush1.bf16.msra.mxu0 %v2313
    %2653 = vmatprep.subr.bf16.mxu0 %v2326
    %2654 = vmatpush1.bf16.msra.mxu0 %v2325
    %2655 = vmatprep.subr.bf16.mxu0 %v2338
    %2656 = vmatpush1.bf16.msra.mxu0 %v2337
    %2657 = vmatprep.subr.bf16.mxu0 %v2350
    %2658 = vmatpush1.bf16.msra.mxu0 %v2349
    %2659 = vmatprep.subr.bf16.mxu0 %v2362
    %2660 = vmatpush1.bf16.msra.mxu0 %v2361
    %2661 = vmatprep.subr.bf16.mxu0 %v2374
    %2662 = vmatpush1.bf16.msra.mxu0 %v2373
    %2663 = vmatprep.subr.bf16.mxu0 %v2386
    %2664 = vmatpush1.bf16.msra.mxu0 %v2385
    %2665 = vmatprep.subr.bf16.mxu0 0
    %2666 = vmatpush1.bf16.msra.mxu0 0
    %2667 = vmatprep.subr.bf16.mxu0 0
    %2668 = vmatpush1.bf16.msra.mxu0 0
    %2669 = vmatprep.subr.bf16.mxu0 0
    %2670 = vmatpush1.bf16.msra.mxu0 0
    %2671 = vmatprep.subr.bf16.mxu0 0
    %2672 = vmatpush1.bf16.msra.mxu0 0
    %2673 = vmatprep.subr.bf16.mxu0 0
    %2674 = vmatpush1.bf16.msra.mxu0 0
    %2675 = vmatprep.subr.bf16.mxu0 0
    %2676 = vmatpush1.bf16.msra.mxu0 0
    %2677 = vmatprep.subr.bf16.mxu0 0
    %2678 = vmatpush1.bf16.msra.mxu0 0
    %2679 = vmatprep.subr.bf16.mxu0 0
    %2680 = vmatpush1.bf16.msra.mxu0 0
    %2681 = vmatprep.mubr.bf16.mxu0 0
    %2682 = vmatmul.mubr.bf16.gmra.mrb[0].mxu0 %v1860
    %v2683 = vpop.f32.mrb[0].mxu0
    %v2684 = vadd.f32 %v1992, %v2683
    %v2685 = vpop.f32.mrb[0].mxu0
    %v2686 = vadd.f32 %v1996, %v2685
    %v2687 = vpop.f32.mrb[0].mxu0
    %v2688 = vpop.f32.mrb[0].mxu0
    %2689 = vdwg.mxu0
    %2690 = vmatprep.subr.bf16.mxu0 %v2304
    %2691 = vmatpush1.bf16.msra.mxu0 %v2303
    %2692 = vmatprep.subr.bf16.mxu0 %v2316
    %2693 = vmatpush1.bf16.msra.mxu0 %v2315
    %2694 = vmatprep.subr.bf16.mxu0 %v2328
    %2695 = vmatpush1.bf16.msra.mxu0 %v2327
    %2696 = vmatprep.subr.bf16.mxu0 %v2340
    %2697 = vmatpush1.bf16.msra.mxu0 %v2339
    %2698 = vmatprep.subr.bf16.mxu0 %v2352
    %2699 = vmatpush1.bf16.msra.mxu0 %v2351
    %2700 = vmatprep.subr.bf16.mxu0 %v2364
    %2701 = vmatpush1.bf16.msra.mxu0 %v2363
    %2702 = vmatprep.subr.bf16.mxu0 %v2376
    %2703 = vmatpush1.bf16.msra.mxu0 %v2375
    %2704 = vmatprep.subr.bf16.mxu0 %v2388
    %2705 = vmatpush1.bf16.msra.mxu0 %v2387
    %2706 = vmatprep.subr.bf16.mxu0 0
    %2707 = vmatpush1.bf16.msra.mxu0 0
    %2708 = vmatprep.subr.bf16.mxu0 0
    %2709 = vmatpush1.bf16.msra.mxu0 0
    %2710 = vmatprep.subr.bf16.mxu0 0
    %2711 = vmatpush1.bf16.msra.mxu0 0
    %2712 = vmatprep.subr.bf16.mxu0 0
    %2713 = vmatpush1.bf16.msra.mxu0 0
    %2714 = vmatprep.subr.bf16.mxu0 0
    %2715 = vmatpush1.bf16.msra.mxu0 0
    %2716 = vmatprep.subr.bf16.mxu0 0
    %2717 = vmatpush1.bf16.msra.mxu0 0
    %2718 = vmatprep.subr.bf16.mxu0 0
    %2719 = vmatpush1.bf16.msra.mxu0 0
    %2720 = vmatprep.subr.bf16.mxu0 0
    %2721 = vmatpush1.bf16.msra.mxu0 0
    %2722 = vmatprep.mubr.bf16.mxu0 0
    %2723 = vmatmul.mubr.bf16.gmra.mrb[0].mxu0 %v1860
    %v2724 = vpop.f32.mrb[0].mxu0
    %v2725 = vadd.f32 %v2000, %v2724
    %v2726 = vpop.f32.mrb[0].mxu0
    %v2727 = vadd.f32 %v2004, %v2726
    %v2728 = vpop.f32.mrb[0].mxu0
    %v2729 = vpop.f32.mrb[0].mxu0
    %2730 = vdwg.mxu0
    %v2731 = vmax.f32 %v2520, 0.0
    %v2732 = vmax.f32 %v2522, 0.0
    %v2733 = vmax.f32 %v2561, 0.0
    %v2734 = vmax.f32 %v2563, 0.0
    %v2735 = vmax.f32 %v2602, 0.0
    %v2736 = vmax.f32 %v2604, 0.0
    %v2737 = vmax.f32 %v2643, 0.0
    %v2738 = vmax.f32 %v2645, 0.0
    %v2739 = vmax.f32 %v2684, 0.0
    %v2740 = vmax.f32 %v2686, 0.0
    %v2741 = vmax.f32 %v2725, 0.0
    %v2742 = vmax.f32 %v2727, 0.0
    %v2743 = vpack.c.bf16 %v2731, %v2731
    %v2744 = vpack.c.bf16 %v2732, %v2732
    %v2745 = vld [vmem:[#allocation10] sm:$0xff]
    %v2746 = vld [vmem:[#allocation10 + $0x8] sm:$0xff]
    %v2747 = vld [vmem:[#allocation10 + $0x10] sm:$0xff]
    %v2748 = vld [vmem:[#allocation10 + $0x18] sm:$0xff]
    %v2749 = vld [vmem:[#allocation10 + $0x20] sm:$0xff]
    %v2750 = vld [vmem:[#allocation10 + $0x28] sm:$0xff]
    %v2751 = vld [vmem:[#allocation10 + $0x30] sm:$0xff]
    %v2752 = vld [vmem:[#allocation10 + $0x38] sm:$0xff]
    %v2753 = vld [vmem:[#allocation10 + $0x40] sm:$0xff]
    %v2754 = vld [vmem:[#allocation10 + $0x48] sm:$0xff]
    %v2755 = vld [vmem:[#allocation10 + $0x50] sm:$0xff]
    %v2756 = vld [vmem:[#allocation10 + $0x58] sm:$0xff]
    %v2757 = vld [vmem:[#allocation10 + $0x60] sm:$0xff]
    %v2758 = vld [vmem:[#allocation10 + $0x68] sm:$0xff]
    %v2759 = vld [vmem:[#allocation10 + $0x70] sm:$0xff]
    %v2760 = vld [vmem:[#allocation10 + $0x78] sm:$0xff]
    %v2761 = vld [vmem:[#allocation10 + $0x80] sm:$0xff]
    %v2762 = vld [vmem:[#allocation10 + $0x88] sm:$0xff]
    %v2763 = vld [vmem:[#allocation10 + $0x90] sm:$0xff]
    %v2764 = vld [vmem:[#allocation10 + $0x98] sm:$0xff]
    %v2765 = vld [vmem:[#allocation10 + $0xa0] sm:$0xff]
    %v2766 = vld [vmem:[#allocation10 + $0xa8] sm:$0xff]
    %v2767 = vld [vmem:[#allocation10 + $0xb0] sm:$0xff]
    %v2768 = vld [vmem:[#allocation10 + $0xb8] sm:$0xff]
    %v2769 = vld [vmem:[#allocation10 + $0xc0] sm:$0xff]
    %v2770 = vld [vmem:[#allocation10 + $0xc8] sm:$0xff]
    %v2771 = vld [vmem:[#allocation10 + $0xd0] sm:$0xff]
    %v2772 = vld [vmem:[#allocation10 + $0xd8] sm:$0xff]
    %v2773 = vld [vmem:[#allocation10 + $0xe0] sm:$0xff]
    %v2774 = vld [vmem:[#allocation10 + $0xe8] sm:$0xff]
    %v2775 = vld [vmem:[#allocation10 + $0xf0] sm:$0xff]
    %v2776 = vld [vmem:[#allocation10 + $0xf8] sm:$0xff]
    %v2777 = vld [vmem:[#allocation11] sm:$0x3]
    %v2779 = vlaneseq
    %v2780 = vshrl.u32 %v2779, 7
    %v2781 = vsub.s32 0, %v2780
    %v2782 = vrot.slane %v2777, %v2781
    %v2783 = vlaneseq
    %v2784 = vshrl.u32 %v2783, 7
    %v2785 = vsub.s32 1, %v2784
    %v2786 = vrot.slane %v2777, %v2785
    %v2821 = vunpack.c.l.b16 %v2745
    %v2822 = vunpack.c.h.b16 %v2745
    %v2823 = vunpack.c.l.b16 %v2746
    %v2824 = vunpack.c.h.b16 %v2746
    %v2825 = vunpack.c.l.b16 %v2747
    %v2826 = vunpack.c.h.b16 %v2747
    %v2827 = vunpack.c.l.b16 %v2748
    %v2828 = vunpack.c.h.b16 %v2748
    %v2829 = vunpack.c.l.b16 %v2749
    %v2830 = vunpack.c.h.b16 %v2749
    %v2831 = vunpack.c.l.b16 %v2750
    %v2832 = vunpack.c.h.b16 %v2750
    %v2833 = vunpack.c.l.b16 %v2751
    %v2834 = vunpack.c.h.b16 %v2751
    %v2835 = vunpack.c.l.b16 %v2752
    %v2836 = vunpack.c.h.b16 %v2752
    %v2837 = vunpack.c.l.b16 %v2753
    %v2838 = vunpack.c.h.b16 %v2753
    %v2839 = vunpack.c.l.b16 %v2754
    %v2840 = vunpack.c.h.b16 %v2754
    %v2841 = vunpack.c.l.b16 %v2755
    %v2842 = vunpack.c.h.b16 %v2755
    %v2843 = vunpack.c.l.b16 %v2756
    %v2844 = vunpack.c.h.b16 %v2756
    %v2845 = vunpack.c.l.b16 %v2757
    %v2846 = vunpack.c.h.b16 %v2757
    %v2847 = vunpack.c.l.b16 %v2758
    %v2848 = vunpack.c.h.b16 %v2758
    %v2849 = vunpack.c.l.b16 %v2759
    %v2850 = vunpack.c.h.b16 %v2759
    %v2851 = vunpack.c.l.b16 %v2760
    %v2852 = vunpack.c.h.b16 %v2760
    %v2853 = vunpack.c.l.b16 %v2761
    %v2854 = vunpack.c.h.b16 %v2761
    %v2855 = vunpack.c.l.b16 %v2762
    %v2856 = vunpack.c.h.b16 %v2762
    %v2857 = vunpack.c.l.b16 %v2763
    %v2858 = vunpack.c.h.b16 %v2763
    %v2859 = vunpack.c.l.b16 %v2764
    %v2860 = vunpack.c.h.b16 %v2764
    %v2861 = vunpack.c.l.b16 %v2765
    %v2862 = vunpack.c.h.b16 %v2765
    %v2863 = vunpack.c.l.b16 %v2766
    %v2864 = vunpack.c.h.b16 %v2766
    %v2865 = vunpack.c.l.b16 %v2767
    %v2866 = vunpack.c.h.b16 %v2767
    %v2867 = vunpack.c.l.b16 %v2768
    %v2868 = vunpack.c.h.b16 %v2768
    %v2869 = vunpack.c.l.b16 %v2769
    %v2870 = vunpack.c.h.b16 %v2769
    %v2871 = vunpack.c.l.b16 %v2770
    %v2872 = vunpack.c.h.b16 %v2770
    %v2873 = vunpack.c.l.b16 %v2771
    %v2874 = vunpack.c.h.b16 %v2771
    %v2875 = vunpack.c.l.b16 %v2772
    %v2876 = vunpack.c.h.b16 %v2772
    %v2877 = vunpack.c.l.b16 %v2773
    %v2878 = vunpack.c.h.b16 %v2773
    %v2879 = vunpack.c.l.b16 %v2774
    %v2880 = vunpack.c.h.b16 %v2774
    %v2881 = vunpack.c.l.b16 %v2775
    %v2882 = vunpack.c.h.b16 %v2775
    %v2883 = vunpack.c.l.b16 %v2776
    %v2884 = vunpack.c.h.b16 %v2776
    %v2885 = vpack.c.b16 %v2823, %v2821
    %v2886 = vpack.c.b16 %v2824, %v2822
    %v2887 = vpack.c.b16 %v2827, %v2825
    %v2888 = vpack.c.b16 %v2828, %v2826
    %v2889 = vpack.c.b16 %v2831, %v2829
    %v2890 = vpack.c.b16 %v2832, %v2830
    %v2891 = vpack.c.b16 %v2835, %v2833
    %v2892 = vpack.c.b16 %v2836, %v2834
    %v2893 = vpack.c.b16 %v2839, %v2837
    %v2894 = vpack.c.b16 %v2840, %v2838
    %v2895 = vpack.c.b16 %v2843, %v2841
    %v2896 = vpack.c.b16 %v2844, %v2842
    %v2897 = vpack.c.b16 %v2847, %v2845
    %v2898 = vpack.c.b16 %v2848, %v2846
    %v2899 = vpack.c.b16 %v2851, %v2849
    %v2900 = vpack.c.b16 %v2852, %v2850
    %v2901 = vpack.c.b16 %v2855, %v2853
    %v2902 = vpack.c.b16 %v2856, %v2854
    %v2903 = vpack.c.b16 %v2859, %v2857
    %v2904 = vpack.c.b16 %v2860, %v2858
    %v2905 = vpack.c.b16 %v2863, %v2861
    %v2906 = vpack.c.b16 %v2864, %v2862
    %v2907 = vpack.c.b16 %v2867, %v2865
    %v2908 = vpack.c.b16 %v2868, %v2866
    %v2909 = vpack.c.b16 %v2871, %v2869
    %v2910 = vpack.c.b16 %v2872, %v2870
    %v2911 = vpack.c.b16 %v2875, %v2873
    %v2912 = vpack.c.b16 %v2876, %v2874
    %v2913 = vpack.c.b16 %v2879, %v2877
    %v2914 = vpack.c.b16 %v2880, %v2878
    %v2915 = vpack.c.b16 %v2883, %v2881
    %v2916 = vpack.c.b16 %v2884, %v2882
    %2949 = vmatprep.subr.bf16.mxu0 %v2886
    %2950 = vmatpush1.bf16.msra.mxu0 %v2885
    %2951 = vmatprep.subr.bf16.mxu0 %v2888
    %2952 = vmatpush1.bf16.msra.mxu0 %v2887
    %2953 = vmatprep.subr.bf16.mxu0 %v2890
    %2954 = vmatpush1.bf16.msra.mxu0 %v2889
    %2955 = vmatprep.subr.bf16.mxu0 %v2892
    %2956 = vmatpush1.bf16.msra.mxu0 %v2891
    %2957 = vmatprep.subr.bf16.mxu0 %v2894
    %2958 = vmatpush1.bf16.msra.mxu0 %v2893
    %2959 = vmatprep.subr.bf16.mxu0 %v2896
    %2960 = vmatpush1.bf16.msra.mxu0 %v2895
    %2961 = vmatprep.subr.bf16.mxu0 %v2898
    %2962 = vmatpush1.bf16.msra.mxu0 %v2897
    %2963 = vmatprep.subr.bf16.mxu0 %v2900
    %2964 = vmatpush1.bf16.msra.mxu0 %v2899
    %2965 = vmatprep.subr.bf16.mxu0 %v2902
    %2966 = vmatpush1.bf16.msra.mxu0 %v2901
    %2967 = vmatprep.subr.bf16.mxu0 %v2904
    %2968 = vmatpush1.bf16.msra.mxu0 %v2903
    %2969 = vmatprep.subr.bf16.mxu0 %v2906
    %2970 = vmatpush1.bf16.msra.mxu0 %v2905
    %2971 = vmatprep.subr.bf16.mxu0 %v2908
    %2972 = vmatpush1.bf16.msra.mxu0 %v2907
    %2973 = vmatprep.subr.bf16.mxu0 %v2910
    %2974 = vmatpush1.bf16.msra.mxu0 %v2909
    %2975 = vmatprep.subr.bf16.mxu0 %v2912
    %2976 = vmatpush1.bf16.msra.mxu0 %v2911
    %2977 = vmatprep.subr.bf16.mxu0 %v2914
    %2978 = vmatpush1.bf16.msra.mxu0 %v2913
    %2979 = vmatprep.subr.bf16.mxu0 %v2916
    %2980 = vmatpush1.bf16.msra.mxu0 %v2915
    %2981 = vmatprep.mubr.bf16.mxu0 %v2744
    %2982 = vmatmul.mubr.bf16.gmra.mrb[0].mxu0 %v2743
    %v2983 = vpop.f32.mrb[0].mxu0
    %v2984 = vadd.f32 %v2782, %v2983
    %v2985 = vpop.f32.mrb[0].mxu0
    %v2986 = vadd.f32 %v2786, %v2985
    %v2987 = vpop.f32.mrb[0].mxu0
    %v2988 = vpop.f32.mrb[0].mxu0
    %2989 = vdwg.mxu0
    %v2990 = vmax.f32 %v2984, 0.0
    %v2991 = vmax.f32 %v2986, 0.0
    %v2992 = vpack.c.bf16 %v2990, %v2990
    %v2993 = vpack.c.bf16 %v2991, %v2991
    %v2994 = vld [vmem:[#allocation13] sm:$0xff]
    %v2995 = vld [vmem:[#allocation13 + $0x8] sm:$0xff]
    %v2996 = vld [vmem:[#allocation13 + $0x10] sm:$0xff]
    %v2997 = vld [vmem:[#allocation13 + $0x18] sm:$0xff]
    %v2998 = vld [vmem:[#allocation13 + $0x20] sm:$0xff]
    %v2999 = vld [vmem:[#allocation13 + $0x28] sm:$0xff]
    %v3000 = vld [vmem:[#allocation13 + $0x30] sm:$0xff]
    %v3001 = vld [vmem:[#allocation13 + $0x38] sm:$0xff]
    %v3002 = vld [vmem:[#allocation13 + $0x40] sm:$0xff]
    %v3003 = vld [vmem:[#allocation13 + $0x48] sm:$0xff]
    %v3004 = vld [vmem:[#allocation13 + $0x50] sm:$0xff]
    %v3005 = vld [vmem:[#allocation13 + $0x58] sm:$0xff]
    %v3006 = vld [vmem:[#allocation13 + $0x60] sm:$0xff]
    %v3007 = vld [vmem:[#allocation13 + $0x68] sm:$0xff]
    %v3008 = vld [vmem:[#allocation13 + $0x70] sm:$0xff]
    %v3009 = vld [vmem:[#allocation13 + $0x78] sm:$0xff]
    %v3010 = vld [vmem:[#allocation13 + $0x80] sm:$0xff]
    %v3011 = vld [vmem:[#allocation13 + $0x88] sm:$0xff]
    %v3012 = vld [vmem:[#allocation13 + $0x90] sm:$0xff]
    %v3013 = vld [vmem:[#allocation13 + $0x98] sm:$0xff]
    %v3014 = vld [vmem:[#allocation13 + $0xa0] sm:$0xff]
    %v3015 = vld [vmem:[#allocation13 + $0xa8] sm:$0xff]
    %v3016 = vld [vmem:[#allocation13 + $0xb0] sm:$0xff]
    %v3017 = vld [vmem:[#allocation13 + $0xb8] sm:$0xff]
    %v3018 = vld [vmem:[#allocation13 + $0xc0] sm:$0xff]
    %v3019 = vld [vmem:[#allocation13 + $0xc8] sm:$0xff]
    %v3020 = vld [vmem:[#allocation13 + $0xd0] sm:$0xff]
    %v3021 = vld [vmem:[#allocation13 + $0xd8] sm:$0xff]
    %v3022 = vld [vmem:[#allocation13 + $0xe0] sm:$0xff]
    %v3023 = vld [vmem:[#allocation13 + $0xe8] sm:$0xff]
    %v3024 = vld [vmem:[#allocation13 + $0xf0] sm:$0xff]
    %v3025 = vld [vmem:[#allocation13 + $0xf8] sm:$0xff]
    %v3026 = vld [vmem:[#allocation14] sm:$0x3]
    %v3028 = vlaneseq
    %v3029 = vshrl.u32 %v3028, 7
    %v3030 = vsub.s32 0, %v3029
    %v3031 = vrot.slane %v3026, %v3030
    %v3032 = vlaneseq
    %v3033 = vshrl.u32 %v3032, 7
    %v3034 = vsub.s32 1, %v3033
    %v3035 = vrot.slane %v3026, %v3034
    %v3070 = vunpack.c.l.b16 %v2994
    %v3071 = vunpack.c.h.b16 %v2994
    %v3072 = vunpack.c.l.b16 %v2995
    %v3073 = vunpack.c.h.b16 %v2995
    %v3074 = vunpack.c.l.b16 %v2996
    %v3075 = vunpack.c.h.b16 %v2996
    %v3076 = vunpack.c.l.b16 %v2997
    %v3077 = vunpack.c.h.b16 %v2997
    %v3078 = vunpack.c.l.b16 %v2998
    %v3079 = vunpack.c.h.b16 %v2998
    %v3080 = vunpack.c.l.b16 %v2999
    %v3081 = vunpack.c.h.b16 %v2999
    %v3082 = vunpack.c.l.b16 %v3000
    %v3083 = vunpack.c.h.b16 %v3000
    %v3084 = vunpack.c.l.b16 %v3001
    %v3085 = vunpack.c.h.b16 %v3001
    %v3086 = vunpack.c.l.b16 %v3002
    %v3087 = vunpack.c.h.b16 %v3002
    %v3088 = vunpack.c.l.b16 %v3003
    %v3089 = vunpack.c.h.b16 %v3003
    %v3090 = vunpack.c.l.b16 %v3004
    %v3091 = vunpack.c.h.b16 %v3004
    %v3092 = vunpack.c.l.b16 %v3005
    %v3093 = vunpack.c.h.b16 %v3005
    %v3094 = vunpack.c.l.b16 %v3006
    %v3095 = vunpack.c.h.b16 %v3006
    %v3096 = vunpack.c.l.b16 %v3007
    %v3097 = vunpack.c.h.b16 %v3007
    %v3098 = vunpack.c.l.b16 %v3008
    %v3099 = vunpack.c.h.b16 %v3008
    %v3100 = vunpack.c.l.b16 %v3009
    %v3101 = vunpack.c.h.b16 %v3009
    %v3102 = vunpack.c.l.b16 %v3010
    %v3103 = vunpack.c.h.b16 %v3010
    %v3104 = vunpack.c.l.b16 %v3011
    %v3105 = vunpack.c.h.b16 %v3011
    %v3106 = vunpack.c.l.b16 %v3012
    %v3107 = vunpack.c.h.b16 %v3012
    %v3108 = vunpack.c.l.b16 %v3013
    %v3109 = vunpack.c.h.b16 %v3013
    %v3110 = vunpack.c.l.b16 %v3014
    %v3111 = vunpack.c.h.b16 %v3014
    %v3112 = vunpack.c.l.b16 %v3015
    %v3113 = vunpack.c.h.b16 %v3015
    %v3114 = vunpack.c.l.b16 %v3016
    %v3115 = vunpack.c.h.b16 %v3016
    %v3116 = vunpack.c.l.b16 %v3017
    %v3117 = vunpack.c.h.b16 %v3017
    %v3118 = vunpack.c.l.b16 %v3018
    %v3119 = vunpack.c.h.b16 %v3018
    %v3120 = vunpack.c.l.b16 %v3019
    %v3121 = vunpack.c.h.b16 %v3019
    %v3122 = vunpack.c.l.b16 %v3020
    %v3123 = vunpack.c.h.b16 %v3020
    %v3124 = vunpack.c.l.b16 %v3021
    %v3125 = vunpack.c.h.b16 %v3021
    %v3126 = vunpack.c.l.b16 %v3022
    %v3127 = vunpack.c.h.b16 %v3022
    %v3128 = vunpack.c.l.b16 %v3023
    %v3129 = vunpack.c.h.b16 %v3023
    %v3130 = vunpack.c.l.b16 %v3024
    %v3131 = vunpack.c.h.b16 %v3024
    %v3132 = vunpack.c.l.b16 %v3025
    %v3133 = vunpack.c.h.b16 %v3025
    %v3134 = vpack.c.b16 %v3072, %v3070
    %v3135 = vpack.c.b16 %v3073, %v3071
    %v3136 = vpack.c.b16 %v3076, %v3074
    %v3137 = vpack.c.b16 %v3077, %v3075
    %v3138 = vpack.c.b16 %v3080, %v3078
    %v3139 = vpack.c.b16 %v3081, %v3079
    %v3140 = vpack.c.b16 %v3084, %v3082
    %v3141 = vpack.c.b16 %v3085, %v3083
    %v3142 = vpack.c.b16 %v3088, %v3086
    %v3143 = vpack.c.b16 %v3089, %v3087
    %v3144 = vpack.c.b16 %v3092, %v3090
    %v3145 = vpack.c.b16 %v3093, %v3091
    %v3146 = vpack.c.b16 %v3096, %v3094
    %v3147 = vpack.c.b16 %v3097, %v3095
    %v3148 = vpack.c.b16 %v3100, %v3098
    %v3149 = vpack.c.b16 %v3101, %v3099
    %v3150 = vpack.c.b16 %v3104, %v3102
    %v3151 = vpack.c.b16 %v3105, %v3103
    %v3152 = vpack.c.b16 %v3108, %v3106
    %v3153 = vpack.c.b16 %v3109, %v3107
    %v3154 = vpack.c.b16 %v3112, %v3110
    %v3155 = vpack.c.b16 %v3113, %v3111
    %v3156 = vpack.c.b16 %v3116, %v3114
    %v3157 = vpack.c.b16 %v3117, %v3115
    %v3158 = vpack.c.b16 %v3120, %v3118
    %v3159 = vpack.c.b16 %v3121, %v3119
    %v3160 = vpack.c.b16 %v3124, %v3122
    %v3161 = vpack.c.b16 %v3125, %v3123
    %v3162 = vpack.c.b16 %v3128, %v3126
    %v3163 = vpack.c.b16 %v3129, %v3127
    %v3164 = vpack.c.b16 %v3132, %v3130
    %v3165 = vpack.c.b16 %v3133, %v3131
    %3198 = vmatprep.subr.bf16.mxu0 %v3135
    %3199 = vmatpush1.bf16.msra.mxu0 %v3134
    %3200 = vmatprep.subr.bf16.mxu0 %v3137
    %3201 = vmatpush1.bf16.msra.mxu0 %v3136
    %3202 = vmatprep.subr.bf16.mxu0 %v3139
    %3203 = vmatpush1.bf16.msra.mxu0 %v3138
    %3204 = vmatprep.subr.bf16.mxu0 %v3141
    %3205 = vmatpush1.bf16.msra.mxu0 %v3140
    %3206 = vmatprep.subr.bf16.mxu0 %v3143
    %3207 = vmatpush1.bf16.msra.mxu0 %v3142
    %3208 = vmatprep.subr.bf16.mxu0 %v3145
    %3209 = vmatpush1.bf16.msra.mxu0 %v3144
    %3210 = vmatprep.subr.bf16.mxu0 %v3147
    %3211 = vmatpush1.bf16.msra.mxu0 %v3146
    %3212 = vmatprep.subr.bf16.mxu0 %v3149
    %3213 = vmatpush1.bf16.msra.mxu0 %v3148
    %3214 = vmatprep.subr.bf16.mxu0 %v3151
    %3215 = vmatpush1.bf16.msra.mxu0 %v3150
    %3216 = vmatprep.subr.bf16.mxu0 %v3153
    %3217 = vmatpush1.bf16.msra.mxu0 %v3152
    %3218 = vmatprep.subr.bf16.mxu0 %v3155
    %3219 = vmatpush1.bf16.msra.mxu0 %v3154
    %3220 = vmatprep.subr.bf16.mxu0 %v3157
    %3221 = vmatpush1.bf16.msra.mxu0 %v3156
    %3222 = vmatprep.subr.bf16.mxu0 %v3159
    %3223 = vmatpush1.bf16.msra.mxu0 %v3158
    %3224 = vmatprep.subr.bf16.mxu0 %v3161
    %3225 = vmatpush1.bf16.msra.mxu0 %v3160
    %3226 = vmatprep.subr.bf16.mxu0 %v3163
    %3227 = vmatpush1.bf16.msra.mxu0 %v3162
    %3228 = vmatprep.subr.bf16.mxu0 %v3165
    %3229 = vmatpush1.bf16.msra.mxu0 %v3164
    %3230 = vmatprep.mubr.bf16.mxu0 %v2993
    %3231 = vmatmul.mubr.bf16.gmra.mrb[0].mxu0 %v2992
    %v3232 = vpop.f32.mrb[0].mxu0
    %v3233 = vadd.f32 %v3031, %v3232
    %v3234 = vpop.f32.mrb[0].mxu0
    %v3235 = vadd.f32 %v3035, %v3234
    %v3236 = vpop.f32.mrb[0].mxu0
    %v3237 = vpop.f32.mrb[0].mxu0
    %3238 = vdwg.mxu0
    %v3239 = vtanh.pop %v3233
    %v3240 = vmul.f32 %v3239, 1.442695
    %v3241 = vpow.pop %v3240
    %v3242 = vmul.f32 %v962, %v3241
    %v3243 = vadd.f32 %v3242, %v3235
    %v3244 = vpack.c.bf16 %v2733, %v2733
    %v3245 = vpack.c.bf16 %v2734, %v2734
    %s3246 = scalar_lea.vmem [#allocation10], 256
    %v3247 = vld [vmem:[%s3246] sm:$0xff]
    %v3248 = vld [vmem:[%s3246 + $0x8] sm:$0xff]
    %v3249 = vld [vmem:[%s3246 + $0x10] sm:$0xff]
    %v3250 = vld [vmem:[%s3246 + $0x18] sm:$0xff]
    %v3251 = vld [vmem:[%s3246 + $0x20] sm:$0xff]
    %v3252 = vld [vmem:[%s3246 + $0x28] sm:$0xff]
    %v3253 = vld [vmem:[%s3246 + $0x30] sm:$0xff]
    %v3254 = vld [vmem:[%s3246 + $0x38] sm:$0xff]
    %v3255 = vld [vmem:[%s3246 + $0x40] sm:$0xff]
    %v3256 = vld [vmem:[%s3246 + $0x48] sm:$0xff]
    %v3257 = vld [vmem:[%s3246 + $0x50] sm:$0xff]
    %v3258 = vld [vmem:[%s3246 + $0x58] sm:$0xff]
    %v3259 = vld [vmem:[%s3246 + $0x60] sm:$0xff]
    %v3260 = vld [vmem:[%s3246 + $0x68] sm:$0xff]
    %v3261 = vld [vmem:[%s3246 + $0x70] sm:$0xff]
    %v3262 = vld [vmem:[%s3246 + $0x78] sm:$0xff]
    %v3263 = vld [vmem:[%s3246 + $0x80] sm:$0xff]
    %v3264 = vld [vmem:[%s3246 + $0x88] sm:$0xff]
    %v3265 = vld [vmem:[%s3246 + $0x90] sm:$0xff]
    %v3266 = vld [vmem:[%s3246 + $0x98] sm:$0xff]
    %v3267 = vld [vmem:[%s3246 + $0xa0] sm:$0xff]
    %v3268 = vld [vmem:[%s3246 + $0xa8] sm:$0xff]
    %v3269 = vld [vmem:[%s3246 + $0xb0] sm:$0xff]
    %v3270 = vld [vmem:[%s3246 + $0xb8] sm:$0xff]
    %v3271 = vld [vmem:[%s3246 + $0xc0] sm:$0xff]
    %v3272 = vld [vmem:[%s3246 + $0xc8] sm:$0xff]
    %v3273 = vld [vmem:[%s3246 + $0xd0] sm:$0xff]
    %v3274 = vld [vmem:[%s3246 + $0xd8] sm:$0xff]
    %v3275 = vld [vmem:[%s3246 + $0xe0] sm:$0xff]
    %v3276 = vld [vmem:[%s3246 + $0xe8] sm:$0xff]
    %v3277 = vld [vmem:[%s3246 + $0xf0] sm:$0xff]
    %v3278 = vld [vmem:[%s3246 + $0xf8] sm:$0xff]
    %s3279 = scalar_lea.vmem [#allocation11], 2
    %v3280 = vld [vmem:[%s3279] sm:$0x3]
    %v3282 = vlaneseq
    %v3283 = vshrl.u32 %v3282, 7
    %v3284 = vsub.s32 0, %v3283
    %v3285 = vrot.slane %v3280, %v3284
    %v3286 = vlaneseq
    %v3287 = vshrl.u32 %v3286, 7
    %v3288 = vsub.s32 1, %v3287
    %v3289 = vrot.slane %v3280, %v3288
    %v3324 = vunpack.c.l.b16 %v3247
    %v3325 = vunpack.c.h.b16 %v3247
    %v3326 = vunpack.c.l.b16 %v3248
    %v3327 = vunpack.c.h.b16 %v3248
    %v3328 = vunpack.c.l.b16 %v3249
    %v3329 = vunpack.c.h.b16 %v3249
    %v3330 = vunpack.c.l.b16 %v3250
    %v3331 = vunpack.c.h.b16 %v3250
    %v3332 = vunpack.c.l.b16 %v3251
    %v3333 = vunpack.c.h.b16 %v3251
    %v3334 = vunpack.c.l.b16 %v3252
    %v3335 = vunpack.c.h.b16 %v3252
    %v3336 = vunpack.c.l.b16 %v3253
    %v3337 = vunpack.c.h.b16 %v3253
    %v3338 = vunpack.c.l.b16 %v3254
    %v3339 = vunpack.c.h.b16 %v3254
    %v3340 = vunpack.c.l.b16 %v3255
    %v3341 = vunpack.c.h.b16 %v3255
    %v3342 = vunpack.c.l.b16 %v3256
    %v3343 = vunpack.c.h.b16 %v3256
    %v3344 = vunpack.c.l.b16 %v3257
    %v3345 = vunpack.c.h.b16 %v3257
    %v3346 = vunpack.c.l.b16 %v3258
    %v3347 = vunpack.c.h.b16 %v3258
    %v3348 = vunpack.c.l.b16 %v3259
    %v3349 = vunpack.c.h.b16 %v3259
    %v3350 = vunpack.c.l.b16 %v3260
    %v3351 = vunpack.c.h.b16 %v3260
    %v3352 = vunpack.c.l.b16 %v3261
    %v3353 = vunpack.c.h.b16 %v3261
    %v3354 = vunpack.c.l.b16 %v3262
    %v3355 = vunpack.c.h.b16 %v3262
    %v3356 = vunpack.c.l.b16 %v3263
    %v3357 = vunpack.c.h.b16 %v3263
    %v3358 = vunpack.c.l.b16 %v3264
    %v3359 = vunpack.c.h.b16 %v3264
    %v3360 = vunpack.c.l.b16 %v3265
    %v3361 = vunpack.c.h.b16 %v3265
    %v3362 = vunpack.c.l.b16 %v3266
    %v3363 = vunpack.c.h.b16 %v3266
    %v3364 = vunpack.c.l.b16 %v3267
    %v3365 = vunpack.c.h.b16 %v3267
    %v3366 = vunpack.c.l.b16 %v3268
    %v3367 = vunpack.c.h.b16 %v3268
    %v3368 = vunpack.c.l.b16 %v3269
    %v3369 = vunpack.c.h.b16 %v3269
    %v3370 = vunpack.c.l.b16 %v3270
    %v3371 = vunpack.c.h.b16 %v3270
    %v3372 = vunpack.c.l.b16 %v3271
    %v3373 = vunpack.c.h.b16 %v3271
    %v3374 = vunpack.c.l.b16 %v3272
    %v3375 = vunpack.c.h.b16 %v3272
    %v3376 = vunpack.c.l.b16 %v3273
    %v3377 = vunpack.c.h.b16 %v3273
    %v3378 = vunpack.c.l.b16 %v3274
    %v3379 = vunpack.c.h.b16 %v3274
    %v3380 = vunpack.c.l.b16 %v3275
    %v3381 = vunpack.c.h.b16 %v3275
    %v3382 = vunpack.c.l.b16 %v3276
    %v3383 = vunpack.c.h.b16 %v3276
    %v3384 = vunpack.c.l.b16 %v3277
    %v3385 = vunpack.c.h.b16 %v3277
    %v3386 = vunpack.c.l.b16 %v3278
    %v3387 = vunpack.c.h.b16 %v3278
    %v3388 = vpack.c.b16 %v3326, %v3324
    %v3389 = vpack.c.b16 %v3327, %v3325
    %v3390 = vpack.c.b16 %v3330, %v3328
    %v3391 = vpack.c.b16 %v3331, %v3329
    %v3392 = vpack.c.b16 %v3334, %v3332
    %v3393 = vpack.c.b16 %v3335, %v3333
    %v3394 = vpack.c.b16 %v3338, %v3336
    %v3395 = vpack.c.b16 %v3339, %v3337
    %v3396 = vpack.c.b16 %v3342, %v3340
    %v3397 = vpack.c.b16 %v3343, %v3341
    %v3398 = vpack.c.b16 %v3346, %v3344
    %v3399 = vpack.c.b16 %v3347, %v3345
    %v3400 = vpack.c.b16 %v3350, %v3348
    %v3401 = vpack.c.b16 %v3351, %v3349
    %v3402 = vpack.c.b16 %v3354, %v3352
    %v3403 = vpack.c.b16 %v3355, %v3353
    %v3404 = vpack.c.b16 %v3358, %v3356
    %v3405 = vpack.c.b16 %v3359, %v3357
    %v3406 = vpack.c.b16 %v3362, %v3360
    %v3407 = vpack.c.b16 %v3363, %v3361
    %v3408 = vpack.c.b16 %v3366, %v3364
    %v3409 = vpack.c.b16 %v3367, %v3365
    %v3410 = vpack.c.b16 %v3370, %v3368
    %v3411 = vpack.c.b16 %v3371, %v3369
    %v3412 = vpack.c.b16 %v3374, %v3372
    %v3413 = vpack.c.b16 %v3375, %v3373
    %v3414 = vpack.c.b16 %v3378, %v3376
    %v3415 = vpack.c.b16 %v3379, %v3377
    %v3416 = vpack.c.b16 %v3382, %v3380
    %v3417 = vpack.c.b16 %v3383, %v3381
    %v3418 = vpack.c.b16 %v3386, %v3384
    %v3419 = vpack.c.b16 %v3387, %v3385
    %3452 = vmatprep.subr.bf16.mxu0 %v3389
    %3453 = vmatpush1.bf16.msra.mxu0 %v3388
    %3454 = vmatprep.subr.bf16.mxu0 %v3391
    %3455 = vmatpush1.bf16.msra.mxu0 %v3390
    %3456 = vmatprep.subr.bf16.mxu0 %v3393
    %3457 = vmatpush1.bf16.msra.mxu0 %v3392
    %3458 = vmatprep.subr.bf16.mxu0 %v3395
    %3459 = vmatpush1.bf16.msra.mxu0 %v3394
    %3460 = vmatprep.subr.bf16.mxu0 %v3397
    %3461 = vmatpush1.bf16.msra.mxu0 %v3396
    %3462 = vmatprep.subr.bf16.mxu0 %v3399
    %3463 = vmatpush1.bf16.msra.mxu0 %v3398
    %3464 = vmatprep.subr.bf16.mxu0 %v3401
    %3465 = vmatpush1.bf16.msra.mxu0 %v3400
    %3466 = vmatprep.subr.bf16.mxu0 %v3403
    %3467 = vmatpush1.bf16.msra.mxu0 %v3402
    %3468 = vmatprep.subr.bf16.mxu0 %v3405
    %3469 = vmatpush1.bf16.msra.mxu0 %v3404
    %3470 = vmatprep.subr.bf16.mxu0 %v3407
    %3471 = vmatpush1.bf16.msra.mxu0 %v3406
    %3472 = vmatprep.subr.bf16.mxu0 %v3409
    %3473 = vmatpush1.bf16.msra.mxu0 %v3408
    %3474 = vmatprep.subr.bf16.mxu0 %v3411
    %3475 = vmatpush1.bf16.msra.mxu0 %v3410
    %3476 = vmatprep.subr.bf16.mxu0 %v3413
    %3477 = vmatpush1.bf16.msra.mxu0 %v3412
    %3478 = vmatprep.subr.bf16.mxu0 %v3415
    %3479 = vmatpush1.bf16.msra.mxu0 %v3414
    %3480 = vmatprep.subr.bf16.mxu0 %v3417
    %3481 = vmatpush1.bf16.msra.mxu0 %v3416
    %3482 = vmatprep.subr.bf16.mxu0 %v3419
    %3483 = vmatpush1.bf16.msra.mxu0 %v3418
    %3484 = vmatprep.mubr.bf16.mxu0 %v3245
    %3485 = vmatmul.mubr.bf16.gmra.mrb[0].mxu0 %v3244
    %v3486 = vpop.f32.mrb[0].mxu0
    %v3487 = vadd.f32 %v3285, %v3486
    %v3488 = vpop.f32.mrb[0].mxu0
    %v3489 = vadd.f32 %v3289, %v3488
    %v3490 = vpop.f32.mrb[0].mxu0
    %v3491 = vpop.f32.mrb[0].mxu0
    %3492 = vdwg.mxu0
    %v3493 = vmax.f32 %v3487, 0.0
    %v3494 = vmax.f32 %v3489, 0.0
    %v3495 = vpack.c.bf16 %v3493, %v3493
    %v3496 = vpack.c.bf16 %v3494, %v3494
    %s3497 = scalar_lea.vmem [#allocation13], 256
    %v3498 = vld [vmem:[%s3497] sm:$0xff]
    %v3499 = vld [vmem:[%s3497 + $0x8] sm:$0xff]
    %v3500 = vld [vmem:[%s3497 + $0x10] sm:$0xff]
    %v3501 = vld [vmem:[%s3497 + $0x18] sm:$0xff]
    %v3502 = vld [vmem:[%s3497 + $0x20] sm:$0xff]
    %v3503 = vld [vmem:[%s3497 + $0x28] sm:$0xff]
    %v3504 = vld [vmem:[%s3497 + $0x30] sm:$0xff]
    %v3505 = vld [vmem:[%s3497 + $0x38] sm:$0xff]
    %v3506 = vld [vmem:[%s3497 + $0x40] sm:$0xff]
    %v3507 = vld [vmem:[%s3497 + $0x48] sm:$0xff]
    %v3508 = vld [vmem:[%s3497 + $0x50] sm:$0xff]
    %v3509 = vld [vmem:[%s3497 + $0x58] sm:$0xff]
    %v3510 = vld [vmem:[%s3497 + $0x60] sm:$0xff]
    %v3511 = vld [vmem:[%s3497 + $0x68] sm:$0xff]
    %v3512 = vld [vmem:[%s3497 + $0x70] sm:$0xff]
    %v3513 = vld [vmem:[%s3497 + $0x78] sm:$0xff]
    %v3514 = vld [vmem:[%s3497 + $0x80] sm:$0xff]
    %v3515 = vld [vmem:[%s3497 + $0x88] sm:$0xff]
    %v3516 = vld [vmem:[%s3497 + $0x90] sm:$0xff]
    %v3517 = vld [vmem:[%s3497 + $0x98] sm:$0xff]
    %v3518 = vld [vmem:[%s3497 + $0xa0] sm:$0xff]
    %v3519 = vld [vmem:[%s3497 + $0xa8] sm:$0xff]
    %v3520 = vld [vmem:[%s3497 + $0xb0] sm:$0xff]
    %v3521 = vld [vmem:[%s3497 + $0xb8] sm:$0xff]
    %v3522 = vld [vmem:[%s3497 + $0xc0] sm:$0xff]
    %v3523 = vld [vmem:[%s3497 + $0xc8] sm:$0xff]
    %v3524 = vld [vmem:[%s3497 + $0xd0] sm:$0xff]
    %v3525 = vld [vmem:[%s3497 + $0xd8] sm:$0xff]
    %v3526 = vld [vmem:[%s3497 + $0xe0] sm:$0xff]
    %v3527 = vld [vmem:[%s3497 + $0xe8] sm:$0xff]
    %v3528 = vld [vmem:[%s3497 + $0xf0] sm:$0xff]
    %v3529 = vld [vmem:[%s3497 + $0xf8] sm:$0xff]
    %s3530 = scalar_lea.vmem [#allocation14], 2
    %v3531 = vld [vmem:[%s3530] sm:$0x3]
    %v3533 = vlaneseq
    %v3534 = vshrl.u32 %v3533, 7
    %v3535 = vsub.s32 0, %v3534
    %v3536 = vrot.slane %v3531, %v3535
    %v3537 = vlaneseq
    %v3538 = vshrl.u32 %v3537, 7
    %v3539 = vsub.s32 1, %v3538
    %v3540 = vrot.slane %v3531, %v3539
    %v3575 = vunpack.c.l.b16 %v3498
    %v3576 = vunpack.c.h.b16 %v3498
    %v3577 = vunpack.c.l.b16 %v3499
    %v3578 = vunpack.c.h.b16 %v3499
    %v3579 = vunpack.c.l.b16 %v3500
    %v3580 = vunpack.c.h.b16 %v3500
    %v3581 = vunpack.c.l.b16 %v3501
    %v3582 = vunpack.c.h.b16 %v3501
    %v3583 = vunpack.c.l.b16 %v3502
    %v3584 = vunpack.c.h.b16 %v3502
    %v3585 = vunpack.c.l.b16 %v3503
    %v3586 = vunpack.c.h.b16 %v3503
    %v3587 = vunpack.c.l.b16 %v3504
    %v3588 = vunpack.c.h.b16 %v3504
    %v3589 = vunpack.c.l.b16 %v3505
    %v3590 = vunpack.c.h.b16 %v3505
    %v3591 = vunpack.c.l.b16 %v3506
    %v3592 = vunpack.c.h.b16 %v3506
    %v3593 = vunpack.c.l.b16 %v3507
    %v3594 = vunpack.c.h.b16 %v3507
    %v3595 = vunpack.c.l.b16 %v3508
    %v3596 = vunpack.c.h.b16 %v3508
    %v3597 = vunpack.c.l.b16 %v3509
    %v3598 = vunpack.c.h.b16 %v3509
    %v3599 = vunpack.c.l.b16 %v3510
    %v3600 = vunpack.c.h.b16 %v3510
    %v3601 = vunpack.c.l.b16 %v3511
    %v3602 = vunpack.c.h.b16 %v3511
    %v3603 = vunpack.c.l.b16 %v3512
    %v3604 = vunpack.c.h.b16 %v3512
    %v3605 = vunpack.c.l.b16 %v3513
    %v3606 = vunpack.c.h.b16 %v3513
    %v3607 = vunpack.c.l.b16 %v3514
    %v3608 = vunpack.c.h.b16 %v3514
    %v3609 = vunpack.c.l.b16 %v3515
    %v3610 = vunpack.c.h.b16 %v3515
    %v3611 = vunpack.c.l.b16 %v3516
    %v3612 = vunpack.c.h.b16 %v3516
    %v3613 = vunpack.c.l.b16 %v3517
    %v3614 = vunpack.c.h.b16 %v3517
    %v3615 = vunpack.c.l.b16 %v3518
    %v3616 = vunpack.c.h.b16 %v3518
    %v3617 = vunpack.c.l.b16 %v3519
    %v3618 = vunpack.c.h.b16 %v3519
    %v3619 = vunpack.c.l.b16 %v3520
    %v3620 = vunpack.c.h.b16 %v3520
    %v3621 = vunpack.c.l.b16 %v3521
    %v3622 = vunpack.c.h.b16 %v3521
    %v3623 = vunpack.c.l.b16 %v3522
    %v3624 = vunpack.c.h.b16 %v3522
    %v3625 = vunpack.c.l.b16 %v3523
    %v3626 = vunpack.c.h.b16 %v3523
    %v3627 = vunpack.c.l.b16 %v3524
    %v3628 = vunpack.c.h.b16 %v3524
    %v3629 = vunpack.c.l.b16 %v3525
    %v3630 = vunpack.c.h.b16 %v3525
    %v3631 = vunpack.c.l.b16 %v3526
    %v3632 = vunpack.c.h.b16 %v3526
    %v3633 = vunpack.c.l.b16 %v3527
    %v3634 = vunpack.c.h.b16 %v3527
    %v3635 = vunpack.c.l.b16 %v3528
    %v3636 = vunpack.c.h.b16 %v3528
    %v3637 = vunpack.c.l.b16 %v3529
    %v3638 = vunpack.c.h.b16 %v3529
    %v3639 = vpack.c.b16 %v3577, %v3575
    %v3640 = vpack.c.b16 %v3578, %v3576
    %v3641 = vpack.c.b16 %v3581, %v3579
    %v3642 = vpack.c.b16 %v3582, %v3580
    %v3643 = vpack.c.b16 %v3585, %v3583
    %v3644 = vpack.c.b16 %v3586, %v3584
    %v3645 = vpack.c.b16 %v3589, %v3587
    %v3646 = vpack.c.b16 %v3590, %v3588
    %v3647 = vpack.c.b16 %v3593, %v3591
    %v3648 = vpack.c.b16 %v3594, %v3592
    %v3649 = vpack.c.b16 %v3597, %v3595
    %v3650 = vpack.c.b16 %v3598, %v3596
    %v3651 = vpack.c.b16 %v3601, %v3599
    %v3652 = vpack.c.b16 %v3602, %v3600
    %v3653 = vpack.c.b16 %v3605, %v3603
    %v3654 = vpack.c.b16 %v3606, %v3604
    %v3655 = vpack.c.b16 %v3609, %v3607
    %v3656 = vpack.c.b16 %v3610, %v3608
    %v3657 = vpack.c.b16 %v3613, %v3611
    %v3658 = vpack.c.b16 %v3614, %v3612
    %v3659 = vpack.c.b16 %v3617, %v3615
    %v3660 = vpack.c.b16 %v3618, %v3616
    %v3661 = vpack.c.b16 %v3621, %v3619
    %v3662 = vpack.c.b16 %v3622, %v3620
    %v3663 = vpack.c.b16 %v3625, %v3623
    %v3664 = vpack.c.b16 %v3626, %v3624
    %v3665 = vpack.c.b16 %v3629, %v3627
    %v3666 = vpack.c.b16 %v3630, %v3628
    %v3667 = vpack.c.b16 %v3633, %v3631
    %v3668 = vpack.c.b16 %v3634, %v3632
    %v3669 = vpack.c.b16 %v3637, %v3635
    %v3670 = vpack.c.b16 %v3638, %v3636
    %3703 = vmatprep.subr.bf16.mxu0 %v3640
    %3704 = vmatpush1.bf16.msra.mxu0 %v3639
    %3705 = vmatprep.subr.bf16.mxu0 %v3642
    %3706 = vmatpush1.bf16.msra.mxu0 %v3641
    %3707 = vmatprep.subr.bf16.mxu0 %v3644
    %3708 = vmatpush1.bf16.msra.mxu0 %v3643
    %3709 = vmatprep.subr.bf16.mxu0 %v3646
    %3710 = vmatpush1.bf16.msra.mxu0 %v3645
    %3711 = vmatprep.subr.bf16.mxu0 %v3648
    %3712 = vmatpush1.bf16.msra.mxu0 %v3647
    %3713 = vmatprep.subr.bf16.mxu0 %v3650
    %3714 = vmatpush1.bf16.msra.mxu0 %v3649
    %3715 = vmatprep.subr.bf16.mxu0 %v3652
    %3716 = vmatpush1.bf16.msra.mxu0 %v3651
    %3717 = vmatprep.subr.bf16.mxu0 %v3654
    %3718 = vmatpush1.bf16.msra.mxu0 %v3653
    %3719 = vmatprep.subr.bf16.mxu0 %v3656
    %3720 = vmatpush1.bf16.msra.mxu0 %v3655
    %3721 = vmatprep.subr.bf16.mxu0 %v3658
    %3722 = vmatpush1.bf16.msra.mxu0 %v3657
    %3723 = vmatprep.subr.bf16.mxu0 %v3660
    %3724 = vmatpush1.bf16.msra.mxu0 %v3659
    %3725 = vmatprep.subr.bf16.mxu0 %v3662
    %3726 = vmatpush1.bf16.msra.mxu0 %v3661
    %3727 = vmatprep.subr.bf16.mxu0 %v3664
    %3728 = vmatpush1.bf16.msra.mxu0 %v3663
    %3729 = vmatprep.subr.bf16.mxu0 %v3666
    %3730 = vmatpush1.bf16.msra.mxu0 %v3665
    %3731 = vmatprep.subr.bf16.mxu0 %v3668
    %3732 = vmatpush1.bf16.msra.mxu0 %v3667
    %3733 = vmatprep.subr.bf16.mxu0 %v3670
    %3734 = vmatpush1.bf16.msra.mxu0 %v3669
    %3735 = vmatprep.mubr.bf16.mxu0 %v3496
    %3736 = vmatmul.mubr.bf16.gmra.mrb[0].mxu0 %v3495
    %v3737 = vpop.f32.mrb[0].mxu0
    %v3738 = vadd.f32 %v3536, %v3737
    %v3739 = vpop.f32.mrb[0].mxu0
    %v3740 = vadd.f32 %v3540, %v3739
    %v3741 = vpop.f32.mrb[0].mxu0
    %v3742 = vpop.f32.mrb[0].mxu0
    %3743 = vdwg.mxu0
    %v3744 = vtanh.pop %v3738
    %v3745 = vmul.f32 %v3744, 1.442695
    %v3746 = vpow.pop %v3745
    %v3747 = vmul.f32 %v3243, %v3746
    %v3748 = vadd.f32 %v3747, %v3740
    %v3749 = vpack.c.bf16 %v2735, %v2735
    %v3750 = vpack.c.bf16 %v2736, %v2736
    %s3751 = scalar_lea.vmem [#allocation10], 512
    %v3752 = vld [vmem:[%s3751] sm:$0xff]
    %v3753 = vld [vmem:[%s3751 + $0x8] sm:$0xff]
    %v3754 = vld [vmem:[%s3751 + $0x10] sm:$0xff]
    %v3755 = vld [vmem:[%s3751 + $0x18] sm:$0xff]
    %v3756 = vld [vmem:[%s3751 + $0x20] sm:$0xff]
    %v3757 = vld [vmem:[%s3751 + $0x28] sm:$0xff]
    %v3758 = vld [vmem:[%s3751 + $0x30] sm:$0xff]
    %v3759 = vld [vmem:[%s3751 + $0x38] sm:$0xff]
    %v3760 = vld [vmem:[%s3751 + $0x40] sm:$0xff]
    %v3761 = vld [vmem:[%s3751 + $0x48] sm:$0xff]
    %v3762 = vld [vmem:[%s3751 + $0x50] sm:$0xff]
    %v3763 = vld [vmem:[%s3751 + $0x58] sm:$0xff]
    %v3764 = vld [vmem:[%s3751 + $0x60] sm:$0xff]
    %v3765 = vld [vmem:[%s3751 + $0x68] sm:$0xff]
    %v3766 = vld [vmem:[%s3751 + $0x70] sm:$0xff]
    %v3767 = vld [vmem:[%s3751 + $0x78] sm:$0xff]
    %v3768 = vld [vmem:[%s3751 + $0x80] sm:$0xff]
    %v3769 = vld [vmem:[%s3751 + $0x88] sm:$0xff]
    %v3770 = vld [vmem:[%s3751 + $0x90] sm:$0xff]
    %v3771 = vld [vmem:[%s3751 + $0x98] sm:$0xff]
    %v3772 = vld [vmem:[%s3751 + $0xa0] sm:$0xff]
    %v3773 = vld [vmem:[%s3751 + $0xa8] sm:$0xff]
    %v3774 = vld [vmem:[%s3751 + $0xb0] sm:$0xff]
    %v3775 = vld [vmem:[%s3751 + $0xb8] sm:$0xff]
    %v3776 = vld [vmem:[%s3751 + $0xc0] sm:$0xff]
    %v3777 = vld [vmem:[%s3751 + $0xc8] sm:$0xff]
    %v3778 = vld [vmem:[%s3751 + $0xd0] sm:$0xff]
    %v3779 = vld [vmem:[%s3751 + $0xd8] sm:$0xff]
    %v3780 = vld [vmem:[%s3751 + $0xe0] sm:$0xff]
    %v3781 = vld [vmem:[%s3751 + $0xe8] sm:$0xff]
    %v3782 = vld [vmem:[%s3751 + $0xf0] sm:$0xff]
    %v3783 = vld [vmem:[%s3751 + $0xf8] sm:$0xff]
    %s3784 = scalar_lea.vmem [#allocation11], 4
    %v3785 = vld [vmem:[%s3784] sm:$0x3]
    %v3787 = vlaneseq
    %v3788 = vshrl.u32 %v3787, 7
    %v3789 = vsub.s32 0, %v3788
    %v3790 = vrot.slane %v3785, %v3789
    %v3791 = vlaneseq
    %v3792 = vshrl.u32 %v3791, 7
    %v3793 = vsub.s32 1, %v3792
    %v3794 = vrot.slane %v3785, %v3793
    %v3829 = vunpack.c.l.b16 %v3752
    %v3830 = vunpack.c.h.b16 %v3752
    %v3831 = vunpack.c.l.b16 %v3753
    %v3832 = vunpack.c.h.b16 %v3753
    %v3833 = vunpack.c.l.b16 %v3754
    %v3834 = vunpack.c.h.b16 %v3754
    %v3835 = vunpack.c.l.b16 %v3755
    %v3836 = vunpack.c.h.b16 %v3755
    %v3837 = vunpack.c.l.b16 %v3756
    %v3838 = vunpack.c.h.b16 %v3756
    %v3839 = vunpack.c.l.b16 %v3757
    %v3840 = vunpack.c.h.b16 %v3757
    %v3841 = vunpack.c.l.b16 %v3758
    %v3842 = vunpack.c.h.b16 %v3758
    %v3843 = vunpack.c.l.b16 %v3759
    %v3844 = vunpack.c.h.b16 %v3759
    %v3845 = vunpack.c.l.b16 %v3760
    %v3846 = vunpack.c.h.b16 %v3760
    %v3847 = vunpack.c.l.b16 %v3761
    %v3848 = vunpack.c.h.b16 %v3761
    %v3849 = vunpack.c.l.b16 %v3762
    %v3850 = vunpack.c.h.b16 %v3762
    %v3851 = vunpack.c.l.b16 %v3763
    %v3852 = vunpack.c.h.b16 %v3763
    %v3853 = vunpack.c.l.b16 %v3764
    %v3854 = vunpack.c.h.b16 %v3764
    %v3855 = vunpack.c.l.b16 %v3765
    %v3856 = vunpack.c.h.b16 %v3765
    %v3857 = vunpack.c.l.b16 %v3766
    %v3858 = vunpack.c.h.b16 %v3766
    %v3859 = vunpack.c.l.b16 %v3767
    %v3860 = vunpack.c.h.b16 %v3767
    %v3861 = vunpack.c.l.b16 %v3768
    %v3862 = vunpack.c.h.b16 %v3768
    %v3863 = vunpack.c.l.b16 %v3769
    %v3864 = vunpack.c.h.b16 %v3769
    %v3865 = vunpack.c.l.b16 %v3770
    %v3866 = vunpack.c.h.b16 %v3770
    %v3867 = vunpack.c.l.b16 %v3771
    %v3868 = vunpack.c.h.b16 %v3771
    %v3869 = vunpack.c.l.b16 %v3772
    %v3870 = vunpack.c.h.b16 %v3772
    %v3871 = vunpack.c.l.b16 %v3773
    %v3872 = vunpack.c.h.b16 %v3773
    %v3873 = vunpack.c.l.b16 %v3774
    %v3874 = vunpack.c.h.b16 %v3774
    %v3875 = vunpack.c.l.b16 %v3775
    %v3876 = vunpack.c.h.b16 %v3775
    %v3877 = vunpack.c.l.b16 %v3776
    %v3878 = vunpack.c.h.b16 %v3776
    %v3879 = vunpack.c.l.b16 %v3777
    %v3880 = vunpack.c.h.b16 %v3777
    %v3881 = vunpack.c.l.b16 %v3778
    %v3882 = vunpack.c.h.b16 %v3778
    %v3883 = vunpack.c.l.b16 %v3779
    %v3884 = vunpack.c.h.b16 %v3779
    %v3885 = vunpack.c.l.b16 %v3780
    %v3886 = vunpack.c.h.b16 %v3780
    %v3887 = vunpack.c.l.b16 %v3781
    %v3888 = vunpack.c.h.b16 %v3781
    %v3889 = vunpack.c.l.b16 %v3782
    %v3890 = vunpack.c.h.b16 %v3782
    %v3891 = vunpack.c.l.b16 %v3783
    %v3892 = vunpack.c.h.b16 %v3783
    %v3893 = vpack.c.b16 %v3831, %v3829
    %v3894 = vpack.c.b16 %v3832, %v3830
    %v3895 = vpack.c.b16 %v3835, %v3833
    %v3896 = vpack.c.b16 %v3836, %v3834
    %v3897 = vpack.c.b16 %v3839, %v3837
    %v3898 = vpack.c.b16 %v3840, %v3838
    %v3899 = vpack.c.b16 %v3843, %v3841
    %v3900 = vpack.c.b16 %v3844, %v3842
    %v3901 = vpack.c.b16 %v3847, %v3845
    %v3902 = vpack.c.b16 %v3848, %v3846
    %v3903 = vpack.c.b16 %v3851, %v3849
    %v3904 = vpack.c.b16 %v3852, %v3850
    %v3905 = vpack.c.b16 %v3855, %v3853
    %v3906 = vpack.c.b16 %v3856, %v3854
    %v3907 = vpack.c.b16 %v3859, %v3857
    %v3908 = vpack.c.b16 %v3860, %v3858
    %v3909 = vpack.c.b16 %v3863, %v3861
    %v3910 = vpack.c.b16 %v3864, %v3862
    %v3911 = vpack.c.b16 %v3867, %v3865
    %v3912 = vpack.c.b16 %v3868, %v3866
    %v3913 = vpack.c.b16 %v3871, %v3869
    %v3914 = vpack.c.b16 %v3872, %v3870
    %v3915 = vpack.c.b16 %v3875, %v3873
    %v3916 = vpack.c.b16 %v3876, %v3874
    %v3917 = vpack.c.b16 %v3879, %v3877
    %v3918 = vpack.c.b16 %v3880, %v3878
    %v3919 = vpack.c.b16 %v3883, %v3881
    %v3920 = vpack.c.b16 %v3884, %v3882
    %v3921 = vpack.c.b16 %v3887, %v3885
    %v3922 = vpack.c.b16 %v3888, %v3886
    %v3923 = vpack.c.b16 %v3891, %v3889
    %v3924 = vpack.c.b16 %v3892, %v3890
    %3957 = vmatprep.subr.bf16.mxu0 %v3894
    %3958 = vmatpush1.bf16.msra.mxu0 %v3893
    %3959 = vmatprep.subr.bf16.mxu0 %v3896
    %3960 = vmatpush1.bf16.msra.mxu0 %v3895
    %3961 = vmatprep.subr.bf16.mxu0 %v3898
    %3962 = vmatpush1.bf16.msra.mxu0 %v3897
    %3963 = vmatprep.subr.bf16.mxu0 %v3900
    %3964 = vmatpush1.bf16.msra.mxu0 %v3899
    %3965 = vmatprep.subr.bf16.mxu0 %v3902
    %3966 = vmatpush1.bf16.msra.mxu0 %v3901
    %3967 = vmatprep.subr.bf16.mxu0 %v3904
    %3968 = vmatpush1.bf16.msra.mxu0 %v3903
    %3969 = vmatprep.subr.bf16.mxu0 %v3906
    %3970 = vmatpush1.bf16.msra.mxu0 %v3905
    %3971 = vmatprep.subr.bf16.mxu0 %v3908
    %3972 = vmatpush1.bf16.msra.mxu0 %v3907
    %3973 = vmatprep.subr.bf16.mxu0 %v3910
    %3974 = vmatpush1.bf16.msra.mxu0 %v3909
    %3975 = vmatprep.subr.bf16.mxu0 %v3912
    %3976 = vmatpush1.bf16.msra.mxu0 %v3911
    %3977 = vmatprep.subr.bf16.mxu0 %v3914
    %3978 = vmatpush1.bf16.msra.mxu0 %v3913
    %3979 = vmatprep.subr.bf16.mxu0 %v3916
    %3980 = vmatpush1.bf16.msra.mxu0 %v3915
    %3981 = vmatprep.subr.bf16.mxu0 %v3918
    %3982 = vmatpush1.bf16.msra.mxu0 %v3917
    %3983 = vmatprep.subr.bf16.mxu0 %v3920
    %3984 = vmatpush1.bf16.msra.mxu0 %v3919
    %3985 = vmatprep.subr.bf16.mxu0 %v3922
    %3986 = vmatpush1.bf16.msra.mxu0 %v3921
    %3987 = vmatprep.subr.bf16.mxu0 %v3924
    %3988 = vmatpush1.bf16.msra.mxu0 %v3923
    %3989 = vmatprep.mubr.bf16.mxu0 %v3750
    %3990 = vmatmul.mubr.bf16.gmra.mrb[0].mxu0 %v3749
    %v3991 = vpop.f32.mrb[0].mxu0
    %v3992 = vadd.f32 %v3790, %v3991
    %v3993 = vpop.f32.mrb[0].mxu0
    %v3994 = vadd.f32 %v3794, %v3993
    %v3995 = vpop.f32.mrb[0].mxu0
    %v3996 = vpop.f32.mrb[0].mxu0
    %3997 = vdwg.mxu0
    %v3998 = vmax.f32 %v3992, 0.0
    %v3999 = vmax.f32 %v3994, 0.0
    %v4000 = vpack.c.bf16 %v3998, %v3998
    %v4001 = vpack.c.bf16 %v3999, %v3999
    %s4002 = scalar_lea.vmem [#allocation13], 512
    %v4003 = vld [vmem:[%s4002] sm:$0xff]
    %v4004 = vld [vmem:[%s4002 + $0x8] sm:$0xff]
    %v4005 = vld [vmem:[%s4002 + $0x10] sm:$0xff]
    %v4006 = vld [vmem:[%s4002 + $0x18] sm:$0xff]
    %v4007 = vld [vmem:[%s4002 + $0x20] sm:$0xff]
    %v4008 = vld [vmem:[%s4002 + $0x28] sm:$0xff]
    %v4009 = vld [vmem:[%s4002 + $0x30] sm:$0xff]
    %v4010 = vld [vmem:[%s4002 + $0x38] sm:$0xff]
    %v4011 = vld [vmem:[%s4002 + $0x40] sm:$0xff]
    %v4012 = vld [vmem:[%s4002 + $0x48] sm:$0xff]
    %v4013 = vld [vmem:[%s4002 + $0x50] sm:$0xff]
    %v4014 = vld [vmem:[%s4002 + $0x58] sm:$0xff]
    %v4015 = vld [vmem:[%s4002 + $0x60] sm:$0xff]
    %v4016 = vld [vmem:[%s4002 + $0x68] sm:$0xff]
    %v4017 = vld [vmem:[%s4002 + $0x70] sm:$0xff]
    %v4018 = vld [vmem:[%s4002 + $0x78] sm:$0xff]
    %v4019 = vld [vmem:[%s4002 + $0x80] sm:$0xff]
    %v4020 = vld [vmem:[%s4002 + $0x88] sm:$0xff]
    %v4021 = vld [vmem:[%s4002 + $0x90] sm:$0xff]
    %v4022 = vld [vmem:[%s4002 + $0x98] sm:$0xff]
    %v4023 = vld [vmem:[%s4002 + $0xa0] sm:$0xff]
    %v4024 = vld [vmem:[%s4002 + $0xa8] sm:$0xff]
    %v4025 = vld [vmem:[%s4002 + $0xb0] sm:$0xff]
    %v4026 = vld [vmem:[%s4002 + $0xb8] sm:$0xff]
    %v4027 = vld [vmem:[%s4002 + $0xc0] sm:$0xff]
    %v4028 = vld [vmem:[%s4002 + $0xc8] sm:$0xff]
    %v4029 = vld [vmem:[%s4002 + $0xd0] sm:$0xff]
    %v4030 = vld [vmem:[%s4002 + $0xd8] sm:$0xff]
    %v4031 = vld [vmem:[%s4002 + $0xe0] sm:$0xff]
    %v4032 = vld [vmem:[%s4002 + $0xe8] sm:$0xff]
    %v4033 = vld [vmem:[%s4002 + $0xf0] sm:$0xff]
    %v4034 = vld [vmem:[%s4002 + $0xf8] sm:$0xff]
    %s4035 = scalar_lea.vmem [#allocation14], 4
    %v4036 = vld [vmem:[%s4035] sm:$0x3]
    %v4038 = vlaneseq
    %v4039 = vshrl.u32 %v4038, 7
    %v4040 = vsub.s32 0, %v4039
    %v4041 = vrot.slane %v4036, %v4040
    %v4042 = vlaneseq
    %v4043 = vshrl.u32 %v4042, 7
    %v4044 = vsub.s32 1, %v4043
    %v4045 = vrot.slane %v4036, %v4044
    %v4080 = vunpack.c.l.b16 %v4003
    %v4081 = vunpack.c.h.b16 %v4003
    %v4082 = vunpack.c.l.b16 %v4004
    %v4083 = vunpack.c.h.b16 %v4004
    %v4084 = vunpack.c.l.b16 %v4005
    %v4085 = vunpack.c.h.b16 %v4005
    %v4086 = vunpack.c.l.b16 %v4006
    %v4087 = vunpack.c.h.b16 %v4006
    %v4088 = vunpack.c.l.b16 %v4007
    %v4089 = vunpack.c.h.b16 %v4007
    %v4090 = vunpack.c.l.b16 %v4008
    %v4091 = vunpack.c.h.b16 %v4008
    %v4092 = vunpack.c.l.b16 %v4009
    %v4093 = vunpack.c.h.b16 %v4009
    %v4094 = vunpack.c.l.b16 %v4010
    %v4095 = vunpack.c.h.b16 %v4010
    %v4096 = vunpack.c.l.b16 %v4011
    %v4097 = vunpack.c.h.b16 %v4011
    %v4098 = vunpack.c.l.b16 %v4012
    %v4099 = vunpack.c.h.b16 %v4012
    %v4100 = vunpack.c.l.b16 %v4013
    %v4101 = vunpack.c.h.b16 %v4013
    %v4102 = vunpack.c.l.b16 %v4014
    %v4103 = vunpack.c.h.b16 %v4014
    %v4104 = vunpack.c.l.b16 %v4015
    %v4105 = vunpack.c.h.b16 %v4015
    %v4106 = vunpack.c.l.b16 %v4016
    %v4107 = vunpack.c.h.b16 %v4016
    %v4108 = vunpack.c.l.b16 %v4017
    %v4109 = vunpack.c.h.b16 %v4017
    %v4110 = vunpack.c.l.b16 %v4018
    %v4111 = vunpack.c.h.b16 %v4018
    %v4112 = vunpack.c.l.b16 %v4019
    %v4113 = vunpack.c.h.b16 %v4019
    %v4114 = vunpack.c.l.b16 %v4020
    %v4115 = vunpack.c.h.b16 %v4020
    %v4116 = vunpack.c.l.b16 %v4021
    %v4117 = vunpack.c.h.b16 %v4021
    %v4118 = vunpack.c.l.b16 %v4022
    %v4119 = vunpack.c.h.b16 %v4022
    %v4120 = vunpack.c.l.b16 %v4023
    %v4121 = vunpack.c.h.b16 %v4023
    %v4122 = vunpack.c.l.b16 %v4024
    %v4123 = vunpack.c.h.b16 %v4024
    %v4124 = vunpack.c.l.b16 %v4025
    %v4125 = vunpack.c.h.b16 %v4025
    %v4126 = vunpack.c.l.b16 %v4026
    %v4127 = vunpack.c.h.b16 %v4026
    %v4128 = vunpack.c.l.b16 %v4027
    %v4129 = vunpack.c.h.b16 %v4027
    %v4130 = vunpack.c.l.b16 %v4028
    %v4131 = vunpack.c.h.b16 %v4028
    %v4132 = vunpack.c.l.b16 %v4029
    %v4133 = vunpack.c.h.b16 %v4029
    %v4134 = vunpack.c.l.b16 %v4030
    %v4135 = vunpack.c.h.b16 %v4030
    %v4136 = vunpack.c.l.b16 %v4031
    %v4137 = vunpack.c.h.b16 %v4031
    %v4138 = vunpack.c.l.b16 %v4032
    %v4139 = vunpack.c.h.b16 %v4032
    %v4140 = vunpack.c.l.b16 %v4033
    %v4141 = vunpack.c.h.b16 %v4033
    %v4142 = vunpack.c.l.b16 %v4034
    %v4143 = vunpack.c.h.b16 %v4034
    %v4144 = vpack.c.b16 %v4082, %v4080
    %v4145 = vpack.c.b16 %v4083, %v4081
    %v4146 = vpack.c.b16 %v4086, %v4084
    %v4147 = vpack.c.b16 %v4087, %v4085
    %v4148 = vpack.c.b16 %v4090, %v4088
    %v4149 = vpack.c.b16 %v4091, %v4089
    %v4150 = vpack.c.b16 %v4094, %v4092
    %v4151 = vpack.c.b16 %v4095, %v4093
    %v4152 = vpack.c.b16 %v4098, %v4096
    %v4153 = vpack.c.b16 %v4099, %v4097
    %v4154 = vpack.c.b16 %v4102, %v4100
    %v4155 = vpack.c.b16 %v4103, %v4101
    %v4156 = vpack.c.b16 %v4106, %v4104
    %v4157 = vpack.c.b16 %v4107, %v4105
    %v4158 = vpack.c.b16 %v4110, %v4108
    %v4159 = vpack.c.b16 %v4111, %v4109
    %v4160 = vpack.c.b16 %v4114, %v4112
    %v4161 = vpack.c.b16 %v4115, %v4113
    %v4162 = vpack.c.b16 %v4118, %v4116
    %v4163 = vpack.c.b16 %v4119, %v4117
    %v4164 = vpack.c.b16 %v4122, %v4120
    %v4165 = vpack.c.b16 %v4123, %v4121
    %v4166 = vpack.c.b16 %v4126, %v4124
    %v4167 = vpack.c.b16 %v4127, %v4125
    %v4168 = vpack.c.b16 %v4130, %v4128
    %v4169 = vpack.c.b16 %v4131, %v4129
    %v4170 = vpack.c.b16 %v4134, %v4132
    %v4171 = vpack.c.b16 %v4135, %v4133
    %v4172 = vpack.c.b16 %v4138, %v4136
    %v4173 = vpack.c.b16 %v4139, %v4137
    %v4174 = vpack.c.b16 %v4142, %v4140
    %v4175 = vpack.c.b16 %v4143, %v4141
    %4208 = vmatprep.subr.bf16.mxu0 %v4145
    %4209 = vmatpush1.bf16.msra.mxu0 %v4144
    %4210 = vmatprep.subr.bf16.mxu0 %v4147
    %4211 = vmatpush1.bf16.msra.mxu0 %v4146
    %4212 = vmatprep.subr.bf16.mxu0 %v4149
    %4213 = vmatpush1.bf16.msra.mxu0 %v4148
    %4214 = vmatprep.subr.bf16.mxu0 %v4151
    %4215 = vmatpush1.bf16.msra.mxu0 %v4150
    %4216 = vmatprep.subr.bf16.mxu0 %v4153
    %4217 = vmatpush1.bf16.msra.mxu0 %v4152
    %4218 = vmatprep.subr.bf16.mxu0 %v4155
    %4219 = vmatpush1.bf16.msra.mxu0 %v4154
    %4220 = vmatprep.subr.bf16.mxu0 %v4157
    %4221 = vmatpush1.bf16.msra.mxu0 %v4156
    %4222 = vmatprep.subr.bf16.mxu0 %v4159
    %4223 = vmatpush1.bf16.msra.mxu0 %v4158
    %4224 = vmatprep.subr.bf16.mxu0 %v4161
    %4225 = vmatpush1.bf16.msra.mxu0 %v4160
    %4226 = vmatprep.subr.bf16.mxu0 %v4163
    %4227 = vmatpush1.bf16.msra.mxu0 %v4162
    %4228 = vmatprep.subr.bf16.mxu0 %v4165
    %4229 = vmatpush1.bf16.msra.mxu0 %v4164
    %4230 = vmatprep.subr.bf16.mxu0 %v4167
    %4231 = vmatpush1.bf16.msra.mxu0 %v4166
    %4232 = vmatprep.subr.bf16.mxu0 %v4169
    %4233 = vmatpush1.bf16.msra.mxu0 %v4168
    %4234 = vmatprep.subr.bf16.mxu0 %v4171
    %4235 = vmatpush1.bf16.msra.mxu0 %v4170
    %4236 = vmatprep.subr.bf16.mxu0 %v4173
    %4237 = vmatpush1.bf16.msra.mxu0 %v4172
    %4238 = vmatprep.subr.bf16.mxu0 %v4175
    %4239 = vmatpush1.bf16.msra.mxu0 %v4174
    %4240 = vmatprep.mubr.bf16.mxu0 %v4001
    %4241 = vmatmul.mubr.bf16.gmra.mrb[0].mxu0 %v4000
    %v4242 = vpop.f32.mrb[0].mxu0
    %v4243 = vadd.f32 %v4041, %v4242
    %v4244 = vpop.f32.mrb[0].mxu0
    %v4245 = vadd.f32 %v4045, %v4244
    %v4246 = vpop.f32.mrb[0].mxu0
    %v4247 = vpop.f32.mrb[0].mxu0
    %4248 = vdwg.mxu0
    %v4249 = vtanh.pop %v4243
    %v4250 = vmul.f32 %v4249, 1.442695
    %v4251 = vpow.pop %v4250
    %v4252 = vmul.f32 %v3748, %v4251
    %v4253 = vadd.f32 %v4252, %v4245
    %v4254 = vpack.c.bf16 %v2737, %v2737
    %v4255 = vpack.c.bf16 %v2738, %v2738
    %s4256 = scalar_lea.vmem [#allocation10], 768
    %v4257 = vld [vmem:[%s4256] sm:$0xff]
    %v4258 = vld [vmem:[%s4256 + $0x8] sm:$0xff]
    %v4259 = vld [vmem:[%s4256 + $0x10] sm:$0xff]
    %v4260 = vld [vmem:[%s4256 + $0x18] sm:$0xff]
    %v4261 = vld [vmem:[%s4256 + $0x20] sm:$0xff]
    %v4262 = vld [vmem:[%s4256 + $0x28] sm:$0xff]
    %v4263 = vld [vmem:[%s4256 + $0x30] sm:$0xff]
    %v4264 = vld [vmem:[%s4256 + $0x38] sm:$0xff]
    %v4265 = vld [vmem:[%s4256 + $0x40] sm:$0xff]
    %v4266 = vld [vmem:[%s4256 + $0x48] sm:$0xff]
    %v4267 = vld [vmem:[%s4256 + $0x50] sm:$0xff]
    %v4268 = vld [vmem:[%s4256 + $0x58] sm:$0xff]
    %v4269 = vld [vmem:[%s4256 + $0x60] sm:$0xff]
    %v4270 = vld [vmem:[%s4256 + $0x68] sm:$0xff]
    %v4271 = vld [vmem:[%s4256 + $0x70] sm:$0xff]
    %v4272 = vld [vmem:[%s4256 + $0x78] sm:$0xff]
    %v4273 = vld [vmem:[%s4256 + $0x80] sm:$0xff]
    %v4274 = vld [vmem:[%s4256 + $0x88] sm:$0xff]
    %v4275 = vld [vmem:[%s4256 + $0x90] sm:$0xff]
    %v4276 = vld [vmem:[%s4256 + $0x98] sm:$0xff]
    %v4277 = vld [vmem:[%s4256 + $0xa0] sm:$0xff]
    %v4278 = vld [vmem:[%s4256 + $0xa8] sm:$0xff]
    %v4279 = vld [vmem:[%s4256 + $0xb0] sm:$0xff]
    %v4280 = vld [vmem:[%s4256 + $0xb8] sm:$0xff]
    %v4281 = vld [vmem:[%s4256 + $0xc0] sm:$0xff]
    %v4282 = vld [vmem:[%s4256 + $0xc8] sm:$0xff]
    %v4283 = vld [vmem:[%s4256 + $0xd0] sm:$0xff]
    %v4284 = vld [vmem:[%s4256 + $0xd8] sm:$0xff]
    %v4285 = vld [vmem:[%s4256 + $0xe0] sm:$0xff]
    %v4286 = vld [vmem:[%s4256 + $0xe8] sm:$0xff]
    %v4287 = vld [vmem:[%s4256 + $0xf0] sm:$0xff]
    %v4288 = vld [vmem:[%s4256 + $0xf8] sm:$0xff]
    %s4289 = scalar_lea.vmem [#allocation11], 6
    %v4290 = vld [vmem:[%s4289] sm:$0x3]
    %v4292 = vlaneseq
    %v4293 = vshrl.u32 %v4292, 7
    %v4294 = vsub.s32 0, %v4293
    %v4295 = vrot.slane %v4290, %v4294
    %v4296 = vlaneseq
    %v4297 = vshrl.u32 %v4296, 7
    %v4298 = vsub.s32 1, %v4297
    %v4299 = vrot.slane %v4290, %v4298
    %v4334 = vunpack.c.l.b16 %v4257
    %v4335 = vunpack.c.h.b16 %v4257
    %v4336 = vunpack.c.l.b16 %v4258
    %v4337 = vunpack.c.h.b16 %v4258
    %v4338 = vunpack.c.l.b16 %v4259
    %v4339 = vunpack.c.h.b16 %v4259
    %v4340 = vunpack.c.l.b16 %v4260
    %v4341 = vunpack.c.h.b16 %v4260
    %v4342 = vunpack.c.l.b16 %v4261
    %v4343 = vunpack.c.h.b16 %v4261
    %v4344 = vunpack.c.l.b16 %v4262
    %v4345 = vunpack.c.h.b16 %v4262
    %v4346 = vunpack.c.l.b16 %v4263
    %v4347 = vunpack.c.h.b16 %v4263
    %v4348 = vunpack.c.l.b16 %v4264
    %v4349 = vunpack.c.h.b16 %v4264
    %v4350 = vunpack.c.l.b16 %v4265
    %v4351 = vunpack.c.h.b16 %v4265
    %v4352 = vunpack.c.l.b16 %v4266
    %v4353 = vunpack.c.h.b16 %v4266
    %v4354 = vunpack.c.l.b16 %v4267
    %v4355 = vunpack.c.h.b16 %v4267
    %v4356 = vunpack.c.l.b16 %v4268
    %v4357 = vunpack.c.h.b16 %v4268
    %v4358 = vunpack.c.l.b16 %v4269
    %v4359 = vunpack.c.h.b16 %v4269
    %v4360 = vunpack.c.l.b16 %v4270
    %v4361 = vunpack.c.h.b16 %v4270
    %v4362 = vunpack.c.l.b16 %v4271
    %v4363 = vunpack.c.h.b16 %v4271
    %v4364 = vunpack.c.l.b16 %v4272
    %v4365 = vunpack.c.h.b16 %v4272
    %v4366 = vunpack.c.l.b16 %v4273
    %v4367 = vunpack.c.h.b16 %v4273
    %v4368 = vunpack.c.l.b16 %v4274
    %v4369 = vunpack.c.h.b16 %v4274
    %v4370 = vunpack.c.l.b16 %v4275
    %v4371 = vunpack.c.h.b16 %v4275
    %v4372 = vunpack.c.l.b16 %v4276
    %v4373 = vunpack.c.h.b16 %v4276
    %v4374 = vunpack.c.l.b16 %v4277
    %v4375 = vunpack.c.h.b16 %v4277
    %v4376 = vunpack.c.l.b16 %v4278
    %v4377 = vunpack.c.h.b16 %v4278
    %v4378 = vunpack.c.l.b16 %v4279
    %v4379 = vunpack.c.h.b16 %v4279
    %v4380 = vunpack.c.l.b16 %v4280
    %v4381 = vunpack.c.h.b16 %v4280
    %v4382 = vunpack.c.l.b16 %v4281
    %v4383 = vunpack.c.h.b16 %v4281
    %v4384 = vunpack.c.l.b16 %v4282
    %v4385 = vunpack.c.h.b16 %v4282
    %v4386 = vunpack.c.l.b16 %v4283
    %v4387 = vunpack.c.h.b16 %v4283
    %v4388 = vunpack.c.l.b16 %v4284
    %v4389 = vunpack.c.h.b16 %v4284
    %v4390 = vunpack.c.l.b16 %v4285
    %v4391 = vunpack.c.h.b16 %v4285
    %v4392 = vunpack.c.l.b16 %v4286
    %v4393 = vunpack.c.h.b16 %v4286
    %v4394 = vunpack.c.l.b16 %v4287
    %v4395 = vunpack.c.h.b16 %v4287
    %v4396 = vunpack.c.l.b16 %v4288
    %v4397 = vunpack.c.h.b16 %v4288
    %v4398 = vpack.c.b16 %v4336, %v4334
    %v4399 = vpack.c.b16 %v4337, %v4335
    %v4400 = vpack.c.b16 %v4340, %v4338
    %v4401 = vpack.c.b16 %v4341, %v4339
    %v4402 = vpack.c.b16 %v4344, %v4342
    %v4403 = vpack.c.b16 %v4345, %v4343
    %v4404 = vpack.c.b16 %v4348, %v4346
    %v4405 = vpack.c.b16 %v4349, %v4347
    %v4406 = vpack.c.b16 %v4352, %v4350
    %v4407 = vpack.c.b16 %v4353, %v4351
    %v4408 = vpack.c.b16 %v4356, %v4354
    %v4409 = vpack.c.b16 %v4357, %v4355
    %v4410 = vpack.c.b16 %v4360, %v4358
    %v4411 = vpack.c.b16 %v4361, %v4359
    %v4412 = vpack.c.b16 %v4364, %v4362
    %v4413 = vpack.c.b16 %v4365, %v4363
    %v4414 = vpack.c.b16 %v4368, %v4366
    %v4415 = vpack.c.b16 %v4369, %v4367
    %v4416 = vpack.c.b16 %v4372, %v4370
    %v4417 = vpack.c.b16 %v4373, %v4371
    %v4418 = vpack.c.b16 %v4376, %v4374
    %v4419 = vpack.c.b16 %v4377, %v4375
    %v4420 = vpack.c.b16 %v4380, %v4378
    %v4421 = vpack.c.b16 %v4381, %v4379
    %v4422 = vpack.c.b16 %v4384, %v4382
    %v4423 = vpack.c.b16 %v4385, %v4383
    %v4424 = vpack.c.b16 %v4388, %v4386
    %v4425 = vpack.c.b16 %v4389, %v4387
    %v4426 = vpack.c.b16 %v4392, %v4390
    %v4427 = vpack.c.b16 %v4393, %v4391
    %v4428 = vpack.c.b16 %v4396, %v4394
    %v4429 = vpack.c.b16 %v4397, %v4395
    %4462 = vmatprep.subr.bf16.mxu0 %v4399
    %4463 = vmatpush1.bf16.msra.mxu0 %v4398
    %4464 = vmatprep.subr.bf16.mxu0 %v4401
    %4465 = vmatpush1.bf16.msra.mxu0 %v4400
    %4466 = vmatprep.subr.bf16.mxu0 %v4403
    %4467 = vmatpush1.bf16.msra.mxu0 %v4402
    %4468 = vmatprep.subr.bf16.mxu0 %v4405
    %4469 = vmatpush1.bf16.msra.mxu0 %v4404
    %4470 = vmatprep.subr.bf16.mxu0 %v4407
    %4471 = vmatpush1.bf16.msra.mxu0 %v4406
    %4472 = vmatprep.subr.bf16.mxu0 %v4409
    %4473 = vmatpush1.bf16.msra.mxu0 %v4408
    %4474 = vmatprep.subr.bf16.mxu0 %v4411
    %4475 = vmatpush1.bf16.msra.mxu0 %v4410
    %4476 = vmatprep.subr.bf16.mxu0 %v4413
    %4477 = vmatpush1.bf16.msra.mxu0 %v4412
    %4478 = vmatprep.subr.bf16.mxu0 %v4415
    %4479 = vmatpush1.bf16.msra.mxu0 %v4414
    %4480 = vmatprep.subr.bf16.mxu0 %v4417
    %4481 = vmatpush1.bf16.msra.mxu0 %v4416
    %4482 = vmatprep.subr.bf16.mxu0 %v4419
    %4483 = vmatpush1.bf16.msra.mxu0 %v4418
    %4484 = vmatprep.subr.bf16.mxu0 %v4421
    %4485 = vmatpush1.bf16.msra.mxu0 %v4420
    %4486 = vmatprep.subr.bf16.mxu0 %v4423
    %4487 = vmatpush1.bf16.msra.mxu0 %v4422
    %4488 = vmatprep.subr.bf16.mxu0 %v4425
    %4489 = vmatpush1.bf16.msra.mxu0 %v4424
    %4490 = vmatprep.subr.bf16.mxu0 %v4427
    %4491 = vmatpush1.bf16.msra.mxu0 %v4426
    %4492 = vmatprep.subr.bf16.mxu0 %v4429
    %4493 = vmatpush1.bf16.msra.mxu0 %v4428
    %4494 = vmatprep.mubr.bf16.mxu0 %v4255
    %4495 = vmatmul.mubr.bf16.gmra.mrb[0].mxu0 %v4254
    %v4496 = vpop.f32.mrb[0].mxu0
    %v4497 = vadd.f32 %v4295, %v4496
    %v4498 = vpop.f32.mrb[0].mxu0
    %v4499 = vadd.f32 %v4299, %v4498
    %v4500 = vpop.f32.mrb[0].mxu0
    %v4501 = vpop.f32.mrb[0].mxu0
    %4502 = vdwg.mxu0
    %v4503 = vmax.f32 %v4497, 0.0
    %v4504 = vmax.f32 %v4499, 0.0
    %v4505 = vpack.c.bf16 %v4503, %v4503
    %v4506 = vpack.c.bf16 %v4504, %v4504
    %s4507 = scalar_lea.vmem [#allocation13], 768
    %v4508 = vld [vmem:[%s4507] sm:$0xff]
    %v4509 = vld [vmem:[%s4507 + $0x8] sm:$0xff]
    %v4510 = vld [vmem:[%s4507 + $0x10] sm:$0xff]
    %v4511 = vld [vmem:[%s4507 + $0x18] sm:$0xff]
    %v4512 = vld [vmem:[%s4507 + $0x20] sm:$0xff]
    %v4513 = vld [vmem:[%s4507 + $0x28] sm:$0xff]
    %v4514 = vld [vmem:[%s4507 + $0x30] sm:$0xff]
    %v4515 = vld [vmem:[%s4507 + $0x38] sm:$0xff]
    %v4516 = vld [vmem:[%s4507 + $0x40] sm:$0xff]
    %v4517 = vld [vmem:[%s4507 + $0x48] sm:$0xff]
    %v4518 = vld [vmem:[%s4507 + $0x50] sm:$0xff]
    %v4519 = vld [vmem:[%s4507 + $0x58] sm:$0xff]
    %v4520 = vld [vmem:[%s4507 + $0x60] sm:$0xff]
    %v4521 = vld [vmem:[%s4507 + $0x68] sm:$0xff]
    %v4522 = vld [vmem:[%s4507 + $0x70] sm:$0xff]
    %v4523 = vld [vmem:[%s4507 + $0x78] sm:$0xff]
    %v4524 = vld [vmem:[%s4507 + $0x80] sm:$0xff]
    %v4525 = vld [vmem:[%s4507 + $0x88] sm:$0xff]
    %v4526 = vld [vmem:[%s4507 + $0x90] sm:$0xff]
    %v4527 = vld [vmem:[%s4507 + $0x98] sm:$0xff]
    %v4528 = vld [vmem:[%s4507 + $0xa0] sm:$0xff]
    %v4529 = vld [vmem:[%s4507 + $0xa8] sm:$0xff]
    %v4530 = vld [vmem:[%s4507 + $0xb0] sm:$0xff]
    %v4531 = vld [vmem:[%s4507 + $0xb8] sm:$0xff]
    %v4532 = vld [vmem:[%s4507 + $0xc0] sm:$0xff]
    %v4533 = vld [vmem:[%s4507 + $0xc8] sm:$0xff]
    %v4534 = vld [vmem:[%s4507 + $0xd0] sm:$0xff]
    %v4535 = vld [vmem:[%s4507 + $0xd8] sm:$0xff]
    %v4536 = vld [vmem:[%s4507 + $0xe0] sm:$0xff]
    %v4537 = vld [vmem:[%s4507 + $0xe8] sm:$0xff]
    %v4538 = vld [vmem:[%s4507 + $0xf0] sm:$0xff]
    %v4539 = vld [vmem:[%s4507 + $0xf8] sm:$0xff]
    %s4540 = scalar_lea.vmem [#allocation14], 6
    %v4541 = vld [vmem:[%s4540] sm:$0x3]
    %v4543 = vlaneseq
    %v4544 = vshrl.u32 %v4543, 7
    %v4545 = vsub.s32 0, %v4544
    %v4546 = vrot.slane %v4541, %v4545
    %v4547 = vlaneseq
    %v4548 = vshrl.u32 %v4547, 7
    %v4549 = vsub.s32 1, %v4548
    %v4550 = vrot.slane %v4541, %v4549
    %v4585 = vunpack.c.l.b16 %v4508
    %v4586 = vunpack.c.h.b16 %v4508
    %v4587 = vunpack.c.l.b16 %v4509
    %v4588 = vunpack.c.h.b16 %v4509
    %v4589 = vunpack.c.l.b16 %v4510
    %v4590 = vunpack.c.h.b16 %v4510
    %v4591 = vunpack.c.l.b16 %v4511
    %v4592 = vunpack.c.h.b16 %v4511
    %v4593 = vunpack.c.l.b16 %v4512
    %v4594 = vunpack.c.h.b16 %v4512
    %v4595 = vunpack.c.l.b16 %v4513
    %v4596 = vunpack.c.h.b16 %v4513
    %v4597 = vunpack.c.l.b16 %v4514
    %v4598 = vunpack.c.h.b16 %v4514
    %v4599 = vunpack.c.l.b16 %v4515
    %v4600 = vunpack.c.h.b16 %v4515
    %v4601 = vunpack.c.l.b16 %v4516
    %v4602 = vunpack.c.h.b16 %v4516
    %v4603 = vunpack.c.l.b16 %v4517
    %v4604 = vunpack.c.h.b16 %v4517
    %v4605 = vunpack.c.l.b16 %v4518
    %v4606 = vunpack.c.h.b16 %v4518
    %v4607 = vunpack.c.l.b16 %v4519
    %v4608 = vunpack.c.h.b16 %v4519
    %v4609 = vunpack.c.l.b16 %v4520
    %v4610 = vunpack.c.h.b16 %v4520
    %v4611 = vunpack.c.l.b16 %v4521
    %v4612 = vunpack.c.h.b16 %v4521
    %v4613 = vunpack.c.l.b16 %v4522
    %v4614 = vunpack.c.h.b16 %v4522
    %v4615 = vunpack.c.l.b16 %v4523
    %v4616 = vunpack.c.h.b16 %v4523
    %v4617 = vunpack.c.l.b16 %v4524
    %v4618 = vunpack.c.h.b16 %v4524
    %v4619 = vunpack.c.l.b16 %v4525
    %v4620 = vunpack.c.h.b16 %v4525
    %v4621 = vunpack.c.l.b16 %v4526
    %v4622 = vunpack.c.h.b16 %v4526
    %v4623 = vunpack.c.l.b16 %v4527
    %v4624 = vunpack.c.h.b16 %v4527
    %v4625 = vunpack.c.l.b16 %v4528
    %v4626 = vunpack.c.h.b16 %v4528
    %v4627 = vunpack.c.l.b16 %v4529
    %v4628 = vunpack.c.h.b16 %v4529
    %v4629 = vunpack.c.l.b16 %v4530
    %v4630 = vunpack.c.h.b16 %v4530
    %v4631 = vunpack.c.l.b16 %v4531
    %v4632 = vunpack.c.h.b16 %v4531
    %v4633 = vunpack.c.l.b16 %v4532
    %v4634 = vunpack.c.h.b16 %v4532
    %v4635 = vunpack.c.l.b16 %v4533
    %v4636 = vunpack.c.h.b16 %v4533
    %v4637 = vunpack.c.l.b16 %v4534
    %v4638 = vunpack.c.h.b16 %v4534
    %v4639 = vunpack.c.l.b16 %v4535
    %v4640 = vunpack.c.h.b16 %v4535
    %v4641 = vunpack.c.l.b16 %v4536
    %v4642 = vunpack.c.h.b16 %v4536
    %v4643 = vunpack.c.l.b16 %v4537
    %v4644 = vunpack.c.h.b16 %v4537
    %v4645 = vunpack.c.l.b16 %v4538
    %v4646 = vunpack.c.h.b16 %v4538
    %v4647 = vunpack.c.l.b16 %v4539
    %v4648 = vunpack.c.h.b16 %v4539
    %v4649 = vpack.c.b16 %v4587, %v4585
    %v4650 = vpack.c.b16 %v4588, %v4586
    %v4651 = vpack.c.b16 %v4591, %v4589
    %v4652 = vpack.c.b16 %v4592, %v4590
    %v4653 = vpack.c.b16 %v4595, %v4593
    %v4654 = vpack.c.b16 %v4596, %v4594
    %v4655 = vpack.c.b16 %v4599, %v4597
    %v4656 = vpack.c.b16 %v4600, %v4598
    %v4657 = vpack.c.b16 %v4603, %v4601
    %v4658 = vpack.c.b16 %v4604, %v4602
    %v4659 = vpack.c.b16 %v4607, %v4605
    %v4660 = vpack.c.b16 %v4608, %v4606
    %v4661 = vpack.c.b16 %v4611, %v4609
    %v4662 = vpack.c.b16 %v4612, %v4610
    %v4663 = vpack.c.b16 %v4615, %v4613
    %v4664 = vpack.c.b16 %v4616, %v4614
    %v4665 = vpack.c.b16 %v4619, %v4617
    %v4666 = vpack.c.b16 %v4620, %v4618
    %v4667 = vpack.c.b16 %v4623, %v4621
    %v4668 = vpack.c.b16 %v4624, %v4622
    %v4669 = vpack.c.b16 %v4627, %v4625
    %v4670 = vpack.c.b16 %v4628, %v4626
    %v4671 = vpack.c.b16 %v4631, %v4629
    %v4672 = vpack.c.b16 %v4632, %v4630
    %v4673 = vpack.c.b16 %v4635, %v4633
    %v4674 = vpack.c.b16 %v4636, %v4634
    %v4675 = vpack.c.b16 %v4639, %v4637
    %v4676 = vpack.c.b16 %v4640, %v4638
    %v4677 = vpack.c.b16 %v4643, %v4641
    %v4678 = vpack.c.b16 %v4644, %v4642
    %v4679 = vpack.c.b16 %v4647, %v4645
    %v4680 = vpack.c.b16 %v4648, %v4646
    %4713 = vmatprep.subr.bf16.mxu0 %v4650
    %4714 = vmatpush1.bf16.msra.mxu0 %v4649
    %4715 = vmatprep.subr.bf16.mxu0 %v4652
    %4716 = vmatpush1.bf16.msra.mxu0 %v4651
    %4717 = vmatprep.subr.bf16.mxu0 %v4654
    %4718 = vmatpush1.bf16.msra.mxu0 %v4653
    %4719 = vmatprep.subr.bf16.mxu0 %v4656
    %4720 = vmatpush1.bf16.msra.mxu0 %v4655
    %4721 = vmatprep.subr.bf16.mxu0 %v4658
    %4722 = vmatpush1.bf16.msra.mxu0 %v4657
    %4723 = vmatprep.subr.bf16.mxu0 %v4660
    %4724 = vmatpush1.bf16.msra.mxu0 %v4659
    %4725 = vmatprep.subr.bf16.mxu0 %v4662
    %4726 = vmatpush1.bf16.msra.mxu0 %v4661
    %4727 = vmatprep.subr.bf16.mxu0 %v4664
    %4728 = vmatpush1.bf16.msra.mxu0 %v4663
    %4729 = vmatprep.subr.bf16.mxu0 %v4666
    %4730 = vmatpush1.bf16.msra.mxu0 %v4665
    %4731 = vmatprep.subr.bf16.mxu0 %v4668
    %4732 = vmatpush1.bf16.msra.mxu0 %v4667
    %4733 = vmatprep.subr.bf16.mxu0 %v4670
    %4734 = vmatpush1.bf16.msra.mxu0 %v4669
    %4735 = vmatprep.subr.bf16.mxu0 %v4672
    %4736 = vmatpush1.bf16.msra.mxu0 %v4671
    %4737 = vmatprep.subr.bf16.mxu0 %v4674
    %4738 = vmatpush1.bf16.msra.mxu0 %v4673
    %4739 = vmatprep.subr.bf16.mxu0 %v4676
    %4740 = vmatpush1.bf16.msra.mxu0 %v4675
    %4741 = vmatprep.subr.bf16.mxu0 %v4678
    %4742 = vmatpush1.bf16.msra.mxu0 %v4677
    %4743 = vmatprep.subr.bf16.mxu0 %v4680
    %4744 = vmatpush1.bf16.msra.mxu0 %v4679
    %4745 = vmatprep.mubr.bf16.mxu0 %v4506
    %4746 = vmatmul.mubr.bf16.gmra.mrb[0].mxu0 %v4505
    %v4747 = vpop.f32.mrb[0].mxu0
    %v4748 = vadd.f32 %v4546, %v4747
    %v4749 = vpop.f32.mrb[0].mxu0
    %v4750 = vadd.f32 %v4550, %v4749
    %v4751 = vpop.f32.mrb[0].mxu0
    %v4752 = vpop.f32.mrb[0].mxu0
    %4753 = vdwg.mxu0
    %v4754 = vtanh.pop %v4748
    %v4755 = vmul.f32 %v4754, 1.442695
    %v4756 = vpow.pop %v4755
    %v4757 = vmul.f32 %v4253, %v4756
    %v4758 = vadd.f32 %v4757, %v4750
    %v4759 = vpack.c.bf16 %v2739, %v2739
    %v4760 = vpack.c.bf16 %v2740, %v2740
    %s4761 = scalar_lea.vmem [#allocation10], 1024
    %v4762 = vld [vmem:[%s4761] sm:$0xff]
    %v4763 = vld [vmem:[%s4761 + $0x8] sm:$0xff]
    %v4764 = vld [vmem:[%s4761 + $0x10] sm:$0xff]
    %v4765 = vld [vmem:[%s4761 + $0x18] sm:$0xff]
    %v4766 = vld [vmem:[%s4761 + $0x20] sm:$0xff]
    %v4767 = vld [vmem:[%s4761 + $0x28] sm:$0xff]
    %v4768 = vld [vmem:[%s4761 + $0x30] sm:$0xff]
    %v4769 = vld [vmem:[%s4761 + $0x38] sm:$0xff]
    %v4770 = vld [vmem:[%s4761 + $0x40] sm:$0xff]
    %v4771 = vld [vmem:[%s4761 + $0x48] sm:$0xff]
    %v4772 = vld [vmem:[%s4761 + $0x50] sm:$0xff]
    %v4773 = vld [vmem:[%s4761 + $0x58] sm:$0xff]
    %v4774 = vld [vmem:[%s4761 + $0x60] sm:$0xff]
    %v4775 = vld [vmem:[%s4761 + $0x68] sm:$0xff]
    %v4776 = vld [vmem:[%s4761 + $0x70] sm:$0xff]
    %v4777 = vld [vmem:[%s4761 + $0x78] sm:$0xff]
    %v4778 = vld [vmem:[%s4761 + $0x80] sm:$0xff]
    %v4779 = vld [vmem:[%s4761 + $0x88] sm:$0xff]
    %v4780 = vld [vmem:[%s4761 + $0x90] sm:$0xff]
    %v4781 = vld [vmem:[%s4761 + $0x98] sm:$0xff]
    %v4782 = vld [vmem:[%s4761 + $0xa0] sm:$0xff]
    %v4783 = vld [vmem:[%s4761 + $0xa8] sm:$0xff]
    %v4784 = vld [vmem:[%s4761 + $0xb0] sm:$0xff]
    %v4785 = vld [vmem:[%s4761 + $0xb8] sm:$0xff]
    %v4786 = vld [vmem:[%s4761 + $0xc0] sm:$0xff]
    %v4787 = vld [vmem:[%s4761 + $0xc8] sm:$0xff]
    %v4788 = vld [vmem:[%s4761 + $0xd0] sm:$0xff]
    %v4789 = vld [vmem:[%s4761 + $0xd8] sm:$0xff]
    %v4790 = vld [vmem:[%s4761 + $0xe0] sm:$0xff]
    %v4791 = vld [vmem:[%s4761 + $0xe8] sm:$0xff]
    %v4792 = vld [vmem:[%s4761 + $0xf0] sm:$0xff]
    %v4793 = vld [vmem:[%s4761 + $0xf8] sm:$0xff]
    %s4794 = scalar_lea.vmem [#allocation11], 8
    %v4795 = vld [vmem:[%s4794] sm:$0x3]
    %v4797 = vlaneseq
    %v4798 = vshrl.u32 %v4797, 7
    %v4799 = vsub.s32 0, %v4798
    %v4800 = vrot.slane %v4795, %v4799
    %v4801 = vlaneseq
    %v4802 = vshrl.u32 %v4801, 7
    %v4803 = vsub.s32 1, %v4802
    %v4804 = vrot.slane %v4795, %v4803
    %v4839 = vunpack.c.l.b16 %v4762
    %v4840 = vunpack.c.h.b16 %v4762
    %v4841 = vunpack.c.l.b16 %v4763
    %v4842 = vunpack.c.h.b16 %v4763
    %v4843 = vunpack.c.l.b16 %v4764
    %v4844 = vunpack.c.h.b16 %v4764
    %v4845 = vunpack.c.l.b16 %v4765
    %v4846 = vunpack.c.h.b16 %v4765
    %v4847 = vunpack.c.l.b16 %v4766
    %v4848 = vunpack.c.h.b16 %v4766
    %v4849 = vunpack.c.l.b16 %v4767
    %v4850 = vunpack.c.h.b16 %v4767
    %v4851 = vunpack.c.l.b16 %v4768
    %v4852 = vunpack.c.h.b16 %v4768
    %v4853 = vunpack.c.l.b16 %v4769
    %v4854 = vunpack.c.h.b16 %v4769
    %v4855 = vunpack.c.l.b16 %v4770
    %v4856 = vunpack.c.h.b16 %v4770
    %v4857 = vunpack.c.l.b16 %v4771
    %v4858 = vunpack.c.h.b16 %v4771
    %v4859 = vunpack.c.l.b16 %v4772
    %v4860 = vunpack.c.h.b16 %v4772
    %v4861 = vunpack.c.l.b16 %v4773
    %v4862 = vunpack.c.h.b16 %v4773
    %v4863 = vunpack.c.l.b16 %v4774
    %v4864 = vunpack.c.h.b16 %v4774
    %v4865 = vunpack.c.l.b16 %v4775
    %v4866 = vunpack.c.h.b16 %v4775
    %v4867 = vunpack.c.l.b16 %v4776
    %v4868 = vunpack.c.h.b16 %v4776
    %v4869 = vunpack.c.l.b16 %v4777
    %v4870 = vunpack.c.h.b16 %v4777
    %v4871 = vunpack.c.l.b16 %v4778
    %v4872 = vunpack.c.h.b16 %v4778
    %v4873 = vunpack.c.l.b16 %v4779
    %v4874 = vunpack.c.h.b16 %v4779
    %v4875 = vunpack.c.l.b16 %v4780
    %v4876 = vunpack.c.h.b16 %v4780
    %v4877 = vunpack.c.l.b16 %v4781
    %v4878 = vunpack.c.h.b16 %v4781
    %v4879 = vunpack.c.l.b16 %v4782
    %v4880 = vunpack.c.h.b16 %v4782
    %v4881 = vunpack.c.l.b16 %v4783
    %v4882 = vunpack.c.h.b16 %v4783
    %v4883 = vunpack.c.l.b16 %v4784
    %v4884 = vunpack.c.h.b16 %v4784
    %v4885 = vunpack.c.l.b16 %v4785
    %v4886 = vunpack.c.h.b16 %v4785
    %v4887 = vunpack.c.l.b16 %v4786
    %v4888 = vunpack.c.h.b16 %v4786
    %v4889 = vunpack.c.l.b16 %v4787
    %v4890 = vunpack.c.h.b16 %v4787
    %v4891 = vunpack.c.l.b16 %v4788
    %v4892 = vunpack.c.h.b16 %v4788
    %v4893 = vunpack.c.l.b16 %v4789
    %v4894 = vunpack.c.h.b16 %v4789
    %v4895 = vunpack.c.l.b16 %v4790
    %v4896 = vunpack.c.h.b16 %v4790
    %v4897 = vunpack.c.l.b16 %v4791
    %v4898 = vunpack.c.h.b16 %v4791
    %v4899 = vunpack.c.l.b16 %v4792
    %v4900 = vunpack.c.h.b16 %v4792
    %v4901 = vunpack.c.l.b16 %v4793
    %v4902 = vunpack.c.h.b16 %v4793
    %v4903 = vpack.c.b16 %v4841, %v4839
    %v4904 = vpack.c.b16 %v4842, %v4840
    %v4905 = vpack.c.b16 %v4845, %v4843
    %v4906 = vpack.c.b16 %v4846, %v4844
    %v4907 = vpack.c.b16 %v4849, %v4847
    %v4908 = vpack.c.b16 %v4850, %v4848
    %v4909 = vpack.c.b16 %v4853, %v4851
    %v4910 = vpack.c.b16 %v4854, %v4852
    %v4911 = vpack.c.b16 %v4857, %v4855
    %v4912 = vpack.c.b16 %v4858, %v4856
    %v4913 = vpack.c.b16 %v4861, %v4859
    %v4914 = vpack.c.b16 %v4862, %v4860
    %v4915 = vpack.c.b16 %v4865, %v4863
    %v4916 = vpack.c.b16 %v4866, %v4864
    %v4917 = vpack.c.b16 %v4869, %v4867
    %v4918 = vpack.c.b16 %v4870, %v4868
    %v4919 = vpack.c.b16 %v4873, %v4871
    %v4920 = vpack.c.b16 %v4874, %v4872
    %v4921 = vpack.c.b16 %v4877, %v4875
    %v4922 = vpack.c.b16 %v4878, %v4876
    %v4923 = vpack.c.b16 %v4881, %v4879
    %v4924 = vpack.c.b16 %v4882, %v4880
    %v4925 = vpack.c.b16 %v4885, %v4883
    %v4926 = vpack.c.b16 %v4886, %v4884
    %v4927 = vpack.c.b16 %v4889, %v4887
    %v4928 = vpack.c.b16 %v4890, %v4888
    %v4929 = vpack.c.b16 %v4893, %v4891
    %v4930 = vpack.c.b16 %v4894, %v4892
    %v4931 = vpack.c.b16 %v4897, %v4895
    %v4932 = vpack.c.b16 %v4898, %v4896
    %v4933 = vpack.c.b16 %v4901, %v4899
    %v4934 = vpack.c.b16 %v4902, %v4900
    %4967 = vmatprep.subr.bf16.mxu0 %v4904
    %4968 = vmatpush1.bf16.msra.mxu0 %v4903
    %4969 = vmatprep.subr.bf16.mxu0 %v4906
    %4970 = vmatpush1.bf16.msra.mxu0 %v4905
    %4971 = vmatprep.subr.bf16.mxu0 %v4908
    %4972 = vmatpush1.bf16.msra.mxu0 %v4907
    %4973 = vmatprep.subr.bf16.mxu0 %v4910
    %4974 = vmatpush1.bf16.msra.mxu0 %v4909
    %4975 = vmatprep.subr.bf16.mxu0 %v4912
    %4976 = vmatpush1.bf16.msra.mxu0 %v4911
    %4977 = vmatprep.subr.bf16.mxu0 %v4914
    %4978 = vmatpush1.bf16.msra.mxu0 %v4913
    %4979 = vmatprep.subr.bf16.mxu0 %v4916
    %4980 = vmatpush1.bf16.msra.mxu0 %v4915
    %4981 = vmatprep.subr.bf16.mxu0 %v4918
    %4982 = vmatpush1.bf16.msra.mxu0 %v4917
    %4983 = vmatprep.subr.bf16.mxu0 %v4920
    %4984 = vmatpush1.bf16.msra.mxu0 %v4919
    %4985 = vmatprep.subr.bf16.mxu0 %v4922
    %4986 = vmatpush1.bf16.msra.mxu0 %v4921
    %4987 = vmatprep.subr.bf16.mxu0 %v4924
    %4988 = vmatpush1.bf16.msra.mxu0 %v4923
    %4989 = vmatprep.subr.bf16.mxu0 %v4926
    %4990 = vmatpush1.bf16.msra.mxu0 %v4925
    %4991 = vmatprep.subr.bf16.mxu0 %v4928
    %4992 = vmatpush1.bf16.msra.mxu0 %v4927
    %4993 = vmatprep.subr.bf16.mxu0 %v4930
    %4994 = vmatpush1.bf16.msra.mxu0 %v4929
    %4995 = vmatprep.subr.bf16.mxu0 %v4932
    %4996 = vmatpush1.bf16.msra.mxu0 %v4931
    %4997 = vmatprep.subr.bf16.mxu0 %v4934
    %4998 = vmatpush1.bf16.msra.mxu0 %v4933
    %4999 = vmatprep.mubr.bf16.mxu0 %v4760
    %5000 = vmatmul.mubr.bf16.gmra.mrb[0].mxu0 %v4759
    %v5001 = vpop.f32.mrb[0].mxu0
    %v5002 = vadd.f32 %v4800, %v5001
    %v5003 = vpop.f32.mrb[0].mxu0
    %v5004 = vadd.f32 %v4804, %v5003
    %v5005 = vpop.f32.mrb[0].mxu0
    %v5006 = vpop.f32.mrb[0].mxu0
    %5007 = vdwg.mxu0
    %v5008 = vmax.f32 %v5002, 0.0
    %v5009 = vmax.f32 %v5004, 0.0
    %v5010 = vpack.c.bf16 %v5008, %v5008
    %v5011 = vpack.c.bf16 %v5009, %v5009
    %s5012 = scalar_lea.vmem [#allocation13], 1024
    %v5013 = vld [vmem:[%s5012] sm:$0xff]
    %v5014 = vld [vmem:[%s5012 + $0x8] sm:$0xff]
    %v5015 = vld [vmem:[%s5012 + $0x10] sm:$0xff]
    %v5016 = vld [vmem:[%s5012 + $0x18] sm:$0xff]
    %v5017 = vld [vmem:[%s5012 + $0x20] sm:$0xff]
    %v5018 = vld [vmem:[%s5012 + $0x28] sm:$0xff]
    %v5019 = vld [vmem:[%s5012 + $0x30] sm:$0xff]
    %v5020 = vld [vmem:[%s5012 + $0x38] sm:$0xff]
    %v5021 = vld [vmem:[%s5012 + $0x40] sm:$0xff]
    %v5022 = vld [vmem:[%s5012 + $0x48] sm:$0xff]
    %v5023 = vld [vmem:[%s5012 + $0x50] sm:$0xff]
    %v5024 = vld [vmem:[%s5012 + $0x58] sm:$0xff]
    %v5025 = vld [vmem:[%s5012 + $0x60] sm:$0xff]
    %v5026 = vld [vmem:[%s5012 + $0x68] sm:$0xff]
    %v5027 = vld [vmem:[%s5012 + $0x70] sm:$0xff]
    %v5028 = vld [vmem:[%s5012 + $0x78] sm:$0xff]
    %v5029 = vld [vmem:[%s5012 + $0x80] sm:$0xff]
    %v5030 = vld [vmem:[%s5012 + $0x88] sm:$0xff]
    %v5031 = vld [vmem:[%s5012 + $0x90] sm:$0xff]
    %v5032 = vld [vmem:[%s5012 + $0x98] sm:$0xff]
    %v5033 = vld [vmem:[%s5012 + $0xa0] sm:$0xff]
    %v5034 = vld [vmem:[%s5012 + $0xa8] sm:$0xff]
    %v5035 = vld [vmem:[%s5012 + $0xb0] sm:$0xff]
    %v5036 = vld [vmem:[%s5012 + $0xb8] sm:$0xff]
    %v5037 = vld [vmem:[%s5012 + $0xc0] sm:$0xff]
    %v5038 = vld [vmem:[%s5012 + $0xc8] sm:$0xff]
    %v5039 = vld [vmem:[%s5012 + $0xd0] sm:$0xff]
    %v5040 = vld [vmem:[%s5012 + $0xd8] sm:$0xff]
    %v5041 = vld [vmem:[%s5012 + $0xe0] sm:$0xff]
    %v5042 = vld [vmem:[%s5012 + $0xe8] sm:$0xff]
    %v5043 = vld [vmem:[%s5012 + $0xf0] sm:$0xff]
    %v5044 = vld [vmem:[%s5012 + $0xf8] sm:$0xff]
    %s5045 = scalar_lea.vmem [#allocation14], 8
    %v5046 = vld [vmem:[%s5045] sm:$0x3]
    %v5048 = vlaneseq
    %v5049 = vshrl.u32 %v5048, 7
    %v5050 = vsub.s32 0, %v5049
    %v5051 = vrot.slane %v5046, %v5050
    %v5052 = vlaneseq
    %v5053 = vshrl.u32 %v5052, 7
    %v5054 = vsub.s32 1, %v5053
    %v5055 = vrot.slane %v5046, %v5054
    %v5090 = vunpack.c.l.b16 %v5013
    %v5091 = vunpack.c.h.b16 %v5013
    %v5092 = vunpack.c.l.b16 %v5014
    %v5093 = vunpack.c.h.b16 %v5014
    %v5094 = vunpack.c.l.b16 %v5015
    %v5095 = vunpack.c.h.b16 %v5015
    %v5096 = vunpack.c.l.b16 %v5016
    %v5097 = vunpack.c.h.b16 %v5016
    %v5098 = vunpack.c.l.b16 %v5017
    %v5099 = vunpack.c.h.b16 %v5017
    %v5100 = vunpack.c.l.b16 %v5018
    %v5101 = vunpack.c.h.b16 %v5018
    %v5102 = vunpack.c.l.b16 %v5019
    %v5103 = vunpack.c.h.b16 %v5019
    %v5104 = vunpack.c.l.b16 %v5020
    %v5105 = vunpack.c.h.b16 %v5020
    %v5106 = vunpack.c.l.b16 %v5021
    %v5107 = vunpack.c.h.b16 %v5021
    %v5108 = vunpack.c.l.b16 %v5022
    %v5109 = vunpack.c.h.b16 %v5022
    %v5110 = vunpack.c.l.b16 %v5023
    %v5111 = vunpack.c.h.b16 %v5023
    %v5112 = vunpack.c.l.b16 %v5024
    %v5113 = vunpack.c.h.b16 %v5024
    %v5114 = vunpack.c.l.b16 %v5025
    %v5115 = vunpack.c.h.b16 %v5025
    %v5116 = vunpack.c.l.b16 %v5026
    %v5117 = vunpack.c.h.b16 %v5026
    %v5118 = vunpack.c.l.b16 %v5027
    %v5119 = vunpack.c.h.b16 %v5027
    %v5120 = vunpack.c.l.b16 %v5028
    %v5121 = vunpack.c.h.b16 %v5028
    %v5122 = vunpack.c.l.b16 %v5029
    %v5123 = vunpack.c.h.b16 %v5029
    %v5124 = vunpack.c.l.b16 %v5030
    %v5125 = vunpack.c.h.b16 %v5030
    %v5126 = vunpack.c.l.b16 %v5031
    %v5127 = vunpack.c.h.b16 %v5031
    %v5128 = vunpack.c.l.b16 %v5032
    %v5129 = vunpack.c.h.b16 %v5032
    %v5130 = vunpack.c.l.b16 %v5033
    %v5131 = vunpack.c.h.b16 %v5033
    %v5132 = vunpack.c.l.b16 %v5034
    %v5133 = vunpack.c.h.b16 %v5034
    %v5134 = vunpack.c.l.b16 %v5035
    %v5135 = vunpack.c.h.b16 %v5035
    %v5136 = vunpack.c.l.b16 %v5036
    %v5137 = vunpack.c.h.b16 %v5036
    %v5138 = vunpack.c.l.b16 %v5037
    %v5139 = vunpack.c.h.b16 %v5037
    %v5140 = vunpack.c.l.b16 %v5038
    %v5141 = vunpack.c.h.b16 %v5038
    %v5142 = vunpack.c.l.b16 %v5039
    %v5143 = vunpack.c.h.b16 %v5039
    %v5144 = vunpack.c.l.b16 %v5040
    %v5145 = vunpack.c.h.b16 %v5040
    %v5146 = vunpack.c.l.b16 %v5041
    %v5147 = vunpack.c.h.b16 %v5041
    %v5148 = vunpack.c.l.b16 %v5042
    %v5149 = vunpack.c.h.b16 %v5042
    %v5150 = vunpack.c.l.b16 %v5043
    %v5151 = vunpack.c.h.b16 %v5043
    %v5152 = vunpack.c.l.b16 %v5044
    %v5153 = vunpack.c.h.b16 %v5044
    %v5154 = vpack.c.b16 %v5092, %v5090
    %v5155 = vpack.c.b16 %v5093, %v5091
    %v5156 = vpack.c.b16 %v5096, %v5094
    %v5157 = vpack.c.b16 %v5097, %v5095
    %v5158 = vpack.c.b16 %v5100, %v5098
    %v5159 = vpack.c.b16 %v5101, %v5099
    %v5160 = vpack.c.b16 %v5104, %v5102
    %v5161 = vpack.c.b16 %v5105, %v5103
    %v5162 = vpack.c.b16 %v5108, %v5106
    %v5163 = vpack.c.b16 %v5109, %v5107
    %v5164 = vpack.c.b16 %v5112, %v5110
    %v5165 = vpack.c.b16 %v5113, %v5111
    %v5166 = vpack.c.b16 %v5116, %v5114
    %v5167 = vpack.c.b16 %v5117, %v5115
    %v5168 = vpack.c.b16 %v5120, %v5118
    %v5169 = vpack.c.b16 %v5121, %v5119
    %v5170 = vpack.c.b16 %v5124, %v5122
    %v5171 = vpack.c.b16 %v5125, %v5123
    %v5172 = vpack.c.b16 %v5128, %v5126
    %v5173 = vpack.c.b16 %v5129, %v5127
    %v5174 = vpack.c.b16 %v5132, %v5130
    %v5175 = vpack.c.b16 %v5133, %v5131
    %v5176 = vpack.c.b16 %v5136, %v5134
    %v5177 = vpack.c.b16 %v5137, %v5135
    %v5178 = vpack.c.b16 %v5140, %v5138
    %v5179 = vpack.c.b16 %v5141, %v5139
    %v5180 = vpack.c.b16 %v5144, %v5142
    %v5181 = vpack.c.b16 %v5145, %v5143
    %v5182 = vpack.c.b16 %v5148, %v5146
    %v5183 = vpack.c.b16 %v5149, %v5147
    %v5184 = vpack.c.b16 %v5152, %v5150
    %v5185 = vpack.c.b16 %v5153, %v5151
    %5218 = vmatprep.subr.bf16.mxu0 %v5155
    %5219 = vmatpush1.bf16.msra.mxu0 %v5154
    %5220 = vmatprep.subr.bf16.mxu0 %v5157
    %5221 = vmatpush1.bf16.msra.mxu0 %v5156
    %5222 = vmatprep.subr.bf16.mxu0 %v5159
    %5223 = vmatpush1.bf16.msra.mxu0 %v5158
    %5224 = vmatprep.subr.bf16.mxu0 %v5161
    %5225 = vmatpush1.bf16.msra.mxu0 %v5160
    %5226 = vmatprep.subr.bf16.mxu0 %v5163
    %5227 = vmatpush1.bf16.msra.mxu0 %v5162
    %5228 = vmatprep.subr.bf16.mxu0 %v5165
    %5229 = vmatpush1.bf16.msra.mxu0 %v5164
    %5230 = vmatprep.subr.bf16.mxu0 %v5167
    %5231 = vmatpush1.bf16.msra.mxu0 %v5166
    %5232 = vmatprep.subr.bf16.mxu0 %v5169
    %5233 = vmatpush1.bf16.msra.mxu0 %v5168
    %5234 = vmatprep.subr.bf16.mxu0 %v5171
    %5235 = vmatpush1.bf16.msra.mxu0 %v5170
    %5236 = vmatprep.subr.bf16.mxu0 %v5173
    %5237 = vmatpush1.bf16.msra.mxu0 %v5172
    %5238 = vmatprep.subr.bf16.mxu0 %v5175
    %5239 = vmatpush1.bf16.msra.mxu0 %v5174
    %5240 = vmatprep.subr.bf16.mxu0 %v5177
    %5241 = vmatpush1.bf16.msra.mxu0 %v5176
    %5242 = vmatprep.subr.bf16.mxu0 %v5179
    %5243 = vmatpush1.bf16.msra.mxu0 %v5178
    %5244 = vmatprep.subr.bf16.mxu0 %v5181
    %5245 = vmatpush1.bf16.msra.mxu0 %v5180
    %5246 = vmatprep.subr.bf16.mxu0 %v5183
    %5247 = vmatpush1.bf16.msra.mxu0 %v5182
    %5248 = vmatprep.subr.bf16.mxu0 %v5185
    %5249 = vmatpush1.bf16.msra.mxu0 %v5184
    %5250 = vmatprep.mubr.bf16.mxu0 %v5011
    %5251 = vmatmul.mubr.bf16.gmra.mrb[0].mxu0 %v5010
    %v5252 = vpop.f32.mrb[0].mxu0
    %v5253 = vadd.f32 %v5051, %v5252
    %v5254 = vpop.f32.mrb[0].mxu0
    %v5255 = vadd.f32 %v5055, %v5254
    %v5256 = vpop.f32.mrb[0].mxu0
    %v5257 = vpop.f32.mrb[0].mxu0
    %5258 = vdwg.mxu0
    %v5259 = vtanh.pop %v5253
    %v5260 = vmul.f32 %v5259, 1.442695
    %v5261 = vpow.pop %v5260
    %v5262 = vmul.f32 %v4758, %v5261
    %v5263 = vadd.f32 %v5262, %v5255
    %v5264 = vpack.c.bf16 %v2741, %v2741
    %v5265 = vpack.c.bf16 %v2742, %v2742
    %s5266 = scalar_lea.vmem [#allocation10], 1280
    %v5267 = vld [vmem:[%s5266] sm:$0xff]
    %v5268 = vld [vmem:[%s5266 + $0x8] sm:$0xff]
    %v5269 = vld [vmem:[%s5266 + $0x10] sm:$0xff]
    %v5270 = vld [vmem:[%s5266 + $0x18] sm:$0xff]
    %v5271 = vld [vmem:[%s5266 + $0x20] sm:$0xff]
    %v5272 = vld [vmem:[%s5266 + $0x28] sm:$0xff]
    %v5273 = vld [vmem:[%s5266 + $0x30] sm:$0xff]
    %v5274 = vld [vmem:[%s5266 + $0x38] sm:$0xff]
    %v5275 = vld [vmem:[%s5266 + $0x40] sm:$0xff]
    %v5276 = vld [vmem:[%s5266 + $0x48] sm:$0xff]
    %v5277 = vld [vmem:[%s5266 + $0x50] sm:$0xff]
    %v5278 = vld [vmem:[%s5266 + $0x58] sm:$0xff]
    %v5279 = vld [vmem:[%s5266 + $0x60] sm:$0xff]
    %v5280 = vld [vmem:[%s5266 + $0x68] sm:$0xff]
    %v5281 = vld [vmem:[%s5266 + $0x70] sm:$0xff]
    %v5282 = vld [vmem:[%s5266 + $0x78] sm:$0xff]
    %v5283 = vld [vmem:[%s5266 + $0x80] sm:$0xff]
    %v5284 = vld [vmem:[%s5266 + $0x88] sm:$0xff]
    %v5285 = vld [vmem:[%s5266 + $0x90] sm:$0xff]
    %v5286 = vld [vmem:[%s5266 + $0x98] sm:$0xff]
    %v5287 = vld [vmem:[%s5266 + $0xa0] sm:$0xff]
    %v5288 = vld [vmem:[%s5266 + $0xa8] sm:$0xff]
    %v5289 = vld [vmem:[%s5266 + $0xb0] sm:$0xff]
    %v5290 = vld [vmem:[%s5266 + $0xb8] sm:$0xff]
    %v5291 = vld [vmem:[%s5266 + $0xc0] sm:$0xff]
    %v5292 = vld [vmem:[%s5266 + $0xc8] sm:$0xff]
    %v5293 = vld [vmem:[%s5266 + $0xd0] sm:$0xff]
    %v5294 = vld [vmem:[%s5266 + $0xd8] sm:$0xff]
    %v5295 = vld [vmem:[%s5266 + $0xe0] sm:$0xff]
    %v5296 = vld [vmem:[%s5266 + $0xe8] sm:$0xff]
    %v5297 = vld [vmem:[%s5266 + $0xf0] sm:$0xff]
    %v5298 = vld [vmem:[%s5266 + $0xf8] sm:$0xff]
    %s5299 = scalar_lea.vmem [#allocation11], 10
    %v5300 = vld [vmem:[%s5299] sm:$0x3]
    %v5302 = vlaneseq
    %v5303 = vshrl.u32 %v5302, 7
    %v5304 = vsub.s32 0, %v5303
    %v5305 = vrot.slane %v5300, %v5304
    %v5306 = vlaneseq
    %v5307 = vshrl.u32 %v5306, 7
    %v5308 = vsub.s32 1, %v5307
    %v5309 = vrot.slane %v5300, %v5308
    %v5344 = vunpack.c.l.b16 %v5267
    %v5345 = vunpack.c.h.b16 %v5267
    %v5346 = vunpack.c.l.b16 %v5268
    %v5347 = vunpack.c.h.b16 %v5268
    %v5348 = vunpack.c.l.b16 %v5269
    %v5349 = vunpack.c.h.b16 %v5269
    %v5350 = vunpack.c.l.b16 %v5270
    %v5351 = vunpack.c.h.b16 %v5270
    %v5352 = vunpack.c.l.b16 %v5271
    %v5353 = vunpack.c.h.b16 %v5271
    %v5354 = vunpack.c.l.b16 %v5272
    %v5355 = vunpack.c.h.b16 %v5272
    %v5356 = vunpack.c.l.b16 %v5273
    %v5357 = vunpack.c.h.b16 %v5273
    %v5358 = vunpack.c.l.b16 %v5274
    %v5359 = vunpack.c.h.b16 %v5274
    %v5360 = vunpack.c.l.b16 %v5275
    %v5361 = vunpack.c.h.b16 %v5275
    %v5362 = vunpack.c.l.b16 %v5276
    %v5363 = vunpack.c.h.b16 %v5276
    %v5364 = vunpack.c.l.b16 %v5277
    %v5365 = vunpack.c.h.b16 %v5277
    %v5366 = vunpack.c.l.b16 %v5278
    %v5367 = vunpack.c.h.b16 %v5278
    %v5368 = vunpack.c.l.b16 %v5279
    %v5369 = vunpack.c.h.b16 %v5279
    %v5370 = vunpack.c.l.b16 %v5280
    %v5371 = vunpack.c.h.b16 %v5280
    %v5372 = vunpack.c.l.b16 %v5281
    %v5373 = vunpack.c.h.b16 %v5281
    %v5374 = vunpack.c.l.b16 %v5282
    %v5375 = vunpack.c.h.b16 %v5282
    %v5376 = vunpack.c.l.b16 %v5283
    %v5377 = vunpack.c.h.b16 %v5283
    %v5378 = vunpack.c.l.b16 %v5284
    %v5379 = vunpack.c.h.b16 %v5284
    %v5380 = vunpack.c.l.b16 %v5285
    %v5381 = vunpack.c.h.b16 %v5285
    %v5382 = vunpack.c.l.b16 %v5286
    %v5383 = vunpack.c.h.b16 %v5286
    %v5384 = vunpack.c.l.b16 %v5287
    %v5385 = vunpack.c.h.b16 %v5287
    %v5386 = vunpack.c.l.b16 %v5288
    %v5387 = vunpack.c.h.b16 %v5288
    %v5388 = vunpack.c.l.b16 %v5289
    %v5389 = vunpack.c.h.b16 %v5289
    %v5390 = vunpack.c.l.b16 %v5290
    %v5391 = vunpack.c.h.b16 %v5290
    %v5392 = vunpack.c.l.b16 %v5291
    %v5393 = vunpack.c.h.b16 %v5291
    %v5394 = vunpack.c.l.b16 %v5292
    %v5395 = vunpack.c.h.b16 %v5292
    %v5396 = vunpack.c.l.b16 %v5293
    %v5397 = vunpack.c.h.b16 %v5293
    %v5398 = vunpack.c.l.b16 %v5294
    %v5399 = vunpack.c.h.b16 %v5294
    %v5400 = vunpack.c.l.b16 %v5295
    %v5401 = vunpack.c.h.b16 %v5295
    %v5402 = vunpack.c.l.b16 %v5296
    %v5403 = vunpack.c.h.b16 %v5296
    %v5404 = vunpack.c.l.b16 %v5297
    %v5405 = vunpack.c.h.b16 %v5297
    %v5406 = vunpack.c.l.b16 %v5298
    %v5407 = vunpack.c.h.b16 %v5298
    %v5408 = vpack.c.b16 %v5346, %v5344
    %v5409 = vpack.c.b16 %v5347, %v5345
    %v5410 = vpack.c.b16 %v5350, %v5348
    %v5411 = vpack.c.b16 %v5351, %v5349
    %v5412 = vpack.c.b16 %v5354, %v5352
    %v5413 = vpack.c.b16 %v5355, %v5353
    %v5414 = vpack.c.b16 %v5358, %v5356
    %v5415 = vpack.c.b16 %v5359, %v5357
    %v5416 = vpack.c.b16 %v5362, %v5360
    %v5417 = vpack.c.b16 %v5363, %v5361
    %v5418 = vpack.c.b16 %v5366, %v5364
    %v5419 = vpack.c.b16 %v5367, %v5365
    %v5420 = vpack.c.b16 %v5370, %v5368
    %v5421 = vpack.c.b16 %v5371, %v5369
    %v5422 = vpack.c.b16 %v5374, %v5372
    %v5423 = vpack.c.b16 %v5375, %v5373
    %v5424 = vpack.c.b16 %v5378, %v5376
    %v5425 = vpack.c.b16 %v5379, %v5377
    %v5426 = vpack.c.b16 %v5382, %v5380
    %v5427 = vpack.c.b16 %v5383, %v5381
    %v5428 = vpack.c.b16 %v5386, %v5384
    %v5429 = vpack.c.b16 %v5387, %v5385
    %v5430 = vpack.c.b16 %v5390, %v5388
    %v5431 = vpack.c.b16 %v5391, %v5389
    %v5432 = vpack.c.b16 %v5394, %v5392
    %v5433 = vpack.c.b16 %v5395, %v5393
    %v5434 = vpack.c.b16 %v5398, %v5396
    %v5435 = vpack.c.b16 %v5399, %v5397
    %v5436 = vpack.c.b16 %v5402, %v5400
    %v5437 = vpack.c.b16 %v5403, %v5401
    %v5438 = vpack.c.b16 %v5406, %v5404
    %v5439 = vpack.c.b16 %v5407, %v5405
    %5472 = vmatprep.subr.bf16.mxu0 %v5409
    %5473 = vmatpush1.bf16.msra.mxu0 %v5408
    %5474 = vmatprep.subr.bf16.mxu0 %v5411
    %5475 = vmatpush1.bf16.msra.mxu0 %v5410
    %5476 = vmatprep.subr.bf16.mxu0 %v5413
    %5477 = vmatpush1.bf16.msra.mxu0 %v5412
    %5478 = vmatprep.subr.bf16.mxu0 %v5415
    %5479 = vmatpush1.bf16.msra.mxu0 %v5414
    %5480 = vmatprep.subr.bf16.mxu0 %v5417
    %5481 = vmatpush1.bf16.msra.mxu0 %v5416
    %5482 = vmatprep.subr.bf16.mxu0 %v5419
    %5483 = vmatpush1.bf16.msra.mxu0 %v5418
    %5484 = vmatprep.subr.bf16.mxu0 %v5421
    %5485 = vmatpush1.bf16.msra.mxu0 %v5420
    %5486 = vmatprep.subr.bf16.mxu0 %v5423
    %5487 = vmatpush1.bf16.msra.mxu0 %v5422
    %5488 = vmatprep.subr.bf16.mxu0 %v5425
    %5489 = vmatpush1.bf16.msra.mxu0 %v5424
    %5490 = vmatprep.subr.bf16.mxu0 %v5427
    %5491 = vmatpush1.bf16.msra.mxu0 %v5426
    %5492 = vmatprep.subr.bf16.mxu0 %v5429
    %5493 = vmatpush1.bf16.msra.mxu0 %v5428
    %5494 = vmatprep.subr.bf16.mxu0 %v5431
    %5495 = vmatpush1.bf16.msra.mxu0 %v5430
    %5496 = vmatprep.subr.bf16.mxu0 %v5433
    %5497 = vmatpush1.bf16.msra.mxu0 %v5432
    %5498 = vmatprep.subr.bf16.mxu0 %v5435
    %5499 = vmatpush1.bf16.msra.mxu0 %v5434
    %5500 = vmatprep.subr.bf16.mxu0 %v5437
    %5501 = vmatpush1.bf16.msra.mxu0 %v5436
    %5502 = vmatprep.subr.bf16.mxu0 %v5439
    %5503 = vmatpush1.bf16.msra.mxu0 %v5438
    %5504 = vmatprep.mubr.bf16.mxu0 %v5265
    %5505 = vmatmul.mubr.bf16.gmra.mrb[0].mxu0 %v5264
    %v5506 = vpop.f32.mrb[0].mxu0
    %v5507 = vadd.f32 %v5305, %v5506
    %v5508 = vpop.f32.mrb[0].mxu0
    %v5509 = vadd.f32 %v5309, %v5508
    %v5510 = vpop.f32.mrb[0].mxu0
    %v5511 = vpop.f32.mrb[0].mxu0
    %5512 = vdwg.mxu0
    %v5513 = vmax.f32 %v5507, 0.0
    %v5514 = vmax.f32 %v5509, 0.0
    %v5515 = vpack.c.bf16 %v5513, %v5513
    %v5516 = vpack.c.bf16 %v5514, %v5514
    %s5517 = scalar_lea.vmem [#allocation13], 1280
    %v5518 = vld [vmem:[%s5517] sm:$0xff]
    %v5519 = vld [vmem:[%s5517 + $0x8] sm:$0xff]
    %v5520 = vld [vmem:[%s5517 + $0x10] sm:$0xff]
    %v5521 = vld [vmem:[%s5517 + $0x18] sm:$0xff]
    %v5522 = vld [vmem:[%s5517 + $0x20] sm:$0xff]
    %v5523 = vld [vmem:[%s5517 + $0x28] sm:$0xff]
    %v5524 = vld [vmem:[%s5517 + $0x30] sm:$0xff]
    %v5525 = vld [vmem:[%s5517 + $0x38] sm:$0xff]
    %v5526 = vld [vmem:[%s5517 + $0x40] sm:$0xff]
    %v5527 = vld [vmem:[%s5517 + $0x48] sm:$0xff]
    %v5528 = vld [vmem:[%s5517 + $0x50] sm:$0xff]
    %v5529 = vld [vmem:[%s5517 + $0x58] sm:$0xff]
    %v5530 = vld [vmem:[%s5517 + $0x60] sm:$0xff]
    %v5531 = vld [vmem:[%s5517 + $0x68] sm:$0xff]
    %v5532 = vld [vmem:[%s5517 + $0x70] sm:$0xff]
    %v5533 = vld [vmem:[%s5517 + $0x78] sm:$0xff]
    %v5534 = vld [vmem:[%s5517 + $0x80] sm:$0xff]
    %v5535 = vld [vmem:[%s5517 + $0x88] sm:$0xff]
    %v5536 = vld [vmem:[%s5517 + $0x90] sm:$0xff]
    %v5537 = vld [vmem:[%s5517 + $0x98] sm:$0xff]
    %v5538 = vld [vmem:[%s5517 + $0xa0] sm:$0xff]
    %v5539 = vld [vmem:[%s5517 + $0xa8] sm:$0xff]
    %v5540 = vld [vmem:[%s5517 + $0xb0] sm:$0xff]
    %v5541 = vld [vmem:[%s5517 + $0xb8] sm:$0xff]
    %v5542 = vld [vmem:[%s5517 + $0xc0] sm:$0xff]
    %v5543 = vld [vmem:[%s5517 + $0xc8] sm:$0xff]
    %v5544 = vld [vmem:[%s5517 + $0xd0] sm:$0xff]
    %v5545 = vld [vmem:[%s5517 + $0xd8] sm:$0xff]
    %v5546 = vld [vmem:[%s5517 + $0xe0] sm:$0xff]
    %v5547 = vld [vmem:[%s5517 + $0xe8] sm:$0xff]
    %v5548 = vld [vmem:[%s5517 + $0xf0] sm:$0xff]
    %v5549 = vld [vmem:[%s5517 + $0xf8] sm:$0xff]
    %s5550 = scalar_lea.vmem [#allocation14], 10
    %v5551 = vld [vmem:[%s5550] sm:$0x3]
    %v5553 = vlaneseq
    %v5554 = vshrl.u32 %v5553, 7
    %v5555 = vsub.s32 0, %v5554
    %v5556 = vrot.slane %v5551, %v5555
    %v5557 = vlaneseq
    %v5558 = vshrl.u32 %v5557, 7
    %v5559 = vsub.s32 1, %v5558
    %v5560 = vrot.slane %v5551, %v5559
    %v5595 = vunpack.c.l.b16 %v5518
    %v5596 = vunpack.c.h.b16 %v5518
    %v5597 = vunpack.c.l.b16 %v5519
    %v5598 = vunpack.c.h.b16 %v5519
    %v5599 = vunpack.c.l.b16 %v5520
    %v5600 = vunpack.c.h.b16 %v5520
    %v5601 = vunpack.c.l.b16 %v5521
    %v5602 = vunpack.c.h.b16 %v5521
    %v5603 = vunpack.c.l.b16 %v5522
    %v5604 = vunpack.c.h.b16 %v5522
    %v5605 = vunpack.c.l.b16 %v5523
    %v5606 = vunpack.c.h.b16 %v5523
    %v5607 = vunpack.c.l.b16 %v5524
    %v5608 = vunpack.c.h.b16 %v5524
    %v5609 = vunpack.c.l.b16 %v5525
    %v5610 = vunpack.c.h.b16 %v5525
    %v5611 = vunpack.c.l.b16 %v5526
    %v5612 = vunpack.c.h.b16 %v5526
    %v5613 = vunpack.c.l.b16 %v5527
    %v5614 = vunpack.c.h.b16 %v5527
    %v5615 = vunpack.c.l.b16 %v5528
    %v5616 = vunpack.c.h.b16 %v5528
    %v5617 = vunpack.c.l.b16 %v5529
    %v5618 = vunpack.c.h.b16 %v5529
    %v5619 = vunpack.c.l.b16 %v5530
    %v5620 = vunpack.c.h.b16 %v5530
    %v5621 = vunpack.c.l.b16 %v5531
    %v5622 = vunpack.c.h.b16 %v5531
    %v5623 = vunpack.c.l.b16 %v5532
    %v5624 = vunpack.c.h.b16 %v5532
    %v5625 = vunpack.c.l.b16 %v5533
    %v5626 = vunpack.c.h.b16 %v5533
    %v5627 = vunpack.c.l.b16 %v5534
    %v5628 = vunpack.c.h.b16 %v5534
    %v5629 = vunpack.c.l.b16 %v5535
    %v5630 = vunpack.c.h.b16 %v5535
    %v5631 = vunpack.c.l.b16 %v5536
    %v5632 = vunpack.c.h.b16 %v5536
    %v5633 = vunpack.c.l.b16 %v5537
    %v5634 = vunpack.c.h.b16 %v5537
    %v5635 = vunpack.c.l.b16 %v5538
    %v5636 = vunpack.c.h.b16 %v5538
    %v5637 = vunpack.c.l.b16 %v5539
    %v5638 = vunpack.c.h.b16 %v5539
    %v5639 = vunpack.c.l.b16 %v5540
    %v5640 = vunpack.c.h.b16 %v5540
    %v5641 = vunpack.c.l.b16 %v5541
    %v5642 = vunpack.c.h.b16 %v5541
    %v5643 = vunpack.c.l.b16 %v5542
    %v5644 = vunpack.c.h.b16 %v5542
    %v5645 = vunpack.c.l.b16 %v5543
    %v5646 = vunpack.c.h.b16 %v5543
    %v5647 = vunpack.c.l.b16 %v5544
    %v5648 = vunpack.c.h.b16 %v5544
    %v5649 = vunpack.c.l.b16 %v5545
    %v5650 = vunpack.c.h.b16 %v5545
    %v5651 = vunpack.c.l.b16 %v5546
    %v5652 = vunpack.c.h.b16 %v5546
    %v5653 = vunpack.c.l.b16 %v5547
    %v5654 = vunpack.c.h.b16 %v5547
    %v5655 = vunpack.c.l.b16 %v5548
    %v5656 = vunpack.c.h.b16 %v5548
    %v5657 = vunpack.c.l.b16 %v5549
    %v5658 = vunpack.c.h.b16 %v5549
    %v5659 = vpack.c.b16 %v5597, %v5595
    %v5660 = vpack.c.b16 %v5598, %v5596
    %v5661 = vpack.c.b16 %v5601, %v5599
    %v5662 = vpack.c.b16 %v5602, %v5600
    %v5663 = vpack.c.b16 %v5605, %v5603
    %v5664 = vpack.c.b16 %v5606, %v5604
    %v5665 = vpack.c.b16 %v5609, %v5607
    %v5666 = vpack.c.b16 %v5610, %v5608
    %v5667 = vpack.c.b16 %v5613, %v5611
    %v5668 = vpack.c.b16 %v5614, %v5612
    %v5669 = vpack.c.b16 %v5617, %v5615
    %v5670 = vpack.c.b16 %v5618, %v5616
    %v5671 = vpack.c.b16 %v5621, %v5619
    %v5672 = vpack.c.b16 %v5622, %v5620
    %v5673 = vpack.c.b16 %v5625, %v5623
    %v5674 = vpack.c.b16 %v5626, %v5624
    %v5675 = vpack.c.b16 %v5629, %v5627
    %v5676 = vpack.c.b16 %v5630, %v5628
    %v5677 = vpack.c.b16 %v5633, %v5631
    %v5678 = vpack.c.b16 %v5634, %v5632
    %v5679 = vpack.c.b16 %v5637, %v5635
    %v5680 = vpack.c.b16 %v5638, %v5636
    %v5681 = vpack.c.b16 %v5641, %v5639
    %v5682 = vpack.c.b16 %v5642, %v5640
    %v5683 = vpack.c.b16 %v5645, %v5643
    %v5684 = vpack.c.b16 %v5646, %v5644
    %v5685 = vpack.c.b16 %v5649, %v5647
    %v5686 = vpack.c.b16 %v5650, %v5648
    %v5687 = vpack.c.b16 %v5653, %v5651
    %v5688 = vpack.c.b16 %v5654, %v5652
    %v5689 = vpack.c.b16 %v5657, %v5655
    %v5690 = vpack.c.b16 %v5658, %v5656
    %5723 = vmatprep.subr.bf16.mxu0 %v5660
    %5724 = vmatpush1.bf16.msra.mxu0 %v5659
    %5725 = vmatprep.subr.bf16.mxu0 %v5662
    %5726 = vmatpush1.bf16.msra.mxu0 %v5661
    %5727 = vmatprep.subr.bf16.mxu0 %v5664
    %5728 = vmatpush1.bf16.msra.mxu0 %v5663
    %5729 = vmatprep.subr.bf16.mxu0 %v5666
    %5730 = vmatpush1.bf16.msra.mxu0 %v5665
    %5731 = vmatprep.subr.bf16.mxu0 %v5668
    %5732 = vmatpush1.bf16.msra.mxu0 %v5667
    %5733 = vmatprep.subr.bf16.mxu0 %v5670
    %5734 = vmatpush1.bf16.msra.mxu0 %v5669
    %5735 = vmatprep.subr.bf16.mxu0 %v5672
    %5736 = vmatpush1.bf16.msra.mxu0 %v5671
    %5737 = vmatprep.subr.bf16.mxu0 %v5674
    %5738 = vmatpush1.bf16.msra.mxu0 %v5673
    %5739 = vmatprep.subr.bf16.mxu0 %v5676
    %5740 = vmatpush1.bf16.msra.mxu0 %v5675
    %5741 = vmatprep.subr.bf16.mxu0 %v5678
    %5742 = vmatpush1.bf16.msra.mxu0 %v5677
    %5743 = vmatprep.subr.bf16.mxu0 %v5680
    %5744 = vmatpush1.bf16.msra.mxu0 %v5679
    %5745 = vmatprep.subr.bf16.mxu0 %v5682
    %5746 = vmatpush1.bf16.msra.mxu0 %v5681
    %5747 = vmatprep.subr.bf16.mxu0 %v5684
    %5748 = vmatpush1.bf16.msra.mxu0 %v5683
    %5749 = vmatprep.subr.bf16.mxu0 %v5686
    %5750 = vmatpush1.bf16.msra.mxu0 %v5685
    %5751 = vmatprep.subr.bf16.mxu0 %v5688
    %5752 = vmatpush1.bf16.msra.mxu0 %v5687
    %5753 = vmatprep.subr.bf16.mxu0 %v5690
    %5754 = vmatpush1.bf16.msra.mxu0 %v5689
    %5755 = vmatprep.mubr.bf16.mxu0 %v5516
    %5756 = vmatmul.mubr.bf16.gmra.mrb[0].mxu0 %v5515
    %v5757 = vpop.f32.mrb[0].mxu0
    %v5758 = vadd.f32 %v5556, %v5757
    %v5759 = vpop.f32.mrb[0].mxu0
    %v5760 = vadd.f32 %v5560, %v5759
    %v5761 = vpop.f32.mrb[0].mxu0
    %v5762 = vpop.f32.mrb[0].mxu0
    %5763 = vdwg.mxu0
    %v5764 = vtanh.pop %v5758
    %v5765 = vmul.f32 %v5764, 1.442695
    %v5766 = vpow.pop %v5765
    %v5767 = vmul.f32 %v5263, %v5766
    %v5768 = vadd.f32 %v5767, %v5760
    %5769 = vst [vmem:[#allocation18] sm:$0xff] %v961
    %5770 = vst [vmem:[#allocation18 + $0x8] sm:$0xff] %v5768
    %v5771 = vpack.c.bf16 %v5768, %v5768
    %v5772 = vld [vmem:[#allocation16] sm:$0xf]
    %v5773 = vld [vmem:[#allocation16 + $0x4] sm:$0xf]
    %v5774 = vld [vmem:[#allocation16 + $0x8] sm:$0xf]
    %v5775 = vld [vmem:[#allocation16 + $0xc] sm:$0xf]
    %v5776 = vld [vmem:[#allocation16 + $0x10] sm:$0xf]
    %v5777 = vld [vmem:[#allocation16 + $0x14] sm:$0xf]
    %v5778 = vld [vmem:[#allocation16 + $0x18] sm:$0xf]
    %v5779 = vld [vmem:[#allocation16 + $0x1c] sm:$0xf]
    %v5780 = vld [vmem:[#allocation16 + $0x20] sm:$0xf]
    %v5781 = vld [vmem:[#allocation16 + $0x24] sm:$0xf]
    %v5782 = vld [vmem:[#allocation16 + $0x28] sm:$0xf]
    %v5783 = vld [vmem:[#allocation16 + $0x2c] sm:$0xf]
    %v5784 = vld [vmem:[#allocation16 + $0x30] sm:$0xf]
    %v5785 = vld [vmem:[#allocation16 + $0x34] sm:$0xf]
    %v5786 = vld [vmem:[#allocation16 + $0x38] sm:$0xf]
    %v5787 = vld [vmem:[#allocation16 + $0x3c] sm:$0xf]
    %v5788 = vld [vmem:[#allocation16 + $0x40] sm:$0xf]
    %v5789 = vld [vmem:[#allocation16 + $0x44] sm:$0xf]
    %v5790 = vld [vmem:[#allocation16 + $0x48] sm:$0xf]
    %v5791 = vld [vmem:[#allocation16 + $0x4c] sm:$0xf]
    %v5792 = vld [vmem:[#allocation16 + $0x50] sm:$0xf]
    %v5793 = vld [vmem:[#allocation16 + $0x54] sm:$0xf]
    %v5794 = vld [vmem:[#allocation16 + $0x58] sm:$0xf]
    %v5795 = vld [vmem:[#allocation16 + $0x5c] sm:$0xf]
    %v5796 = vld [vmem:[#allocation16 + $0x60] sm:$0xf]
    %v5797 = vld [vmem:[#allocation16 + $0x64] sm:$0xf]
    %v5798 = vld [vmem:[#allocation16 + $0x68] sm:$0xf]
    %v5799 = vld [vmem:[#allocation16 + $0x6c] sm:$0xf]
    %v5800 = vld [vmem:[#allocation16 + $0x70] sm:$0xf]
    %v5801 = vld [vmem:[#allocation16 + $0x74] sm:$0xf]
    %v5802 = vld [vmem:[#allocation16 + $0x78] sm:$0xf]
    %v5803 = vld [vmem:[#allocation16 + $0x7c] sm:$0xf]
    %v5804 = vld [vmem:[%s15] sm:$0x1]
    %v5806 = vlaneseq
    %v5807 = vshrl.u32 %v5806, 7
    %v5808 = vsub.s32 0, %v5807
    %v5809 = vrot.slane %v5804, %v5808
    %v5843 = vunpack.c.l.b16 %v5772
    %v5844 = vunpack.c.l.b16 %v5773
    %v5845 = vunpack.c.l.b16 %v5774
    %v5846 = vunpack.c.l.b16 %v5775
    %v5847 = vunpack.c.l.b16 %v5776
    %v5848 = vunpack.c.l.b16 %v5777
    %v5849 = vunpack.c.l.b16 %v5778
    %v5850 = vunpack.c.l.b16 %v5779
    %v5851 = vunpack.c.l.b16 %v5780
    %v5852 = vunpack.c.l.b16 %v5781
    %v5853 = vunpack.c.l.b16 %v5782
    %v5854 = vunpack.c.l.b16 %v5783
    %v5855 = vunpack.c.l.b16 %v5784
    %v5856 = vunpack.c.l.b16 %v5785
    %v5857 = vunpack.c.l.b16 %v5786
    %v5858 = vunpack.c.l.b16 %v5787
    %v5859 = vunpack.c.l.b16 %v5788
    %v5860 = vunpack.c.l.b16 %v5789
    %v5861 = vunpack.c.l.b16 %v5790
    %v5862 = vunpack.c.l.b16 %v5791
    %v5863 = vunpack.c.l.b16 %v5792
    %v5864 = vunpack.c.l.b16 %v5793
    %v5865 = vunpack.c.l.b16 %v5794
    %v5866 = vunpack.c.l.b16 %v5795
    %v5867 = vunpack.c.l.b16 %v5796
    %v5868 = vunpack.c.l.b16 %v5797
    %v5869 = vunpack.c.l.b16 %v5798
    %v5870 = vunpack.c.l.b16 %v5799
    %v5871 = vunpack.c.l.b16 %v5800
    %v5872 = vunpack.c.l.b16 %v5801
    %v5873 = vunpack.c.l.b16 %v5802
    %v5874 = vunpack.c.l.b16 %v5803
    %v5875 = vpack.c.b16 %v5844, %v5843
    %v5876 = vpack.c.b16 %v5846, %v5845
    %v5877 = vpack.c.b16 %v5848, %v5847
    %v5878 = vpack.c.b16 %v5850, %v5849
    %v5879 = vpack.c.b16 %v5852, %v5851
    %v5880 = vpack.c.b16 %v5854, %v5853
    %v5881 = vpack.c.b16 %v5856, %v5855
    %v5882 = vpack.c.b16 %v5858, %v5857
    %v5883 = vpack.c.b16 %v5860, %v5859
    %v5884 = vpack.c.b16 %v5862, %v5861
    %v5885 = vpack.c.b16 %v5864, %v5863
    %v5886 = vpack.c.b16 %v5866, %v5865
    %v5887 = vpack.c.b16 %v5868, %v5867
    %v5888 = vpack.c.b16 %v5870, %v5869
    %v5889 = vpack.c.b16 %v5872, %v5871
    %v5890 = vpack.c.b16 %v5874, %v5873
    %5907 = vmatprep.subr.bf16.mxu0 0
    %5908 = vmatpush1.bf16.msra.mxu0 %v5875
    %5909 = vmatprep.subr.bf16.mxu0 0
    %5910 = vmatpush1.bf16.msra.mxu0 %v5876
    %5911 = vmatprep.subr.bf16.mxu0 0
    %5912 = vmatpush1.bf16.msra.mxu0 %v5877
    %5913 = vmatprep.subr.bf16.mxu0 0
    %5914 = vmatpush1.bf16.msra.mxu0 %v5878
    %5915 = vmatprep.subr.bf16.mxu0 0
    %5916 = vmatpush1.bf16.msra.mxu0 %v5879
    %5917 = vmatprep.subr.bf16.mxu0 0
    %5918 = vmatpush1.bf16.msra.mxu0 %v5880
    %5919 = vmatprep.subr.bf16.mxu0 0
    %5920 = vmatpush1.bf16.msra.mxu0 %v5881
    %5921 = vmatprep.subr.bf16.mxu0 0
    %5922 = vmatpush1.bf16.msra.mxu0 %v5882
    %5923 = vmatprep.subr.bf16.mxu0 0
    %5924 = vmatpush1.bf16.msra.mxu0 %v5883
    %5925 = vmatprep.subr.bf16.mxu0 0
    %5926 = vmatpush1.bf16.msra.mxu0 %v5884
    %5927 = vmatprep.subr.bf16.mxu0 0
    %5928 = vmatpush1.bf16.msra.mxu0 %v5885
    %5929 = vmatprep.subr.bf16.mxu0 0
    %5930 = vmatpush1.bf16.msra.mxu0 %v5886
    %5931 = vmatprep.subr.bf16.mxu0 0
    %5932 = vmatpush1.bf16.msra.mxu0 %v5887
    %5933 = vmatprep.subr.bf16.mxu0 0
    %5934 = vmatpush1.bf16.msra.mxu0 %v5888
    %5935 = vmatprep.subr.bf16.mxu0 0
    %5936 = vmatpush1.bf16.msra.mxu0 %v5889
    %5937 = vmatprep.subr.bf16.mxu0 0
    %5938 = vmatpush1.bf16.msra.mxu0 %v5890
    %5939 = vmatprep.mubr.bf16.mxu0 %v5771
    %5940 = vmatmul.mubr.bf16.gmra.mrb[0].mxu0 %v1860
    %v5941 = vpop.f32.mrb[0].mxu0
    %v5942 = vadd.f32 %v5809, %v5941
    %v5943 = vpop.f32.mrb[0].mxu0
    %v5944 = vpop.f32.mrb[0].mxu0
    %v5945 = vpop.f32.mrb[0].mxu0
    %5946 = vdwg.mxu0
    %5947 = vst [vmem:[#allocation17] sm:$0xff] %v5942
    // Predicated region
    $region102: #{flowcl_forward.1} parent=1 // pred_check
      _
    $region103: #{flowcl_forward.1} parent=1 // pred_check_branch
      %5949 = sbr.rel (0) target = $region105
    $region104: #{flowcl_forward.1} parent=1 // pred_region
      %s5951 = ssub.s32 128, 128
      %5952 = vsyncadd [#allocation4], %s5951
      %s5954 = sshll.u32 [#allocation17], 4
      %s5955 = int_to_ptr.vmem [resolvable:$true] %s5954
      %5957 = dma.vmem_to_hbm [thread:$0]  %s5955, 128, %s16, [#allocation4]
    $region105: #{flowcl_forward.1} parent=1 // pred_fallthru
      _
    // Predicated region
    $region106: #{flowcl_forward.1} parent=1 // pred_check
      _
    $region107: #{flowcl_forward.1} parent=1 // pred_check_branch
      %5959 = sbr.rel (0) target = $region109
    $region108: #{flowcl_forward.1} parent=1 // pred_region
      %s5961 = ssub.s32 256, 256
      %5962 = vsyncadd [#allocation19], %s5961
      %s5964 = sshll.u32 [#allocation18], 4
      %s5965 = int_to_ptr.vmem [resolvable:$true] %s5964
      %5967 = dma.vmem_to_hbm [thread:$0]  %s5965, 256, %s17, [#allocation19]
    $region109: #{flowcl_forward.1} parent=1 // pred_fallthru
      _
    // Predicated region
    $region110: #{flowcl_forward.1} parent=1 // pred_check
      _
    $region111: #{flowcl_forward.1} parent=1 // pred_check_branch
      %5969 = sbr.rel (0) target = $region113
    $region112: #{flowcl_forward.1} parent=1 // pred_region
      %s5971 = ssub.s32 16, 16
      %5972 = vsyncadd [#allocation19], %s5971
      %s5974 = sshll.u32 [#allocation20], 4
      %s5975 = int_to_ptr.vmem [resolvable:$true] %s5974
      %5977 = dma.vmem_to_hbm [thread:$0]  %s5975, 16, %s18, [#allocation19]
    $region113: #{flowcl_forward.1} parent=1 // pred_fallthru
      _
    // Predicated region
    $region114: #{flowcl_forward.1} parent=1 // pred_check
      _
    $region115: #{flowcl_forward.1} parent=1 // pred_check_branch
      %5979 = sbr.rel (0) target = $region117
    $region116: #{flowcl_forward.1} parent=1 // pred_region
      %5980 = dma.done [#allocation4], 128
    $region117: #{flowcl_forward.1} parent=1 // pred_fallthru
      _
    // Predicated region
    $region118: #{flowcl_forward.1} parent=1 // pred_check
      _
    $region119: #{flowcl_forward.1} parent=1 // pred_check_branch
      %5982 = sbr.rel (0) target = $region121
    $region120: #{flowcl_forward.1} parent=1 // pred_region
      %5983 = dma.done [#allocation19], 256
    $region121: #{flowcl_forward.1} parent=1 // pred_fallthru
      _
    // Predicated region
    $region122: #{flowcl_forward.1} parent=1 // pred_check
      _
    $region123: #{flowcl_forward.1} parent=1 // pred_check_branch
      %5985 = sbr.rel (0) target = $region125
    $region124: #{flowcl_forward.1} parent=1 // pred_region
      %5986 = dma.done [#allocation19], 16
    $region125: #{flowcl_forward.1} parent=1 // pred_fallthru
      _
    %5987 = vsyncpa [#allocation3], 1
    %5988 = vsyncpa [#allocation6], 1
    %5989 = vsyncpa [#allocation9], 1
    %5990 = vsyncpa [#allocation12], 1
    %5991 = vsyncpa [#allocation15], 1
    %5992 = vsyncpa [#allocation4], 1
    %5993 = vsyncpa [#allocation19], 1

</llo_original>
